<compile_context>
chip_gen: v7x
topology: tpu7x:2x2x1
jax: 0.10.0
libtpu: 0.0.40
codegen_flags: <defaults>
</compile_context>

<pallas_src>
import jax
import jax.numpy as jnp
from jax.experimental import pallas as pl
from jax.experimental.pallas import tpu as pltpu

EPS = 1e-6


def ln_linear_kernel(x_ref, gamma_ref, beta_ref, w_ref, b_ref, o_ref):
    # x_ref: [TM, C] f32   gamma/beta: [1, C] f32
    # w_ref: [C, F] bf16   b_ref: [1, F] f32   o_ref: [TM, F]
    x = x_ref[...]                                   # f32

    # LayerNorm over last dim (biased variance, eps inside rsqrt -> matches
    # torch.nn.LayerNorm(eps=1e-6)). Keep statistics in f32.
    mean = jnp.mean(x, axis=-1, keepdims=True)
    centered = x - mean
    var = jnp.mean(centered * centered, axis=-1, keepdims=True)
    inv = jax.lax.rsqrt(var + EPS)
    xn = centered * inv * gamma_ref[...] + beta_ref[...]

    # Linear: y = xn @ W^T + b (W passed pre-transposed as [C, F], bf16).
    # bf16 operands on the MXU, f32 accumulation.
    y = jnp.dot(xn.astype(jnp.bfloat16), w_ref[...],
                preferred_element_type=jnp.float32)
    o_ref[...] = (y + b_ref[...]).astype(o_ref.dtype)


def layernorm_linear(x, gamma, beta, weight, bias, *, tm=128):
    """x: [N, H, W, C]; weight: [F, C] (PyTorch layout); bias: [F]."""
    N, H, W, C = x.shape
    F = weight.shape[0]
    rows = N * H * W

    # Pad rows up to a multiple of the row tile (multiple of 8 sublanes).
    rows_p = pl.cdiv(rows, tm) * tm
    x2d = x.reshape(rows, C)
    if rows_p != rows:
        x2d = jnp.pad(x2d, ((0, rows_p - rows), (0, 0)))

    # Pre-transpose + cast the weight once (under jit this is constant-folded /
    # done once per call, never inside the kernel).
    w_t = weight.T.astype(jnp.bfloat16)          # [C, F]
    gamma2d = gamma.reshape(1, C)
    beta2d = beta.reshape(1, C)
    bias2d = bias.reshape(1, F)

    grid = (rows_p // tm,)

    out = pl.pallas_call(
        ln_linear_kernel,
        out_shape=jax.ShapeDtypeStruct((rows_p, F), x.dtype),
        grid_spec=pltpu.PrefetchScalarGridSpec(
            num_scalar_prefetch=0,
            grid=grid,
            in_specs=[
                pl.BlockSpec((tm, C), lambda i: (i, 0)),    # x: tiled over rows
                pl.BlockSpec((1, C), lambda i: (0, 0)),     # gamma: resident
                pl.BlockSpec((1, C), lambda i: (0, 0)),     # beta: resident
                pl.BlockSpec((C, F), lambda i: (0, 0)),     # W^T: resident
                pl.BlockSpec((1, F), lambda i: (0, 0)),     # bias: resident
            ],
            out_specs=pl.BlockSpec((tm, F), lambda i: (i, 0)),
        ),
        compiler_params=pltpu.CompilerParams(
            dimension_semantics=("parallel",),              # megacore on v7x
            vmem_limit_bytes=64 << 20,
        ),
    )(x2d, gamma2d, beta2d, w_t, bias2d)

    return out[:rows].reshape(N, H, W, F)


if __name__ == "__main__":
    key = jax.random.PRNGKey(0)
    kx, kw, kb = jax.random.split(key, 3)

    N, H, W, C, F = 1, 14, 14, 384, 1536

    x = jax.random.normal(kx, (N, H, W, C), dtype=jnp.float32)

    # Deterministic parameter init (LayerNorm: gamma=1, beta=0; Linear: random)
    gamma = jnp.ones((C,), dtype=jnp.float32)
    beta = jnp.zeros((C,), dtype=jnp.float32)
    bound = 1.0 / (C ** 0.5)
    weight = jax.random.uniform(kw, (F, C), minval=-bound, maxval=bound,
                                dtype=jnp.float32)
    bias = jax.random.uniform(kb, (F,), minval=-bound, maxval=bound,
                              dtype=jnp.float32)

    out = layernorm_linear(x, gamma, beta, weight, bias)
    jax.block_until_ready(out)

    # Sanity check against pure-JAX f32 reference (tolerance loosened for the
    # bf16-operand matmul; accumulation is f32).
    x2d = x.reshape(-1, C)
    mean = jnp.mean(x2d, axis=-1, keepdims=True)
    var = jnp.mean((x2d - mean) ** 2, axis=-1, keepdims=True)
    xn = (x2d - mean) * jax.lax.rsqrt(var + EPS) * gamma + beta
    ref = (xn @ weight.T + bias).reshape(N, H, W, F)
    assert jnp.allclose(out, ref, atol=3e-2, rtol=3e-2), "mismatch vs reference"

    print("KERNEL_OK")
</pallas_src>

<mosaic_0001>
module attributes {stable_mosaic.version = 11 : i64} {
  func.func @ln_linear_kernel(%arg0: i32, %arg1: memref<128x384xf32, #tpu.memory_space<vmem>>, %arg2: memref<1x384xf32, #tpu.memory_space<vmem>>, %arg3: memref<1x384xf32, #tpu.memory_space<vmem>>, %arg4: memref<384x1536xbf16, #tpu.memory_space<vmem>>, %arg5: memref<1x1536xf32, #tpu.memory_space<vmem>>, %arg6: memref<128x1536xf32, #tpu.memory_space<vmem>>) attributes {dimension_semantics = [#tpu.dimension_semantics<parallel>], iteration_bounds = array<i64: 2>, scalar_prefetch = 0 : i64, scratch_operands = 0 : i64, tpu.core_type = #tpu.core_type<tc>, window_params = [{transform_indices = @transform_0, window_bounds = array<i64: 128, 384>}, {pipeline_mode = #tpu.pipeline_mode<synchronous>, transform_indices = @transform_1, window_bounds = array<i64: 1, 384>}, {pipeline_mode = #tpu.pipeline_mode<synchronous>, transform_indices = @transform_2, window_bounds = array<i64: 1, 384>}, {pipeline_mode = #tpu.pipeline_mode<synchronous>, transform_indices = @transform_3, window_bounds = array<i64: 384, 1536>}, {pipeline_mode = #tpu.pipeline_mode<synchronous>, transform_indices = @transform_4, window_bounds = array<i64: 1, 1536>}, {transform_indices = @transform_5, window_bounds = array<i64: 128, 1536>}]} {
    %c0 = arith.constant 0 : index
    %c0_0 = arith.constant 0 : index
    %0 = vector.load %arg1[%c0, %c0_0] : memref<128x384xf32, #tpu.memory_space<vmem>>, vector<128x384xf32>
    %cst = arith.constant dense<0.000000e+00> : vector<128xf32>
    %1 = vector.multi_reduction <add>, %0, %cst [1] : vector<128x384xf32> to vector<128xf32>
    %2 = vector.shape_cast %1 : vector<128xf32> to vector<128x1xf32>
    %cst_1 = arith.constant 3.840000e+02 : f32
    %3 = vector.broadcast %cst_1 : f32 to vector<128x1xf32>
    %4 = arith.divf %2, %3 : vector<128x1xf32>
    %5 = vector.broadcast %4 : vector<128x1xf32> to vector<128x384xf32>
    %6 = arith.subf %0, %5 : vector<128x384xf32>
    %7 = arith.mulf %6, %6 : vector<128x384xf32>
    %cst_2 = arith.constant dense<0.000000e+00> : vector<128xf32>
    %8 = vector.multi_reduction <add>, %7, %cst_2 [1] : vector<128x384xf32> to vector<128xf32>
    %9 = vector.shape_cast %8 : vector<128xf32> to vector<128x1xf32>
    %cst_3 = arith.constant 3.840000e+02 : f32
    %10 = vector.broadcast %cst_3 : f32 to vector<128x1xf32>
    %11 = arith.divf %9, %10 : vector<128x1xf32>
    %cst_4 = arith.constant 9.99999997E-7 : f32
    %12 = vector.broadcast %cst_4 : f32 to vector<128x1xf32>
    %13 = arith.addf %11, %12 : vector<128x1xf32>
    %14 = math.rsqrt %13 : vector<128x1xf32>
    %15 = vector.broadcast %14 : vector<128x1xf32> to vector<128x384xf32>
    %16 = arith.mulf %6, %15 : vector<128x384xf32>
    %c0_5 = arith.constant 0 : index
    %c0_6 = arith.constant 0 : index
    %17 = vector.load %arg2[%c0_5, %c0_6] : memref<1x384xf32, #tpu.memory_space<vmem>>, vector<1x384xf32>
    %18 = vector.broadcast %17 : vector<1x384xf32> to vector<128x384xf32>
    %19 = arith.mulf %16, %18 : vector<128x384xf32>
    %c0_7 = arith.constant 0 : index
    %c0_8 = arith.constant 0 : index
    %20 = vector.load %arg3[%c0_7, %c0_8] : memref<1x384xf32, #tpu.memory_space<vmem>>, vector<1x384xf32>
    %21 = vector.broadcast %20 : vector<1x384xf32> to vector<128x384xf32>
    %22 = arith.addf %19, %21 : vector<128x384xf32>
    %23 = arith.truncf %22 : vector<128x384xf32> to vector<128x384xbf16>
    %c0_9 = arith.constant 0 : index
    %c0_10 = arith.constant 0 : index
    %24 = vector.load %arg4[%c0_9, %c0_10] : memref<384x1536xbf16, #tpu.memory_space<vmem>>, vector<384x1536xbf16>
    %cst_11 = arith.constant dense<0.000000e+00> : vector<128x1536xf32>
    %25 = tpu.matmul %23, %24, %cst_11 {dimension_numbers = #tpu.dot_dimension_numbers<[1], [0], [0], [1], [0, 0, 1, 1], [], []>} : vector<128x384xbf16>, vector<384x1536xbf16>, vector<128x1536xf32> -> vector<128x1536xf32>
    %c0_12 = arith.constant 0 : index
    %c0_13 = arith.constant 0 : index
    %26 = vector.load %arg5[%c0_12, %c0_13] : memref<1x1536xf32, #tpu.memory_space<vmem>>, vector<1x1536xf32>
    %27 = vector.broadcast %26 : vector<1x1536xf32> to vector<128x1536xf32>
    %28 = arith.addf %25, %27 : vector<128x1536xf32>
    %c0_14 = arith.constant 0 : index
    %c0_15 = arith.constant 0 : index
    %29 = vector.load %arg6[%c0_14, %c0_15] : memref<128x1536xf32, #tpu.memory_space<vmem>>, vector<128x1536xf32>
    tpu.vector_store %arg6[%c0_14, %c0_15], %28 {strides = array<i32>} : memref<128x1536xf32, #tpu.memory_space<vmem>>, vector<128x1536xf32>,
    return
  }
  func.func @transform_0(%arg0: i32) -> (i32, i32) {
    %c0_i32 = arith.constant 0 : i32
    %c0_i32_0 = arith.constant 0 : i32
    return %arg0, %c0_i32 : i32, i32
  }
  func.func @transform_1(%arg0: i32) -> (i32, i32) {
    %c0_i32 = arith.constant 0 : i32
    %c0_i32_0 = arith.constant 0 : i32
    %c0_i32_1 = arith.constant 0 : i32
    return %c0_i32, %c0_i32_0 : i32, i32
  }
  func.func @transform_2(%arg0: i32) -> (i32, i32) {
    %c0_i32 = arith.constant 0 : i32
    %c0_i32_0 = arith.constant 0 : i32
    %c0_i32_1 = arith.constant 0 : i32
    return %c0_i32, %c0_i32_0 : i32, i32
  }
  func.func @transform_3(%arg0: i32) -> (i32, i32) {
    %c0_i32 = arith.constant 0 : i32
    %c0_i32_0 = arith.constant 0 : i32
    %c0_i32_1 = arith.constant 0 : i32
    return %c0_i32, %c0_i32_0 : i32, i32
  }
  func.func @transform_4(%arg0: i32) -> (i32, i32) {
    %c0_i32 = arith.constant 0 : i32
    %c0_i32_0 = arith.constant 0 : i32
    %c0_i32_1 = arith.constant 0 : i32
    return %c0_i32, %c0_i32_0 : i32, i32
  }
  func.func @transform_5(%arg0: i32) -> (i32, i32) {
    %c0_i32 = arith.constant 0 : i32
    %c0_i32_0 = arith.constant 0 : i32
    return %arg0, %c0_i32 : i32, i32
  }
}

</mosaic_0001>

<llo_original>
// kernel: tpu_custom_call.1
$region0: #{tpu_custom_call.1}
  #allocation0 [shape = 'u32[]', space=smem, size = 0x4, offset = 0x4, fixed_abs, tag = 'smem constant byte address 0x4 - core index']
  #allocation1 [shape = 'u32[144,128]{1,0:T(1,128)}', space=vmem, size = 0x12000, scoped, tag = 'internal scratch']
  %s0 = inlined_call_operand.hbm [shape: f32[256,384], index: 0, kind: input, shape index: {}]
  %s1 = inlined_call_operand.hbm [shape: f32[1,384], index: 1, kind: input, shape index: {}]
  %s2 = inlined_call_operand.hbm [shape: f32[1,384], index: 2, kind: input, shape index: {}]
  %s3 = inlined_call_operand.hbm [shape: bf16[384,1536], index: 3, kind: input, shape index: {}]
  %s4 = inlined_call_operand.hbm [shape: f32[1,1536], index: 4, kind: input, shape index: {}]
  %s5 = inlined_call_operand.hbm [shape: f32[256,1536], index: 5, kind: output, shape index: {}]
  %s6 = sld [smem:[#allocation0]]
  $region73: #{tpu_custom_call.1} parent=0
    _
  %s8 = ssub.s32 1, %s6
  %s9 = scalar_select 0, %s8, %s6
  $region1: #{tpu_custom_call.1} parent=0
    #allocation2 [shape = 'u8[393216]{0}', space=vmem, size = 0x60000, scoped, tag = 'input window, operand 0']
    #allocation3 [shape = 's32[2]{0}', space=sflag, size = 0x8, scoped, tag = 'scoped memory for tpu_custom_call.1']
    #allocation4 [shape = 's32[2]{0}', space=sflag, size = 0x8, scoped, tag = 'scoped memory for tpu_custom_call.1']
    #allocation5 [shape = 'u8[1536]{0}', space=vmem, size = 0x800, scoped, tag = 'input window, operand 1, single buffered']
    #allocation6 [shape = 's32[1]{0}', space=sflag, size = 0x4, scoped, tag = 'scoped memory for tpu_custom_call.1']
    #allocation7 [shape = 'u8[1536]{0}', space=vmem, size = 0x800, scoped, tag = 'input window, operand 2, single buffered']
    #allocation8 [shape = 'u8[1179648]{0}', space=vmem, size = 0x120000, scoped, tag = 'input window, operand 3, single buffered']
    #allocation9 [shape = 's32[1]{0}', space=sflag, size = 0x4, scoped, tag = 'scoped memory for tpu_custom_call.1']
    #allocation10 [shape = 'u8[6144]{0}', space=vmem, size = 0x1800, scoped, tag = 'input window, operand 4, single buffered']
    #allocation11 [shape = 'u8[1572864]{0}', space=vmem, size = 0x180000, scoped, tag = 'output window, operand 0']
    %10 = vsyncpa [#allocation3], 0
    %s11 = scalar_lea.sflag [#allocation3], 1
    %12 = vsyncpa %s11, 0
    %13 = vsyncpa [#allocation6], 0
    %14 = vsyncpa [#allocation9], 0
    %15 = vsyncpa [#allocation4], 0
    %s16 = scalar_lea.sflag [#allocation4], 1
    %17 = vsyncpa %s16, 0
    loop: start=0, step=1, limit=4
    $region2: #{tpu_custom_call.1} parent=1 // loop_pre_header
      _
    $region3: #{tpu_custom_call.1} parent=1 // loop_header
      %s19 = sphi 0, %s23
      %p20 = scmp.ge.s32.totalorder %s19, 4
      %s29 = sphi 0, %s31
      %s32 = sphi 0, %s29
      %s33 = sphi 0, %s32
      %s49 = sphi 0, %s33
      %s53 = sphi 0, %s53
      %s55 = sphi 0, %s53
      %s56 = sphi 0, %s55
      %s70 = sphi 0, %s56
      %s74 = sphi 0, %s74
      %s76 = sphi 0, %s74
      %s77 = sphi 0, %s76
      %s91 = sphi 0, %s77
      %s95 = sphi 0, %s95
      %s97 = sphi 0, %s95
      %s98 = sphi 0, %s97
      %s112 = sphi 0, %s98
      %s116 = sphi 0, %s116
      %s118 = sphi 0, %s116
      %s119 = sphi 0, %s118
      %s133 = sphi 0, %s119
      %s139 = sphi 0, %s141
      %s142 = sphi 0, %s139
      %s143 = sphi 0, %s142
      %s159 = sphi 0, %s143
    $region4: #{tpu_custom_call.1} parent=1 // loop_header_branch
      %22 = sbr.rel (%p20) target = $region8
    $region5: #{tpu_custom_call.1} parent=1 // loop_body
      %s24 = ssub.s32 %s19, 1
      %s25 = ssub.s32 %s19, 2
      %s26 = sadd.s32 %s19, 1
      %s27 = ssub.s32 %s19, %s26
      %p28 = scmp.eq.s32.totalorder %s27, 0
      %s30 = sadd.s32 %s29, 1
      %s31 = scalar_select %p28, %s29, %s30
      %p34 = pneg %p28
      %p35 = scmp.eq.s32.totalorder %s19, 1
      %p36 = por %p34, %p35
      %p37 = scmp.ne.s32.totalorder %s29, %s32
      %p38 = scmp.eq.s32.totalorder %s19, 0
      %p39 = por %p37, %p38
      %p40 = scmp.ne.s32.totalorder %s29, %s32
      %p41 = scmp.eq.s32.totalorder %s24, 1
      %p42 = por %p40, %p41
      %p43 = scmp.ne.s32.totalorder %s32, %s33
      %p44 = scmp.eq.s32.totalorder %s24, 0
      %p45 = por %p43, %p44
      %p46 = scmp.ne.s32.totalorder %s32, %s33
      %p47 = scmp.eq.s32.totalorder %s25, 1
      %p48 = por %p46, %p47
      %p50 = scmp.ne.s32.totalorder %s33, %s49
      %p51 = scmp.eq.s32.totalorder %s25, 0
      %p52 = por %p50, %p51
      %s54 = sadd.s32 %s53, 1
      %p57 = scmp.eq.s32.totalorder %s19, 1
      %p58 = scmp.ne.s32.totalorder %s53, %s55
      %p59 = scmp.eq.s32.totalorder %s19, 0
      %p60 = por %p58, %p59
      %p61 = scmp.ne.s32.totalorder %s53, %s55
      %p62 = scmp.eq.s32.totalorder %s24, 1
      %p63 = por %p61, %p62
      %p64 = scmp.ne.s32.totalorder %s55, %s56
      %p65 = scmp.eq.s32.totalorder %s24, 0
      %p66 = por %p64, %p65
      %p67 = scmp.ne.s32.totalorder %s55, %s56
      %p68 = scmp.eq.s32.totalorder %s25, 1
      %p69 = por %p67, %p68
      %p71 = scmp.ne.s32.totalorder %s56, %s70
      %p72 = scmp.eq.s32.totalorder %s25, 0
      %p73 = por %p71, %p72
      %s75 = sadd.s32 %s74, 1
      %p78 = scmp.eq.s32.totalorder %s19, 1
      %p79 = scmp.ne.s32.totalorder %s74, %s76
      %p80 = scmp.eq.s32.totalorder %s19, 0
      %p81 = por %p79, %p80
      %p82 = scmp.ne.s32.totalorder %s74, %s76
      %p83 = scmp.eq.s32.totalorder %s24, 1
      %p84 = por %p82, %p83
      %p85 = scmp.ne.s32.totalorder %s76, %s77
      %p86 = scmp.eq.s32.totalorder %s24, 0
      %p87 = por %p85, %p86
      %p88 = scmp.ne.s32.totalorder %s76, %s77
      %p89 = scmp.eq.s32.totalorder %s25, 1
      %p90 = por %p88, %p89
      %p92 = scmp.ne.s32.totalorder %s77, %s91
      %p93 = scmp.eq.s32.totalorder %s25, 0
      %p94 = por %p92, %p93
      %s96 = sadd.s32 %s95, 1
      %p99 = scmp.eq.s32.totalorder %s19, 1
      %p100 = scmp.ne.s32.totalorder %s95, %s97
      %p101 = scmp.eq.s32.totalorder %s19, 0
      %p102 = por %p100, %p101
      %p103 = scmp.ne.s32.totalorder %s95, %s97
      %p104 = scmp.eq.s32.totalorder %s24, 1
      %p105 = por %p103, %p104
      %p106 = scmp.ne.s32.totalorder %s97, %s98
      %p107 = scmp.eq.s32.totalorder %s24, 0
      %p108 = por %p106, %p107
      %p109 = scmp.ne.s32.totalorder %s97, %s98
      %p110 = scmp.eq.s32.totalorder %s25, 1
      %p111 = por %p109, %p110
      %p113 = scmp.ne.s32.totalorder %s98, %s112
      %p114 = scmp.eq.s32.totalorder %s25, 0
      %p115 = por %p113, %p114
      %s117 = sadd.s32 %s116, 1
      %p120 = scmp.eq.s32.totalorder %s19, 1
      %p121 = scmp.ne.s32.totalorder %s116, %s118
      %p122 = scmp.eq.s32.totalorder %s19, 0
      %p123 = por %p121, %p122
      %p124 = scmp.ne.s32.totalorder %s116, %s118
      %p125 = scmp.eq.s32.totalorder %s24, 1
      %p126 = por %p124, %p125
      %p127 = scmp.ne.s32.totalorder %s118, %s119
      %p128 = scmp.eq.s32.totalorder %s24, 0
      %p129 = por %p127, %p128
      %p130 = scmp.ne.s32.totalorder %s118, %s119
      %p131 = scmp.eq.s32.totalorder %s25, 1
      %p132 = por %p130, %p131
      %p134 = scmp.ne.s32.totalorder %s119, %s133
      %p135 = scmp.eq.s32.totalorder %s25, 0
      %p136 = por %p134, %p135
      %s137 = ssub.s32 %s19, %s26
      %p138 = scmp.eq.s32.totalorder %s137, 0
      %s140 = sadd.s32 %s139, 1
      %s141 = scalar_select %p138, %s139, %s140
      %p144 = pneg %p138
      %p145 = scmp.eq.s32.totalorder %s19, 1
      %p146 = por %p144, %p145
      %p147 = scmp.ne.s32.totalorder %s139, %s142
      %p148 = scmp.eq.s32.totalorder %s19, 0
      %p149 = por %p147, %p148
      %p150 = scmp.ne.s32.totalorder %s139, %s142
      %p151 = scmp.eq.s32.totalorder %s24, 1
      %p152 = por %p150, %p151
      %p153 = scmp.ne.s32.totalorder %s142, %s143
      %p154 = scmp.eq.s32.totalorder %s24, 0
      %p155 = por %p153, %p154
      %p156 = scmp.ne.s32.totalorder %s142, %s143
      %p157 = scmp.eq.s32.totalorder %s25, 1
      %p158 = por %p156, %p157
      %p160 = scmp.ne.s32.totalorder %s143, %s159
      %p161 = scmp.eq.s32.totalorder %s25, 0
      %p162 = por %p160, %p161
      %p163 = scmp.le.s32.totalorder 1, %s19
      %p164 = scmp.lt.s32.totalorder %s19, 3
      %p165 = pnand %p163, %p164
      %p166 = pneg %p165
      // Predicated region
      $region9: #{tpu_custom_call.1} parent=5 // pred_check
        _
      $region10: #{tpu_custom_call.1} parent=5 // pred_check_branch
        %168 = sbr.rel (%p165) target = $region12
      $region11: #{tpu_custom_call.1} parent=5 // pred_region
        %s169 = ssub.s32 %s19, 1
        // Predicated region
        $region13: #{tpu_custom_call.1} parent=11 // pred_check
          %p170 = pneg %p66
        $region14: #{tpu_custom_call.1} parent=11 // pred_check_branch
          %172 = sbr.rel (%p170) target = $region16
        $region15: #{tpu_custom_call.1} parent=11 // pred_region
          %s174 = ssub.s32 48, 48
          %175 = vsyncadd [#allocation6], %s174
          %s177 = sshll.u32 [#allocation5], 4
          %s178 = int_to_ptr.vmem [resolvable:$true] %s177
          %180 = dma.hbm_to_vmem [thread:$0]  %s1, 48, %s178, [#allocation6]
        $region16: #{tpu_custom_call.1} parent=11 // pred_fallthru
          _
        // Predicated region
        $region17: #{tpu_custom_call.1} parent=11 // pred_check
          %p181 = pneg %p87
        $region18: #{tpu_custom_call.1} parent=11 // pred_check_branch
          %183 = sbr.rel (%p181) target = $region20
        $region19: #{tpu_custom_call.1} parent=11 // pred_region
          %s185 = ssub.s32 48, 48
          %186 = vsyncadd [#allocation6], %s185
          %s188 = sshll.u32 [#allocation7], 4
          %s189 = int_to_ptr.vmem [resolvable:$true] %s188
          %191 = dma.hbm_to_vmem [thread:$0]  %s2, 48, %s189, [#allocation6]
        $region20: #{tpu_custom_call.1} parent=11 // pred_fallthru
          _
        // Predicated region
        $region21: #{tpu_custom_call.1} parent=11 // pred_check
          %p192 = pneg %p108
        $region22: #{tpu_custom_call.1} parent=11 // pred_check_branch
          %194 = sbr.rel (%p192) target = $region24
        $region23: #{tpu_custom_call.1} parent=11 // pred_region
          %s196 = ssub.s32 36864, 36864
          %197 = vsyncadd [#allocation9], %s196
          %s198 = sshll.u32 [#allocation8], 4
          %s199 = int_to_ptr.vmem [resolvable:$true] %s198
          %204 = dma.hbm_to_vmem [thread:$0]  %s3, 36864, %s199, [#allocation9], 768, 768, 48
        $region24: #{tpu_custom_call.1} parent=11 // pred_fallthru
          _
        // Predicated region
        $region25: #{tpu_custom_call.1} parent=11 // pred_check
          %p205 = pneg %p129
        $region26: #{tpu_custom_call.1} parent=11 // pred_check_branch
          %207 = sbr.rel (%p205) target = $region28
        $region27: #{tpu_custom_call.1} parent=11 // pred_region
          %s209 = ssub.s32 192, 192
          %210 = vsyncadd [#allocation9], %s209
          %s212 = sshll.u32 [#allocation10], 4
          %s213 = int_to_ptr.vmem [resolvable:$true] %s212
          %215 = dma.hbm_to_vmem [thread:$0]  %s4, 192, %s213, [#allocation9]
        $region28: #{tpu_custom_call.1} parent=11 // pred_fallthru
          _
      $region12: #{tpu_custom_call.1} parent=5 // pred_fallthru
        _
      %p216 = scmp.lt.s32.totalorder %s19, 2
      // Predicated region
      $region29: #{tpu_custom_call.1} parent=5 // pred_check
        %p217 = pneg %p216
      $region30: #{tpu_custom_call.1} parent=5 // pred_check_branch
        %219 = sbr.rel (%p217) target = $region32
      $region31: #{tpu_custom_call.1} parent=5 // pred_region
        // Predicated region
        $region33: #{tpu_custom_call.1} parent=31 // pred_check
          %p220 = pneg %p39
        $region34: #{tpu_custom_call.1} parent=31 // pred_check_branch
          %222 = sbr.rel (%p220) target = $region36
        $region35: #{tpu_custom_call.1} parent=31 // pred_region
          %s223 = sand.u32 %s29, 1
          %s224 = scalar_lea.sflag [#allocation3], %s223
          %s225 = sand.u32 %s29, 1
          %s226 = smul.addr %s225, 384
          %s227 = scalar_lea.vmem [#allocation2], %s226
          %s228 = smul.u32 16, %s19
          %s230 = ssub.s32 6144, 6144
          %231 = vsyncadd %s224, %s230
          %s232 = smul.addr %s228, 3
          %s233 = smul.addr %s232, 128
          %s234 = scalar_lea.hbm %s0, %s233
          %s235 = sshll.u32 %s227, 4
          %s236 = int_to_ptr.vmem [resolvable:$true] %s235
          %241 = dma.hbm_to_vmem [thread:$0]  %s234, 6144, %s236, %s224, 384, 384, 24
        $region36: #{tpu_custom_call.1} parent=31 // pred_fallthru
          _
      $region32: #{tpu_custom_call.1} parent=5 // pred_fallthru
        _
      %p242 = scmp.le.s32.totalorder 1, %s19
      %p243 = scmp.lt.s32.totalorder %s19, 3
      %p244 = pnand %p242, %p243
      %p245 = pneg %p244
      // Predicated region
      $region37: #{tpu_custom_call.1} parent=5 // pred_check
        _
      $region38: #{tpu_custom_call.1} parent=5 // pred_check_branch
        %247 = sbr.rel (%p244) target = $region40
      $region39: #{tpu_custom_call.1} parent=5 // pred_region
        %s248 = ssub.s32 %s19, 1
        %s249 = sand.u32 %s32, 1
        %s250 = scalar_lea.sflag [#allocation3], %s249
        %s251 = sand.u32 %s32, 1
        %s252 = smul.addr %s251, 384
        %s253 = scalar_lea.vmem [#allocation2], %s252
        // Predicated region
        $region41: #{tpu_custom_call.1} parent=39 // pred_check
          %p254 = pneg %p45
        $region42: #{tpu_custom_call.1} parent=39 // pred_check_branch
          %256 = sbr.rel (%p254) target = $region44
        $region43: #{tpu_custom_call.1} parent=39 // pred_region
          %257 = dma.done %s250, 6144
        $region44: #{tpu_custom_call.1} parent=39 // pred_fallthru
          _
        // Predicated region
        $region45: #{tpu_custom_call.1} parent=39 // pred_check
          %p258 = pneg %p66
        $region46: #{tpu_custom_call.1} parent=39 // pred_check_branch
          %260 = sbr.rel (%p258) target = $region48
        $region47: #{tpu_custom_call.1} parent=39 // pred_region
          %261 = dma.done [#allocation6], 48
        $region48: #{tpu_custom_call.1} parent=39 // pred_fallthru
          _
        // Predicated region
        $region49: #{tpu_custom_call.1} parent=39 // pred_check
          %p262 = pneg %p87
        $region50: #{tpu_custom_call.1} parent=39 // pred_check_branch
          %264 = sbr.rel (%p262) target = $region52
        $region51: #{tpu_custom_call.1} parent=39 // pred_region
          %265 = dma.done [#allocation6], 48
        $region52: #{tpu_custom_call.1} parent=39 // pred_fallthru
          _
        // Predicated region
        $region53: #{tpu_custom_call.1} parent=39 // pred_check
          %p266 = pneg %p108
        $region54: #{tpu_custom_call.1} parent=39 // pred_check_branch
          %268 = sbr.rel (%p266) target = $region56
        $region55: #{tpu_custom_call.1} parent=39 // pred_region
          %269 = dma.done [#allocation9], 36864
        $region56: #{tpu_custom_call.1} parent=39 // pred_fallthru
          _
        // Predicated region
        $region57: #{tpu_custom_call.1} parent=39 // pred_check
          %p270 = pneg %p129
        $region58: #{tpu_custom_call.1} parent=39 // pred_check_branch
          %272 = sbr.rel (%p270) target = $region60
        $region59: #{tpu_custom_call.1} parent=39 // pred_region
          %273 = dma.done [#allocation9], 192
        $region60: #{tpu_custom_call.1} parent=39 // pred_fallthru
          _
        %s274 = sand.u32 %s32, 1
        %s275 = scalar_lea.sflag [#allocation3], %s274
        %s276 = sand.u32 %s32, 1
        %s277 = smul.addr %s276, 384
        %s278 = scalar_lea.vmem [#allocation2], %s277
        %p279 = pneg %p45
        %p280 = pneg %p42
        %p281 = pneg %p66
        %p282 = pneg %p63
        %p283 = pneg %p87
        %p284 = pneg %p84
        %p285 = pneg %p108
        %p286 = pneg %p105
        %p287 = pneg %p129
        %p288 = pneg %p126
        %p289 = pneg %p155
        %p290 = pneg %p152
        %s291 = sand.u32 %s142, 1
        %s292 = scalar_lea.sflag [#allocation4], %s291
        %s293 = sand.u32 %s142, 1
        %s294 = smul.addr %s293, 1536
        %s295 = scalar_lea.vmem [#allocation11], %s294
        %s296 = smul.u32 16, %s24
        %s297 = smul.u32 16, %s24
        %v299 = vld [vmem:[%s253] sm:$0xff]
        %v300 = vld [vmem:[%s253 + $0x8] sm:$0xff]
        %v301 = vld [vmem:[%s253 + $0x10] sm:$0xff]
        %v302 = vld [vmem:[%s253 + $0x18] sm:$0xff]
        %v303 = vld [vmem:[%s253 + $0x20] sm:$0xff]
        %v304 = vld [vmem:[%s253 + $0x28] sm:$0xff]
        %v305 = vld [vmem:[%s253 + $0x30] sm:$0xff]
        %v306 = vld [vmem:[%s253 + $0x38] sm:$0xff]
        %v307 = vld [vmem:[%s253 + $0x40] sm:$0xff]
        %v308 = vld [vmem:[%s253 + $0x48] sm:$0xff]
        %v309 = vld [vmem:[%s253 + $0x50] sm:$0xff]
        %v310 = vld [vmem:[%s253 + $0x58] sm:$0xff]
        %v311 = vld [vmem:[%s253 + $0x60] sm:$0xff]
        %v312 = vld [vmem:[%s253 + $0x68] sm:$0xff]
        %v313 = vld [vmem:[%s253 + $0x70] sm:$0xff]
        %v314 = vld [vmem:[%s253 + $0x78] sm:$0xff]
        %v315 = vld [vmem:[%s253 + $0x80] sm:$0xff]
        %v316 = vld [vmem:[%s253 + $0x88] sm:$0xff]
        %v317 = vld [vmem:[%s253 + $0x90] sm:$0xff]
        %v318 = vld [vmem:[%s253 + $0x98] sm:$0xff]
        %v319 = vld [vmem:[%s253 + $0xa0] sm:$0xff]
        %v320 = vld [vmem:[%s253 + $0xa8] sm:$0xff]
        %v321 = vld [vmem:[%s253 + $0xb0] sm:$0xff]
        %v322 = vld [vmem:[%s253 + $0xb8] sm:$0xff]
        %v323 = vld [vmem:[%s253 + $0xc0] sm:$0xff]
        %v324 = vld [vmem:[%s253 + $0xc8] sm:$0xff]
        %v325 = vld [vmem:[%s253 + $0xd0] sm:$0xff]
        %v326 = vld [vmem:[%s253 + $0xd8] sm:$0xff]
        %v327 = vld [vmem:[%s253 + $0xe0] sm:$0xff]
        %v328 = vld [vmem:[%s253 + $0xe8] sm:$0xff]
        %v329 = vld [vmem:[%s253 + $0xf0] sm:$0xff]
        %v330 = vld [vmem:[%s253 + $0xf8] sm:$0xff]
        %v331 = vld [vmem:[%s253 + $0x100] sm:$0xff]
        %v332 = vld [vmem:[%s253 + $0x108] sm:$0xff]
        %v333 = vld [vmem:[%s253 + $0x110] sm:$0xff]
        %v334 = vld [vmem:[%s253 + $0x118] sm:$0xff]
        %v335 = vld [vmem:[%s253 + $0x120] sm:$0xff]
        %v336 = vld [vmem:[%s253 + $0x128] sm:$0xff]
        %v337 = vld [vmem:[%s253 + $0x130] sm:$0xff]
        %v338 = vld [vmem:[%s253 + $0x138] sm:$0xff]
        %v339 = vld [vmem:[%s253 + $0x140] sm:$0xff]
        %v340 = vld [vmem:[%s253 + $0x148] sm:$0xff]
        %v341 = vld [vmem:[%s253 + $0x150] sm:$0xff]
        %v342 = vld [vmem:[%s253 + $0x158] sm:$0xff]
        %v343 = vld [vmem:[%s253 + $0x160] sm:$0xff]
        %v344 = vld [vmem:[%s253 + $0x168] sm:$0xff]
        %v345 = vld [vmem:[%s253 + $0x170] sm:$0xff]
        %v346 = vld [vmem:[%s253 + $0x178] sm:$0xff]
        %v347 = vadd.f32 %v299, %v300
        %v348 = vadd.f32 %v347, %v301
        %349 = vadd.xlane.f32.xlu0 %v348
        %v350 = vpop.xlane.xlu0 %349
        %v351 = vadd.f32 %v302, %v303
        %v352 = vadd.f32 %v351, %v304
        %353 = vadd.xlane.f32.xlu0 %v352
        %v354 = vpop.xlane.xlu0 %353
        %v355 = vadd.f32 %v305, %v306
        %v356 = vadd.f32 %v355, %v307
        %357 = vadd.xlane.f32.xlu0 %v356
        %v358 = vpop.xlane.xlu0 %357
        %v359 = vadd.f32 %v308, %v309
        %v360 = vadd.f32 %v359, %v310
        %361 = vadd.xlane.f32.xlu0 %v360
        %v362 = vpop.xlane.xlu0 %361
        %v363 = vadd.f32 %v311, %v312
        %v364 = vadd.f32 %v363, %v313
        %365 = vadd.xlane.f32.xlu0 %v364
        %v366 = vpop.xlane.xlu0 %365
        %v367 = vadd.f32 %v314, %v315
        %v368 = vadd.f32 %v367, %v316
        %369 = vadd.xlane.f32.xlu0 %v368
        %v370 = vpop.xlane.xlu0 %369
        %v371 = vadd.f32 %v317, %v318
        %v372 = vadd.f32 %v371, %v319
        %373 = vadd.xlane.f32.xlu0 %v372
        %v374 = vpop.xlane.xlu0 %373
        %v375 = vadd.f32 %v320, %v321
        %v376 = vadd.f32 %v375, %v322
        %377 = vadd.xlane.f32.xlu0 %v376
        %v378 = vpop.xlane.xlu0 %377
        %v379 = vadd.f32 %v323, %v324
        %v380 = vadd.f32 %v379, %v325
        %381 = vadd.xlane.f32.xlu0 %v380
        %v382 = vpop.xlane.xlu0 %381
        %v383 = vadd.f32 %v326, %v327
        %v384 = vadd.f32 %v383, %v328
        %385 = vadd.xlane.f32.xlu0 %v384
        %v386 = vpop.xlane.xlu0 %385
        %v387 = vadd.f32 %v329, %v330
        %v388 = vadd.f32 %v387, %v331
        %389 = vadd.xlane.f32.xlu0 %v388
        %v390 = vpop.xlane.xlu0 %389
        %v391 = vadd.f32 %v332, %v333
        %v392 = vadd.f32 %v391, %v334
        %393 = vadd.xlane.f32.xlu0 %v392
        %v394 = vpop.xlane.xlu0 %393
        %v395 = vadd.f32 %v335, %v336
        %v396 = vadd.f32 %v395, %v337
        %397 = vadd.xlane.f32.xlu0 %v396
        %v398 = vpop.xlane.xlu0 %397
        %v399 = vadd.f32 %v338, %v339
        %v400 = vadd.f32 %v399, %v340
        %401 = vadd.xlane.f32.xlu0 %v400
        %v402 = vpop.xlane.xlu0 %401
        %v403 = vadd.f32 %v341, %v342
        %v404 = vadd.f32 %v403, %v343
        %405 = vadd.xlane.f32.xlu0 %v404
        %v406 = vpop.xlane.xlu0 %405
        %v407 = vadd.f32 %v344, %v345
        %v408 = vadd.f32 %v407, %v346
        %409 = vadd.xlane.f32.xlu0 %v408
        %v410 = vpop.xlane.xlu0 %409
        %v411 = vrcp.pop 384.0
        %v412 = vmul.f32 %v350, %v411
        %v413 = vmul.f32 %v354, %v411
        %v414 = vmul.f32 %v358, %v411
        %v415 = vmul.f32 %v362, %v411
        %v416 = vmul.f32 %v366, %v411
        %v417 = vmul.f32 %v370, %v411
        %v418 = vmul.f32 %v374, %v411
        %v419 = vmul.f32 %v378, %v411
        %v420 = vmul.f32 %v382, %v411
        %v421 = vmul.f32 %v386, %v411
        %v422 = vmul.f32 %v390, %v411
        %v423 = vmul.f32 %v394, %v411
        %v424 = vmul.f32 %v398, %v411
        %v425 = vmul.f32 %v402, %v411
        %v426 = vmul.f32 %v406, %v411
        %v427 = vmul.f32 %v410, %v411
        %v428 = vsub.f32 %v299, %v412
        %v429 = vsub.f32 %v300, %v412
        %v430 = vsub.f32 %v301, %v412
        %v431 = vsub.f32 %v302, %v413
        %v432 = vsub.f32 %v303, %v413
        %v433 = vsub.f32 %v304, %v413
        %v434 = vsub.f32 %v305, %v414
        %v435 = vsub.f32 %v306, %v414
        %v436 = vsub.f32 %v307, %v414
        %v437 = vsub.f32 %v308, %v415
        %v438 = vsub.f32 %v309, %v415
        %v439 = vsub.f32 %v310, %v415
        %v440 = vsub.f32 %v311, %v416
        %v441 = vsub.f32 %v312, %v416
        %v442 = vsub.f32 %v313, %v416
        %v443 = vsub.f32 %v314, %v417
        %v444 = vsub.f32 %v315, %v417
        %v445 = vsub.f32 %v316, %v417
        %v446 = vsub.f32 %v317, %v418
        %v447 = vsub.f32 %v318, %v418
        %v448 = vsub.f32 %v319, %v418
        %v449 = vsub.f32 %v320, %v419
        %v450 = vsub.f32 %v321, %v419
        %v451 = vsub.f32 %v322, %v419
        %v452 = vsub.f32 %v323, %v420
        %v453 = vsub.f32 %v324, %v420
        %v454 = vsub.f32 %v325, %v420
        %v455 = vsub.f32 %v326, %v421
        %v456 = vsub.f32 %v327, %v421
        %v457 = vsub.f32 %v328, %v421
        %v458 = vsub.f32 %v329, %v422
        %v459 = vsub.f32 %v330, %v422
        %v460 = vsub.f32 %v331, %v422
        %v461 = vsub.f32 %v332, %v423
        %v462 = vsub.f32 %v333, %v423
        %v463 = vsub.f32 %v334, %v423
        %v464 = vsub.f32 %v335, %v424
        %v465 = vsub.f32 %v336, %v424
        %v466 = vsub.f32 %v337, %v424
        %v467 = vsub.f32 %v338, %v425
        %v468 = vsub.f32 %v339, %v425
        %v469 = vsub.f32 %v340, %v425
        %v470 = vsub.f32 %v341, %v426
        %v471 = vsub.f32 %v342, %v426
        %v472 = vsub.f32 %v343, %v426
        %v473 = vsub.f32 %v344, %v427
        %v474 = vsub.f32 %v345, %v427
        %v475 = vsub.f32 %v346, %v427
        %v476 = vmul.f32 %v428, %v428
        %v477 = vmul.f32 %v429, %v429
        %v478 = vmul.f32 %v430, %v430
        %v479 = vmul.f32 %v431, %v431
        %v480 = vmul.f32 %v432, %v432
        %v481 = vmul.f32 %v433, %v433
        %v482 = vmul.f32 %v434, %v434
        %v483 = vmul.f32 %v435, %v435
        %v484 = vmul.f32 %v436, %v436
        %v485 = vmul.f32 %v437, %v437
        %v486 = vmul.f32 %v438, %v438
        %v487 = vmul.f32 %v439, %v439
        %v488 = vmul.f32 %v440, %v440
        %v489 = vmul.f32 %v441, %v441
        %v490 = vmul.f32 %v442, %v442
        %v491 = vmul.f32 %v443, %v443
        %v492 = vmul.f32 %v444, %v444
        %v493 = vmul.f32 %v445, %v445
        %v494 = vmul.f32 %v446, %v446
        %v495 = vmul.f32 %v447, %v447
        %v496 = vmul.f32 %v448, %v448
        %v497 = vmul.f32 %v449, %v449
        %v498 = vmul.f32 %v450, %v450
        %v499 = vmul.f32 %v451, %v451
        %v500 = vmul.f32 %v452, %v452
        %v501 = vmul.f32 %v453, %v453
        %v502 = vmul.f32 %v454, %v454
        %v503 = vmul.f32 %v455, %v455
        %v504 = vmul.f32 %v456, %v456
        %v505 = vmul.f32 %v457, %v457
        %v506 = vmul.f32 %v458, %v458
        %v507 = vmul.f32 %v459, %v459
        %v508 = vmul.f32 %v460, %v460
        %v509 = vmul.f32 %v461, %v461
        %v510 = vmul.f32 %v462, %v462
        %v511 = vmul.f32 %v463, %v463
        %v512 = vmul.f32 %v464, %v464
        %v513 = vmul.f32 %v465, %v465
        %v514 = vmul.f32 %v466, %v466
        %v515 = vmul.f32 %v467, %v467
        %v516 = vmul.f32 %v468, %v468
        %v517 = vmul.f32 %v469, %v469
        %v518 = vmul.f32 %v470, %v470
        %v519 = vmul.f32 %v471, %v471
        %v520 = vmul.f32 %v472, %v472
        %v521 = vmul.f32 %v473, %v473
        %v522 = vmul.f32 %v474, %v474
        %v523 = vmul.f32 %v475, %v475
        %v524 = vadd.f32 %v476, %v477
        %v525 = vadd.f32 %v524, %v478
        %526 = vadd.xlane.f32.xlu0 %v525
        %v527 = vpop.xlane.xlu0 %526
        %v528 = vadd.f32 %v479, %v480
        %v529 = vadd.f32 %v528, %v481
        %530 = vadd.xlane.f32.xlu0 %v529
        %v531 = vpop.xlane.xlu0 %530
        %v532 = vadd.f32 %v482, %v483
        %v533 = vadd.f32 %v532, %v484
        %534 = vadd.xlane.f32.xlu0 %v533
        %v535 = vpop.xlane.xlu0 %534
        %v536 = vadd.f32 %v485, %v486
        %v537 = vadd.f32 %v536, %v487
        %538 = vadd.xlane.f32.xlu0 %v537
        %v539 = vpop.xlane.xlu0 %538
        %v540 = vadd.f32 %v488, %v489
        %v541 = vadd.f32 %v540, %v490
        %542 = vadd.xlane.f32.xlu0 %v541
        %v543 = vpop.xlane.xlu0 %542
        %v544 = vadd.f32 %v491, %v492
        %v545 = vadd.f32 %v544, %v493
        %546 = vadd.xlane.f32.xlu0 %v545
        %v547 = vpop.xlane.xlu0 %546
        %v548 = vadd.f32 %v494, %v495
        %v549 = vadd.f32 %v548, %v496
        %550 = vadd.xlane.f32.xlu0 %v549
        %v551 = vpop.xlane.xlu0 %550
        %v552 = vadd.f32 %v497, %v498
        %v553 = vadd.f32 %v552, %v499
        %554 = vadd.xlane.f32.xlu0 %v553
        %v555 = vpop.xlane.xlu0 %554
        %v556 = vadd.f32 %v500, %v501
        %v557 = vadd.f32 %v556, %v502
        %558 = vadd.xlane.f32.xlu0 %v557
        %v559 = vpop.xlane.xlu0 %558
        %v560 = vadd.f32 %v503, %v504
        %v561 = vadd.f32 %v560, %v505
        %562 = vadd.xlane.f32.xlu0 %v561
        %v563 = vpop.xlane.xlu0 %562
        %v564 = vadd.f32 %v506, %v507
        %v565 = vadd.f32 %v564, %v508
        %566 = vadd.xlane.f32.xlu0 %v565
        %v567 = vpop.xlane.xlu0 %566
        %v568 = vadd.f32 %v509, %v510
        %v569 = vadd.f32 %v568, %v511
        %570 = vadd.xlane.f32.xlu0 %v569
        %v571 = vpop.xlane.xlu0 %570
        %v572 = vadd.f32 %v512, %v513
        %v573 = vadd.f32 %v572, %v514
        %574 = vadd.xlane.f32.xlu0 %v573
        %v575 = vpop.xlane.xlu0 %574
        %v576 = vadd.f32 %v515, %v516
        %v577 = vadd.f32 %v576, %v517
        %578 = vadd.xlane.f32.xlu0 %v577
        %v579 = vpop.xlane.xlu0 %578
        %v580 = vadd.f32 %v518, %v519
        %v581 = vadd.f32 %v580, %v520
        %582 = vadd.xlane.f32.xlu0 %v581
        %v583 = vpop.xlane.xlu0 %582
        %v584 = vadd.f32 %v521, %v522
        %v585 = vadd.f32 %v584, %v523
        %586 = vadd.xlane.f32.xlu0 %v585
        %v587 = vpop.xlane.xlu0 %586
        %v588 = vmul.f32 %v527, %v411
        %v589 = vmul.f32 %v531, %v411
        %v590 = vmul.f32 %v535, %v411
        %v591 = vmul.f32 %v539, %v411
        %v592 = vmul.f32 %v543, %v411
        %v593 = vmul.f32 %v547, %v411
        %v594 = vmul.f32 %v551, %v411
        %v595 = vmul.f32 %v555, %v411
        %v596 = vmul.f32 %v559, %v411
        %v597 = vmul.f32 %v563, %v411
        %v598 = vmul.f32 %v567, %v411
        %v599 = vmul.f32 %v571, %v411
        %v600 = vmul.f32 %v575, %v411
        %v601 = vmul.f32 %v579, %v411
        %v602 = vmul.f32 %v583, %v411
        %v603 = vmul.f32 %v587, %v411
        %v604 = vadd.f32 %v588, 1e-06
        %v605 = vadd.f32 %v589, 1e-06
        %v606 = vadd.f32 %v590, 1e-06
        %v607 = vadd.f32 %v591, 1e-06
        %v608 = vadd.f32 %v592, 1e-06
        %v609 = vadd.f32 %v593, 1e-06
        %v610 = vadd.f32 %v594, 1e-06
        %v611 = vadd.f32 %v595, 1e-06
        %v612 = vadd.f32 %v596, 1e-06
        %v613 = vadd.f32 %v597, 1e-06
        %v614 = vadd.f32 %v598, 1e-06
        %v615 = vadd.f32 %v599, 1e-06
        %v616 = vadd.f32 %v600, 1e-06
        %v617 = vadd.f32 %v601, 1e-06
        %v618 = vadd.f32 %v602, 1e-06
        %v619 = vadd.f32 %v603, 1e-06
        %v620 = vrsqrt.pop %v604
        %v621 = vrsqrt.pop %v605
        %v622 = vrsqrt.pop %v606
        %v623 = vrsqrt.pop %v607
        %v624 = vrsqrt.pop %v608
        %v625 = vrsqrt.pop %v609
        %v626 = vrsqrt.pop %v610
        %v627 = vrsqrt.pop %v611
        %v628 = vrsqrt.pop %v612
        %v629 = vrsqrt.pop %v613
        %v630 = vrsqrt.pop %v614
        %v631 = vrsqrt.pop %v615
        %v632 = vrsqrt.pop %v616
        %v633 = vrsqrt.pop %v617
        %v634 = vrsqrt.pop %v618
        %v635 = vrsqrt.pop %v619
        %v636 = vmul.f32 %v428, %v620
        %v637 = vmul.f32 %v429, %v620
        %v638 = vmul.f32 %v430, %v620
        %v639 = vmul.f32 %v431, %v621
        %v640 = vmul.f32 %v432, %v621
        %v641 = vmul.f32 %v433, %v621
        %v642 = vmul.f32 %v434, %v622
        %v643 = vmul.f32 %v435, %v622
        %v644 = vmul.f32 %v436, %v622
        %v645 = vmul.f32 %v437, %v623
        %v646 = vmul.f32 %v438, %v623
        %v647 = vmul.f32 %v439, %v623
        %v648 = vmul.f32 %v440, %v624
        %v649 = vmul.f32 %v441, %v624
        %v650 = vmul.f32 %v442, %v624
        %v651 = vmul.f32 %v443, %v625
        %v652 = vmul.f32 %v444, %v625
        %v653 = vmul.f32 %v445, %v625
        %v654 = vmul.f32 %v446, %v626
        %v655 = vmul.f32 %v447, %v626
        %v656 = vmul.f32 %v448, %v626
        %v657 = vmul.f32 %v449, %v627
        %v658 = vmul.f32 %v450, %v627
        %v659 = vmul.f32 %v451, %v627
        %v660 = vmul.f32 %v452, %v628
        %v661 = vmul.f32 %v453, %v628
        %v662 = vmul.f32 %v454, %v628
        %v663 = vmul.f32 %v455, %v629
        %v664 = vmul.f32 %v456, %v629
        %v665 = vmul.f32 %v457, %v629
        %v666 = vmul.f32 %v458, %v630
        %v667 = vmul.f32 %v459, %v630
        %v668 = vmul.f32 %v460, %v630
        %v669 = vmul.f32 %v461, %v631
        %v670 = vmul.f32 %v462, %v631
        %v671 = vmul.f32 %v463, %v631
        %v672 = vmul.f32 %v464, %v632
        %v673 = vmul.f32 %v465, %v632
        %v674 = vmul.f32 %v466, %v632
        %v675 = vmul.f32 %v467, %v633
        %v676 = vmul.f32 %v468, %v633
        %v677 = vmul.f32 %v469, %v633
        %v678 = vmul.f32 %v470, %v634
        %v679 = vmul.f32 %v471, %v634
        %v680 = vmul.f32 %v472, %v634
        %v681 = vmul.f32 %v473, %v635
        %v682 = vmul.f32 %v474, %v635
        %v683 = vmul.f32 %v475, %v635
        %v684 = vld [vmem:[#allocation5] sm:$0x7]
        %v686 = vlaneseq
        %v687 = vshrl.u32 %v686, 7
        %v688 = vsub.s32 0, %v687
        %v689 = vrot.slane %v684, %v688
        %v690 = vlaneseq
        %v691 = vshrl.u32 %v690, 7
        %v692 = vsub.s32 1, %v691
        %v693 = vrot.slane %v684, %v692
        %v694 = vlaneseq
        %v695 = vshrl.u32 %v694, 7
        %v696 = vsub.s32 2, %v695
        %v697 = vrot.slane %v684, %v696
        %v701 = vmul.f32 %v636, %v689
        %v702 = vmul.f32 %v637, %v693
        %v703 = vmul.f32 %v638, %v697
        %v704 = vmul.f32 %v639, %v689
        %v705 = vmul.f32 %v640, %v693
        %v706 = vmul.f32 %v641, %v697
        %v707 = vmul.f32 %v642, %v689
        %v708 = vmul.f32 %v643, %v693
        %v709 = vmul.f32 %v644, %v697
        %v710 = vmul.f32 %v645, %v689
        %v711 = vmul.f32 %v646, %v693
        %v712 = vmul.f32 %v647, %v697
        %v713 = vmul.f32 %v648, %v689
        %v714 = vmul.f32 %v649, %v693
        %v715 = vmul.f32 %v650, %v697
        %v716 = vmul.f32 %v651, %v689
        %v717 = vmul.f32 %v652, %v693
        %v718 = vmul.f32 %v653, %v697
        %v719 = vmul.f32 %v654, %v689
        %v720 = vmul.f32 %v655, %v693
        %v721 = vmul.f32 %v656, %v697
        %v722 = vmul.f32 %v657, %v689
        %v723 = vmul.f32 %v658, %v693
        %v724 = vmul.f32 %v659, %v697
        %v725 = vmul.f32 %v660, %v689
        %v726 = vmul.f32 %v661, %v693
        %v727 = vmul.f32 %v662, %v697
        %v728 = vmul.f32 %v663, %v689
        %v729 = vmul.f32 %v664, %v693
        %v730 = vmul.f32 %v665, %v697
        %v731 = vmul.f32 %v666, %v689
        %v732 = vmul.f32 %v667, %v693
        %v733 = vmul.f32 %v668, %v697
        %v734 = vmul.f32 %v669, %v689
        %v735 = vmul.f32 %v670, %v693
        %v736 = vmul.f32 %v671, %v697
        %v737 = vmul.f32 %v672, %v689
        %v738 = vmul.f32 %v673, %v693
        %v739 = vmul.f32 %v674, %v697
        %v740 = vmul.f32 %v675, %v689
        %v741 = vmul.f32 %v676, %v693
        %v742 = vmul.f32 %v677, %v697
        %v743 = vmul.f32 %v678, %v689
        %v744 = vmul.f32 %v679, %v693
        %v745 = vmul.f32 %v680, %v697
        %v746 = vmul.f32 %v681, %v689
        %v747 = vmul.f32 %v682, %v693
        %v748 = vmul.f32 %v683, %v697
        %v749 = vld [vmem:[#allocation7] sm:$0x7]
        %v751 = vlaneseq
        %v752 = vshrl.u32 %v751, 7
        %v753 = vsub.s32 0, %v752
        %v754 = vrot.slane %v749, %v753
        %v755 = vlaneseq
        %v756 = vshrl.u32 %v755, 7
        %v757 = vsub.s32 1, %v756
        %v758 = vrot.slane %v749, %v757
        %v759 = vlaneseq
        %v760 = vshrl.u32 %v759, 7
        %v761 = vsub.s32 2, %v760
        %v762 = vrot.slane %v749, %v761
        %v766 = vadd.f32 %v701, %v754
        %v767 = vadd.f32 %v702, %v758
        %v768 = vadd.f32 %v703, %v762
        %v769 = vadd.f32 %v704, %v754
        %v770 = vadd.f32 %v705, %v758
        %v771 = vadd.f32 %v706, %v762
        %v772 = vadd.f32 %v707, %v754
        %v773 = vadd.f32 %v708, %v758
        %v774 = vadd.f32 %v709, %v762
        %v775 = vadd.f32 %v710, %v754
        %v776 = vadd.f32 %v711, %v758
        %v777 = vadd.f32 %v712, %v762
        %v778 = vadd.f32 %v713, %v754
        %v779 = vadd.f32 %v714, %v758
        %v780 = vadd.f32 %v715, %v762
        %v781 = vadd.f32 %v716, %v754
        %v782 = vadd.f32 %v717, %v758
        %v783 = vadd.f32 %v718, %v762
        %v784 = vadd.f32 %v719, %v754
        %v785 = vadd.f32 %v720, %v758
        %v786 = vadd.f32 %v721, %v762
        %v787 = vadd.f32 %v722, %v754
        %v788 = vadd.f32 %v723, %v758
        %v789 = vadd.f32 %v724, %v762
        %v790 = vadd.f32 %v725, %v754
        %v791 = vadd.f32 %v726, %v758
        %v792 = vadd.f32 %v727, %v762
        %v793 = vadd.f32 %v728, %v754
        %v794 = vadd.f32 %v729, %v758
        %v795 = vadd.f32 %v730, %v762
        %v796 = vadd.f32 %v731, %v754
        %v797 = vadd.f32 %v732, %v758
        %v798 = vadd.f32 %v733, %v762
        %v799 = vadd.f32 %v734, %v754
        %v800 = vadd.f32 %v735, %v758
        %v801 = vadd.f32 %v736, %v762
        %v802 = vadd.f32 %v737, %v754
        %v803 = vadd.f32 %v738, %v758
        %v804 = vadd.f32 %v739, %v762
        %v805 = vadd.f32 %v740, %v754
        %v806 = vadd.f32 %v741, %v758
        %v807 = vadd.f32 %v742, %v762
        %v808 = vadd.f32 %v743, %v754
        %v809 = vadd.f32 %v744, %v758
        %v810 = vadd.f32 %v745, %v762
        %v811 = vadd.f32 %v746, %v754
        %v812 = vadd.f32 %v747, %v758
        %v813 = vadd.f32 %v748, %v762
        %v814 = vpack.c.bf16 %v769, %v766
        %v815 = vpack.c.bf16 %v770, %v767
        %v816 = vpack.c.bf16 %v771, %v768
        %v817 = vpack.c.bf16 %v775, %v772
        %v818 = vpack.c.bf16 %v776, %v773
        %v819 = vpack.c.bf16 %v777, %v774
        %v820 = vpack.c.bf16 %v781, %v778
        %v821 = vpack.c.bf16 %v782, %v779
        %v822 = vpack.c.bf16 %v783, %v780
        %v823 = vpack.c.bf16 %v787, %v784
        %v824 = vpack.c.bf16 %v788, %v785
        %v825 = vpack.c.bf16 %v789, %v786
        %v826 = vpack.c.bf16 %v793, %v790
        %v827 = vpack.c.bf16 %v794, %v791
        %v828 = vpack.c.bf16 %v795, %v792
        %v829 = vpack.c.bf16 %v799, %v796
        %v830 = vpack.c.bf16 %v800, %v797
        %v831 = vpack.c.bf16 %v801, %v798
        %v832 = vpack.c.bf16 %v805, %v802
        %v833 = vpack.c.bf16 %v806, %v803
        %v834 = vpack.c.bf16 %v807, %v804
        %v835 = vpack.c.bf16 %v811, %v808
        %v836 = vpack.c.bf16 %v812, %v809
        %v837 = vpack.c.bf16 %v813, %v810
        %v838 = vld [vmem:[#allocation8] sm:$0xff]
        %v839 = vld [vmem:[#allocation8 + $0x8] sm:$0xff]
        %v840 = vld [vmem:[#allocation8 + $0x10] sm:$0xff]
        %v841 = vld [vmem:[#allocation8 + $0x18] sm:$0xff]
        %v842 = vld [vmem:[#allocation8 + $0x20] sm:$0xff]
        %v843 = vld [vmem:[#allocation8 + $0x28] sm:$0xff]
        %v844 = vld [vmem:[#allocation8 + $0x30] sm:$0xff]
        %v845 = vld [vmem:[#allocation8 + $0x38] sm:$0xff]
        %v846 = vld [vmem:[#allocation8 + $0x40] sm:$0xff]
        %v847 = vld [vmem:[#allocation8 + $0x48] sm:$0xff]
        %v848 = vld [vmem:[#allocation8 + $0x50] sm:$0xff]
        %v849 = vld [vmem:[#allocation8 + $0x58] sm:$0xff]
        %v850 = vld [vmem:[#allocation8 + $0x60] sm:$0xff]
        %v851 = vld [vmem:[#allocation8 + $0x68] sm:$0xff]
        %v852 = vld [vmem:[#allocation8 + $0x70] sm:$0xff]
        %v853 = vld [vmem:[#allocation8 + $0x78] sm:$0xff]
        %v854 = vld [vmem:[#allocation8 + $0x80] sm:$0xff]
        %v855 = vld [vmem:[#allocation8 + $0x88] sm:$0xff]
        %v856 = vld [vmem:[#allocation8 + $0x90] sm:$0xff]
        %v857 = vld [vmem:[#allocation8 + $0x98] sm:$0xff]
        %v858 = vld [vmem:[#allocation8 + $0xa0] sm:$0xff]
        %v859 = vld [vmem:[#allocation8 + $0xa8] sm:$0xff]
        %v860 = vld [vmem:[#allocation8 + $0xb0] sm:$0xff]
        %v861 = vld [vmem:[#allocation8 + $0xb8] sm:$0xff]
        %v862 = vld [vmem:[#allocation8 + $0xc0] sm:$0xff]
        %v863 = vld [vmem:[#allocation8 + $0xc8] sm:$0xff]
        %v864 = vld [vmem:[#allocation8 + $0xd0] sm:$0xff]
        %v865 = vld [vmem:[#allocation8 + $0xd8] sm:$0xff]
        %v866 = vld [vmem:[#allocation8 + $0xe0] sm:$0xff]
        %v867 = vld [vmem:[#allocation8 + $0xe8] sm:$0xff]
        %v868 = vld [vmem:[#allocation8 + $0xf0] sm:$0xff]
        %v869 = vld [vmem:[#allocation8 + $0xf8] sm:$0xff]
        %v870 = vld [vmem:[#allocation8 + $0x100] sm:$0xff]
        %v871 = vld [vmem:[#allocation8 + $0x108] sm:$0xff]
        %v872 = vld [vmem:[#allocation8 + $0x110] sm:$0xff]
        %v873 = vld [vmem:[#allocation8 + $0x118] sm:$0xff]
        %v874 = vld [vmem:[#allocation8 + $0x120] sm:$0xff]
        %v875 = vld [vmem:[#allocation8 + $0x128] sm:$0xff]
        %v876 = vld [vmem:[#allocation8 + $0x130] sm:$0xff]
        %v877 = vld [vmem:[#allocation8 + $0x138] sm:$0xff]
        %v878 = vld [vmem:[#allocation8 + $0x140] sm:$0xff]
        %v879 = vld [vmem:[#allocation8 + $0x148] sm:$0xff]
        %v880 = vld [vmem:[#allocation8 + $0x150] sm:$0xff]
        %v881 = vld [vmem:[#allocation8 + $0x158] sm:$0xff]
        %v882 = vld [vmem:[#allocation8 + $0x160] sm:$0xff]
        %v883 = vld [vmem:[#allocation8 + $0x168] sm:$0xff]
        %v884 = vld [vmem:[#allocation8 + $0x170] sm:$0xff]
        %v885 = vld [vmem:[#allocation8 + $0x178] sm:$0xff]
        %v886 = vld [vmem:[#allocation8 + $0x180] sm:$0xff]
        %v887 = vld [vmem:[#allocation8 + $0x188] sm:$0xff]
        %v888 = vld [vmem:[#allocation8 + $0x190] sm:$0xff]
        %v889 = vld [vmem:[#allocation8 + $0x198] sm:$0xff]
        %v890 = vld [vmem:[#allocation8 + $0x1a0] sm:$0xff]
        %v891 = vld [vmem:[#allocation8 + $0x1a8] sm:$0xff]
        %v892 = vld [vmem:[#allocation8 + $0x1b0] sm:$0xff]
        %v893 = vld [vmem:[#allocation8 + $0x1b8] sm:$0xff]
        %v894 = vld [vmem:[#allocation8 + $0x1c0] sm:$0xff]
        %v895 = vld [vmem:[#allocation8 + $0x1c8] sm:$0xff]
        %v896 = vld [vmem:[#allocation8 + $0x1d0] sm:$0xff]
        %v897 = vld [vmem:[#allocation8 + $0x1d8] sm:$0xff]
        %v898 = vld [vmem:[#allocation8 + $0x1e0] sm:$0xff]
        %v899 = vld [vmem:[#allocation8 + $0x1e8] sm:$0xff]
        %v900 = vld [vmem:[#allocation8 + $0x1f0] sm:$0xff]
        %v901 = vld [vmem:[#allocation8 + $0x1f8] sm:$0xff]
        %v902 = vld [vmem:[#allocation8 + $0x200] sm:$0xff]
        %v903 = vld [vmem:[#allocation8 + $0x208] sm:$0xff]
        %v904 = vld [vmem:[#allocation8 + $0x210] sm:$0xff]
        %v905 = vld [vmem:[#allocation8 + $0x218] sm:$0xff]
        %v906 = vld [vmem:[#allocation8 + $0x220] sm:$0xff]
        %v907 = vld [vmem:[#allocation8 + $0x228] sm:$0xff]
        %v908 = vld [vmem:[#allocation8 + $0x230] sm:$0xff]
        %v909 = vld [vmem:[#allocation8 + $0x238] sm:$0xff]
        %v910 = vld [vmem:[#allocation8 + $0x240] sm:$0xff]
        %v911 = vld [vmem:[#allocation8 + $0x248] sm:$0xff]
        %v912 = vld [vmem:[#allocation8 + $0x250] sm:$0xff]
        %v913 = vld [vmem:[#allocation8 + $0x258] sm:$0xff]
        %v914 = vld [vmem:[#allocation8 + $0x260] sm:$0xff]
        %v915 = vld [vmem:[#allocation8 + $0x268] sm:$0xff]
        %v916 = vld [vmem:[#allocation8 + $0x270] sm:$0xff]
        %v917 = vld [vmem:[#allocation8 + $0x278] sm:$0xff]
        %v918 = vld [vmem:[#allocation8 + $0x280] sm:$0xff]
        %v919 = vld [vmem:[#allocation8 + $0x288] sm:$0xff]
        %v920 = vld [vmem:[#allocation8 + $0x290] sm:$0xff]
        %v921 = vld [vmem:[#allocation8 + $0x298] sm:$0xff]
        %v922 = vld [vmem:[#allocation8 + $0x2a0] sm:$0xff]
        %v923 = vld [vmem:[#allocation8 + $0x2a8] sm:$0xff]
        %v924 = vld [vmem:[#allocation8 + $0x2b0] sm:$0xff]
        %v925 = vld [vmem:[#allocation8 + $0x2b8] sm:$0xff]
        %v926 = vld [vmem:[#allocation8 + $0x2c0] sm:$0xff]
        %v927 = vld [vmem:[#allocation8 + $0x2c8] sm:$0xff]
        %v928 = vld [vmem:[#allocation8 + $0x2d0] sm:$0xff]
        %v929 = vld [vmem:[#allocation8 + $0x2d8] sm:$0xff]
        %v930 = vld [vmem:[#allocation8 + $0x2e0] sm:$0xff]
        %v931 = vld [vmem:[#allocation8 + $0x2e8] sm:$0xff]
        %v932 = vld [vmem:[#allocation8 + $0x2f0] sm:$0xff]
        %v933 = vld [vmem:[#allocation8 + $0x2f8] sm:$0xff]
        %v934 = vld [vmem:[#allocation8 + $0x300] sm:$0xff]
        %v935 = vld [vmem:[#allocation8 + $0x308] sm:$0xff]
        %v936 = vld [vmem:[#allocation8 + $0x310] sm:$0xff]
        %v937 = vld [vmem:[#allocation8 + $0x318] sm:$0xff]
        %v938 = vld [vmem:[#allocation8 + $0x320] sm:$0xff]
        %v939 = vld [vmem:[#allocation8 + $0x328] sm:$0xff]
        %v940 = vld [vmem:[#allocation8 + $0x330] sm:$0xff]
        %v941 = vld [vmem:[#allocation8 + $0x338] sm:$0xff]
        %v942 = vld [vmem:[#allocation8 + $0x340] sm:$0xff]
        %v943 = vld [vmem:[#allocation8 + $0x348] sm:$0xff]
        %v944 = vld [vmem:[#allocation8 + $0x350] sm:$0xff]
        %v945 = vld [vmem:[#allocation8 + $0x358] sm:$0xff]
        %v946 = vld [vmem:[#allocation8 + $0x360] sm:$0xff]
        %v947 = vld [vmem:[#allocation8 + $0x368] sm:$0xff]
        %v948 = vld [vmem:[#allocation8 + $0x370] sm:$0xff]
        %v949 = vld [vmem:[#allocation8 + $0x378] sm:$0xff]
        %v950 = vld [vmem:[#allocation8 + $0x380] sm:$0xff]
        %v951 = vld [vmem:[#allocation8 + $0x388] sm:$0xff]
        %v952 = vld [vmem:[#allocation8 + $0x390] sm:$0xff]
        %v953 = vld [vmem:[#allocation8 + $0x398] sm:$0xff]
        %v954 = vld [vmem:[#allocation8 + $0x3a0] sm:$0xff]
        %v955 = vld [vmem:[#allocation8 + $0x3a8] sm:$0xff]
        %v956 = vld [vmem:[#allocation8 + $0x3b0] sm:$0xff]
        %v957 = vld [vmem:[#allocation8 + $0x3b8] sm:$0xff]
        %v958 = vld [vmem:[#allocation8 + $0x3c0] sm:$0xff]
        %v959 = vld [vmem:[#allocation8 + $0x3c8] sm:$0xff]
        %v960 = vld [vmem:[#allocation8 + $0x3d0] sm:$0xff]
        %v961 = vld [vmem:[#allocation8 + $0x3d8] sm:$0xff]
        %v962 = vld [vmem:[#allocation8 + $0x3e0] sm:$0xff]
        %v963 = vld [vmem:[#allocation8 + $0x3e8] sm:$0xff]
        %v964 = vld [vmem:[#allocation8 + $0x3f0] sm:$0xff]
        %v965 = vld [vmem:[#allocation8 + $0x3f8] sm:$0xff]
        %v966 = vld [vmem:[#allocation8 + $0x400] sm:$0xff]
        %v967 = vld [vmem:[#allocation8 + $0x408] sm:$0xff]
        %v968 = vld [vmem:[#allocation8 + $0x410] sm:$0xff]
        %v969 = vld [vmem:[#allocation8 + $0x418] sm:$0xff]
        %v970 = vld [vmem:[#allocation8 + $0x420] sm:$0xff]
        %v971 = vld [vmem:[#allocation8 + $0x428] sm:$0xff]
        %v972 = vld [vmem:[#allocation8 + $0x430] sm:$0xff]
        %v973 = vld [vmem:[#allocation8 + $0x438] sm:$0xff]
        %v974 = vld [vmem:[#allocation8 + $0x440] sm:$0xff]
        %v975 = vld [vmem:[#allocation8 + $0x448] sm:$0xff]
        %v976 = vld [vmem:[#allocation8 + $0x450] sm:$0xff]
        %v977 = vld [vmem:[#allocation8 + $0x458] sm:$0xff]
        %v978 = vld [vmem:[#allocation8 + $0x460] sm:$0xff]
        %v979 = vld [vmem:[#allocation8 + $0x468] sm:$0xff]
        %v980 = vld [vmem:[#allocation8 + $0x470] sm:$0xff]
        %v981 = vld [vmem:[#allocation8 + $0x478] sm:$0xff]
        %v982 = vld [vmem:[#allocation8 + $0x480] sm:$0xff]
        %v983 = vld [vmem:[#allocation8 + $0x488] sm:$0xff]
        %v984 = vld [vmem:[#allocation8 + $0x490] sm:$0xff]
        %v985 = vld [vmem:[#allocation8 + $0x498] sm:$0xff]
        %v986 = vld [vmem:[#allocation8 + $0x4a0] sm:$0xff]
        %v987 = vld [vmem:[#allocation8 + $0x4a8] sm:$0xff]
        %v988 = vld [vmem:[#allocation8 + $0x4b0] sm:$0xff]
        %v989 = vld [vmem:[#allocation8 + $0x4b8] sm:$0xff]
        %v990 = vld [vmem:[#allocation8 + $0x4c0] sm:$0xff]
        %v991 = vld [vmem:[#allocation8 + $0x4c8] sm:$0xff]
        %v992 = vld [vmem:[#allocation8 + $0x4d0] sm:$0xff]
        %v993 = vld [vmem:[#allocation8 + $0x4d8] sm:$0xff]
        %v994 = vld [vmem:[#allocation8 + $0x4e0] sm:$0xff]
        %v995 = vld [vmem:[#allocation8 + $0x4e8] sm:$0xff]
        %v996 = vld [vmem:[#allocation8 + $0x4f0] sm:$0xff]
        %v997 = vld [vmem:[#allocation8 + $0x4f8] sm:$0xff]
        %v998 = vld [vmem:[#allocation8 + $0x500] sm:$0xff]
        %v999 = vld [vmem:[#allocation8 + $0x508] sm:$0xff]
        %v1000 = vld [vmem:[#allocation8 + $0x510] sm:$0xff]
        %v1001 = vld [vmem:[#allocation8 + $0x518] sm:$0xff]
        %v1002 = vld [vmem:[#allocation8 + $0x520] sm:$0xff]
        %v1003 = vld [vmem:[#allocation8 + $0x528] sm:$0xff]
        %v1004 = vld [vmem:[#allocation8 + $0x530] sm:$0xff]
        %v1005 = vld [vmem:[#allocation8 + $0x538] sm:$0xff]
        %v1006 = vld [vmem:[#allocation8 + $0x540] sm:$0xff]
        %v1007 = vld [vmem:[#allocation8 + $0x548] sm:$0xff]
        %v1008 = vld [vmem:[#allocation8 + $0x550] sm:$0xff]
        %v1009 = vld [vmem:[#allocation8 + $0x558] sm:$0xff]
        %v1010 = vld [vmem:[#allocation8 + $0x560] sm:$0xff]
        %v1011 = vld [vmem:[#allocation8 + $0x568] sm:$0xff]
        %v1012 = vld [vmem:[#allocation8 + $0x570] sm:$0xff]
        %v1013 = vld [vmem:[#allocation8 + $0x578] sm:$0xff]
        %v1014 = vld [vmem:[#allocation8 + $0x580] sm:$0xff]
        %v1015 = vld [vmem:[#allocation8 + $0x588] sm:$0xff]
        %v1016 = vld [vmem:[#allocation8 + $0x590] sm:$0xff]
        %v1017 = vld [vmem:[#allocation8 + $0x598] sm:$0xff]
        %v1018 = vld [vmem:[#allocation8 + $0x5a0] sm:$0xff]
        %v1019 = vld [vmem:[#allocation8 + $0x5a8] sm:$0xff]
        %v1020 = vld [vmem:[#allocation8 + $0x5b0] sm:$0xff]
        %v1021 = vld [vmem:[#allocation8 + $0x5b8] sm:$0xff]
        %v1022 = vld [vmem:[#allocation8 + $0x5c0] sm:$0xff]
        %v1023 = vld [vmem:[#allocation8 + $0x5c8] sm:$0xff]
        %v1024 = vld [vmem:[#allocation8 + $0x5d0] sm:$0xff]
        %v1025 = vld [vmem:[#allocation8 + $0x5d8] sm:$0xff]
        %v1026 = vld [vmem:[#allocation8 + $0x5e0] sm:$0xff]
        %v1027 = vld [vmem:[#allocation8 + $0x5e8] sm:$0xff]
        %v1028 = vld [vmem:[#allocation8 + $0x5f0] sm:$0xff]
        %v1029 = vld [vmem:[#allocation8 + $0x5f8] sm:$0xff]
        %v1030 = vld [vmem:[#allocation8 + $0x600] sm:$0xff]
        %v1031 = vld [vmem:[#allocation8 + $0x608] sm:$0xff]
        %v1032 = vld [vmem:[#allocation8 + $0x610] sm:$0xff]
        %v1033 = vld [vmem:[#allocation8 + $0x618] sm:$0xff]
        %v1034 = vld [vmem:[#allocation8 + $0x620] sm:$0xff]
        %v1035 = vld [vmem:[#allocation8 + $0x628] sm:$0xff]
        %v1036 = vld [vmem:[#allocation8 + $0x630] sm:$0xff]
        %v1037 = vld [vmem:[#allocation8 + $0x638] sm:$0xff]
        %v1038 = vld [vmem:[#allocation8 + $0x640] sm:$0xff]
        %v1039 = vld [vmem:[#allocation8 + $0x648] sm:$0xff]
        %v1040 = vld [vmem:[#allocation8 + $0x650] sm:$0xff]
        %v1041 = vld [vmem:[#allocation8 + $0x658] sm:$0xff]
        %v1042 = vld [vmem:[#allocation8 + $0x660] sm:$0xff]
        %v1043 = vld [vmem:[#allocation8 + $0x668] sm:$0xff]
        %v1044 = vld [vmem:[#allocation8 + $0x670] sm:$0xff]
        %v1045 = vld [vmem:[#allocation8 + $0x678] sm:$0xff]
        %v1046 = vld [vmem:[#allocation8 + $0x680] sm:$0xff]
        %v1047 = vld [vmem:[#allocation8 + $0x688] sm:$0xff]
        %v1048 = vld [vmem:[#allocation8 + $0x690] sm:$0xff]
        %v1049 = vld [vmem:[#allocation8 + $0x698] sm:$0xff]
        %v1050 = vld [vmem:[#allocation8 + $0x6a0] sm:$0xff]
        %v1051 = vld [vmem:[#allocation8 + $0x6a8] sm:$0xff]
        %v1052 = vld [vmem:[#allocation8 + $0x6b0] sm:$0xff]
        %v1053 = vld [vmem:[#allocation8 + $0x6b8] sm:$0xff]
        %v1054 = vld [vmem:[#allocation8 + $0x6c0] sm:$0xff]
        %v1055 = vld [vmem:[#allocation8 + $0x6c8] sm:$0xff]
        %v1056 = vld [vmem:[#allocation8 + $0x6d0] sm:$0xff]
        %v1057 = vld [vmem:[#allocation8 + $0x6d8] sm:$0xff]
        %v1058 = vld [vmem:[#allocation8 + $0x6e0] sm:$0xff]
        %v1059 = vld [vmem:[#allocation8 + $0x6e8] sm:$0xff]
        %v1060 = vld [vmem:[#allocation8 + $0x6f0] sm:$0xff]
        %v1061 = vld [vmem:[#allocation8 + $0x6f8] sm:$0xff]
        %v1062 = vld [vmem:[#allocation8 + $0x700] sm:$0xff]
        %v1063 = vld [vmem:[#allocation8 + $0x708] sm:$0xff]
        %v1064 = vld [vmem:[#allocation8 + $0x710] sm:$0xff]
        %v1065 = vld [vmem:[#allocation8 + $0x718] sm:$0xff]
        %v1066 = vld [vmem:[#allocation8 + $0x720] sm:$0xff]
        %v1067 = vld [vmem:[#allocation8 + $0x728] sm:$0xff]
        %v1068 = vld [vmem:[#allocation8 + $0x730] sm:$0xff]
        %v1069 = vld [vmem:[#allocation8 + $0x738] sm:$0xff]
        %v1070 = vld [vmem:[#allocation8 + $0x740] sm:$0xff]
        %v1071 = vld [vmem:[#allocation8 + $0x748] sm:$0xff]
        %v1072 = vld [vmem:[#allocation8 + $0x750] sm:$0xff]
        %v1073 = vld [vmem:[#allocation8 + $0x758] sm:$0xff]
        %v1074 = vld [vmem:[#allocation8 + $0x760] sm:$0xff]
        %v1075 = vld [vmem:[#allocation8 + $0x768] sm:$0xff]
        %v1076 = vld [vmem:[#allocation8 + $0x770] sm:$0xff]
        %v1077 = vld [vmem:[#allocation8 + $0x778] sm:$0xff]
        %v1078 = vld [vmem:[#allocation8 + $0x780] sm:$0xff]
        %v1079 = vld [vmem:[#allocation8 + $0x788] sm:$0xff]
        %v1080 = vld [vmem:[#allocation8 + $0x790] sm:$0xff]
        %v1081 = vld [vmem:[#allocation8 + $0x798] sm:$0xff]
        %v1082 = vld [vmem:[#allocation8 + $0x7a0] sm:$0xff]
        %v1083 = vld [vmem:[#allocation8 + $0x7a8] sm:$0xff]
        %v1084 = vld [vmem:[#allocation8 + $0x7b0] sm:$0xff]
        %v1085 = vld [vmem:[#allocation8 + $0x7b8] sm:$0xff]
        %v1086 = vld [vmem:[#allocation8 + $0x7c0] sm:$0xff]
        %v1087 = vld [vmem:[#allocation8 + $0x7c8] sm:$0xff]
        %v1088 = vld [vmem:[#allocation8 + $0x7d0] sm:$0xff]
        %v1089 = vld [vmem:[#allocation8 + $0x7d8] sm:$0xff]
        %v1090 = vld [vmem:[#allocation8 + $0x7e0] sm:$0xff]
        %v1091 = vld [vmem:[#allocation8 + $0x7e8] sm:$0xff]
        %v1092 = vld [vmem:[#allocation8 + $0x7f0] sm:$0xff]
        %v1093 = vld [vmem:[#allocation8 + $0x7f8] sm:$0xff]
        %v1094 = vld [vmem:[#allocation8 + $0x800] sm:$0xff]
        %v1095 = vld [vmem:[#allocation8 + $0x808] sm:$0xff]
        %v1096 = vld [vmem:[#allocation8 + $0x810] sm:$0xff]
        %v1097 = vld [vmem:[#allocation8 + $0x818] sm:$0xff]
        %v1098 = vld [vmem:[#allocation8 + $0x820] sm:$0xff]
        %v1099 = vld [vmem:[#allocation8 + $0x828] sm:$0xff]
        %v1100 = vld [vmem:[#allocation8 + $0x830] sm:$0xff]
        %v1101 = vld [vmem:[#allocation8 + $0x838] sm:$0xff]
        %v1102 = vld [vmem:[#allocation8 + $0x840] sm:$0xff]
        %v1103 = vld [vmem:[#allocation8 + $0x848] sm:$0xff]
        %v1104 = vld [vmem:[#allocation8 + $0x850] sm:$0xff]
        %v1105 = vld [vmem:[#allocation8 + $0x858] sm:$0xff]
        %v1106 = vld [vmem:[#allocation8 + $0x860] sm:$0xff]
        %v1107 = vld [vmem:[#allocation8 + $0x868] sm:$0xff]
        %v1108 = vld [vmem:[#allocation8 + $0x870] sm:$0xff]
        %v1109 = vld [vmem:[#allocation8 + $0x878] sm:$0xff]
        %v1110 = vld [vmem:[#allocation8 + $0x880] sm:$0xff]
        %v1111 = vld [vmem:[#allocation8 + $0x888] sm:$0xff]
        %v1112 = vld [vmem:[#allocation8 + $0x890] sm:$0xff]
        %v1113 = vld [vmem:[#allocation8 + $0x898] sm:$0xff]
        %v1114 = vld [vmem:[#allocation8 + $0x8a0] sm:$0xff]
        %v1115 = vld [vmem:[#allocation8 + $0x8a8] sm:$0xff]
        %v1116 = vld [vmem:[#allocation8 + $0x8b0] sm:$0xff]
        %v1117 = vld [vmem:[#allocation8 + $0x8b8] sm:$0xff]
        %v1118 = vld [vmem:[#allocation8 + $0x8c0] sm:$0xff]
        %v1119 = vld [vmem:[#allocation8 + $0x8c8] sm:$0xff]
        %v1120 = vld [vmem:[#allocation8 + $0x8d0] sm:$0xff]
        %v1121 = vld [vmem:[#allocation8 + $0x8d8] sm:$0xff]
        %v1122 = vld [vmem:[#allocation8 + $0x8e0] sm:$0xff]
        %v1123 = vld [vmem:[#allocation8 + $0x8e8] sm:$0xff]
        %v1124 = vld [vmem:[#allocation8 + $0x8f0] sm:$0xff]
        %v1125 = vld [vmem:[#allocation8 + $0x8f8] sm:$0xff]
        %v1126 = vld [vmem:[#allocation10] sm:$0xff]
        %v1127 = vld [vmem:[#allocation10 + $0x8] sm:$0xf]
        %v1130 = vlaneseq
        %v1131 = vshrl.u32 %v1130, 7
        %v1132 = vsub.s32 0, %v1131
        %v1133 = vrot.slane %v1126, %v1132
        %v1134 = vlaneseq
        %v1135 = vshrl.u32 %v1134, 7
        %v1136 = vsub.s32 1, %v1135
        %v1137 = vrot.slane %v1126, %v1136
        %v1138 = vlaneseq
        %v1139 = vshrl.u32 %v1138, 7
        %v1140 = vsub.s32 2, %v1139
        %v1141 = vrot.slane %v1126, %v1140
        %v1142 = vlaneseq
        %v1143 = vshrl.u32 %v1142, 7
        %v1144 = vsub.s32 3, %v1143
        %v1145 = vrot.slane %v1126, %v1144
        %v1146 = vlaneseq
        %v1147 = vshrl.u32 %v1146, 7
        %v1148 = vsub.s32 4, %v1147
        %v1149 = vrot.slane %v1126, %v1148
        %v1150 = vlaneseq
        %v1151 = vshrl.u32 %v1150, 7
        %v1152 = vsub.s32 5, %v1151
        %v1153 = vrot.slane %v1126, %v1152
        %v1154 = vlaneseq
        %v1155 = vshrl.u32 %v1154, 7
        %v1156 = vsub.s32 6, %v1155
        %v1157 = vrot.slane %v1126, %v1156
        %v1158 = vlaneseq
        %v1159 = vshrl.u32 %v1158, 7
        %v1160 = vsub.s32 7, %v1159
        %v1161 = vrot.slane %v1126, %v1160
        %v1162 = vlaneseq
        %v1163 = vshrl.u32 %v1162, 7
        %v1164 = vsub.s32 0, %v1163
        %v1165 = vrot.slane %v1127, %v1164
        %v1166 = vlaneseq
        %v1167 = vshrl.u32 %v1166, 7
        %v1168 = vsub.s32 1, %v1167
        %v1169 = vrot.slane %v1127, %v1168
        %v1170 = vlaneseq
        %v1171 = vshrl.u32 %v1170, 7
        %v1172 = vsub.s32 2, %v1171
        %v1173 = vrot.slane %v1127, %v1172
        %v1174 = vlaneseq
        %v1175 = vshrl.u32 %v1174, 7
        %v1176 = vsub.s32 3, %v1175
        %v1177 = vrot.slane %v1127, %v1176
        %v1478 = vunpack.c.l.b16 %v838
        %v1479 = vunpack.c.h.b16 %v838
        %v1480 = vunpack.c.l.b16 %v839
        %v1481 = vunpack.c.h.b16 %v839
        %v1482 = vunpack.c.l.b16 %v840
        %v1483 = vunpack.c.h.b16 %v840
        %v1484 = vunpack.c.l.b16 %v841
        %v1485 = vunpack.c.h.b16 %v841
        %v1486 = vunpack.c.l.b16 %v842
        %v1487 = vunpack.c.h.b16 %v842
        %v1488 = vunpack.c.l.b16 %v843
        %v1489 = vunpack.c.h.b16 %v843
        %v1490 = vunpack.c.l.b16 %v844
        %v1491 = vunpack.c.h.b16 %v844
        %v1492 = vunpack.c.l.b16 %v845
        %v1493 = vunpack.c.h.b16 %v845
        %v1494 = vunpack.c.l.b16 %v846
        %v1495 = vunpack.c.h.b16 %v846
        %v1496 = vunpack.c.l.b16 %v847
        %v1497 = vunpack.c.h.b16 %v847
        %v1498 = vunpack.c.l.b16 %v848
        %v1499 = vunpack.c.h.b16 %v848
        %v1500 = vunpack.c.l.b16 %v849
        %v1501 = vunpack.c.h.b16 %v849
        %v1502 = vunpack.c.l.b16 %v850
        %v1503 = vunpack.c.h.b16 %v850
        %v1504 = vunpack.c.l.b16 %v851
        %v1505 = vunpack.c.h.b16 %v851
        %v1506 = vunpack.c.l.b16 %v852
        %v1507 = vunpack.c.h.b16 %v852
        %v1508 = vunpack.c.l.b16 %v853
        %v1509 = vunpack.c.h.b16 %v853
        %v1510 = vunpack.c.l.b16 %v854
        %v1511 = vunpack.c.h.b16 %v854
        %v1512 = vunpack.c.l.b16 %v855
        %v1513 = vunpack.c.h.b16 %v855
        %v1514 = vunpack.c.l.b16 %v856
        %v1515 = vunpack.c.h.b16 %v856
        %v1516 = vunpack.c.l.b16 %v857
        %v1517 = vunpack.c.h.b16 %v857
        %v1518 = vunpack.c.l.b16 %v858
        %v1519 = vunpack.c.h.b16 %v858
        %v1520 = vunpack.c.l.b16 %v859
        %v1521 = vunpack.c.h.b16 %v859
        %v1522 = vunpack.c.l.b16 %v860
        %v1523 = vunpack.c.h.b16 %v860
        %v1524 = vunpack.c.l.b16 %v861
        %v1525 = vunpack.c.h.b16 %v861
        %v1526 = vunpack.c.l.b16 %v862
        %v1527 = vunpack.c.h.b16 %v862
        %v1528 = vunpack.c.l.b16 %v863
        %v1529 = vunpack.c.h.b16 %v863
        %v1530 = vunpack.c.l.b16 %v864
        %v1531 = vunpack.c.h.b16 %v864
        %v1532 = vunpack.c.l.b16 %v865
        %v1533 = vunpack.c.h.b16 %v865
        %v1534 = vunpack.c.l.b16 %v866
        %v1535 = vunpack.c.h.b16 %v866
        %v1536 = vunpack.c.l.b16 %v867
        %v1537 = vunpack.c.h.b16 %v867
        %v1538 = vunpack.c.l.b16 %v868
        %v1539 = vunpack.c.h.b16 %v868
        %v1540 = vunpack.c.l.b16 %v869
        %v1541 = vunpack.c.h.b16 %v869
        %v1542 = vunpack.c.l.b16 %v870
        %v1543 = vunpack.c.h.b16 %v870
        %v1544 = vunpack.c.l.b16 %v871
        %v1545 = vunpack.c.h.b16 %v871
        %v1546 = vunpack.c.l.b16 %v872
        %v1547 = vunpack.c.h.b16 %v872
        %v1548 = vunpack.c.l.b16 %v873
        %v1549 = vunpack.c.h.b16 %v873
        %v1550 = vunpack.c.l.b16 %v874
        %v1551 = vunpack.c.h.b16 %v874
        %v1552 = vunpack.c.l.b16 %v875
        %v1553 = vunpack.c.h.b16 %v875
        %v1554 = vunpack.c.l.b16 %v876
        %v1555 = vunpack.c.h.b16 %v876
        %v1556 = vunpack.c.l.b16 %v877
        %v1557 = vunpack.c.h.b16 %v877
        %v1558 = vunpack.c.l.b16 %v878
        %v1559 = vunpack.c.h.b16 %v878
        %v1560 = vunpack.c.l.b16 %v879
        %v1561 = vunpack.c.h.b16 %v879
        %v1562 = vunpack.c.l.b16 %v880
        %v1563 = vunpack.c.h.b16 %v880
        %v1564 = vunpack.c.l.b16 %v881
        %v1565 = vunpack.c.h.b16 %v881
        %v1566 = vunpack.c.l.b16 %v882
        %v1567 = vunpack.c.h.b16 %v882
        %v1568 = vunpack.c.l.b16 %v883
        %v1569 = vunpack.c.h.b16 %v883
        %v1570 = vunpack.c.l.b16 %v884
        %v1571 = vunpack.c.h.b16 %v884
        %v1572 = vunpack.c.l.b16 %v885
        %v1573 = vunpack.c.h.b16 %v885
        %v1574 = vunpack.c.l.b16 %v886
        %v1575 = vunpack.c.h.b16 %v886
        %v1576 = vunpack.c.l.b16 %v887
        %v1577 = vunpack.c.h.b16 %v887
        %v1578 = vunpack.c.l.b16 %v888
        %v1579 = vunpack.c.h.b16 %v888
        %v1580 = vunpack.c.l.b16 %v889
        %v1581 = vunpack.c.h.b16 %v889
        %v1582 = vunpack.c.l.b16 %v890
        %v1583 = vunpack.c.h.b16 %v890
        %v1584 = vunpack.c.l.b16 %v891
        %v1585 = vunpack.c.h.b16 %v891
        %v1586 = vunpack.c.l.b16 %v892
        %v1587 = vunpack.c.h.b16 %v892
        %v1588 = vunpack.c.l.b16 %v893
        %v1589 = vunpack.c.h.b16 %v893
        %v1590 = vunpack.c.l.b16 %v894
        %v1591 = vunpack.c.h.b16 %v894
        %v1592 = vunpack.c.l.b16 %v895
        %v1593 = vunpack.c.h.b16 %v895
        %v1594 = vunpack.c.l.b16 %v896
        %v1595 = vunpack.c.h.b16 %v896
        %v1596 = vunpack.c.l.b16 %v897
        %v1597 = vunpack.c.h.b16 %v897
        %v1598 = vunpack.c.l.b16 %v898
        %v1599 = vunpack.c.h.b16 %v898
        %v1600 = vunpack.c.l.b16 %v899
        %v1601 = vunpack.c.h.b16 %v899
        %v1602 = vunpack.c.l.b16 %v900
        %v1603 = vunpack.c.h.b16 %v900
        %v1604 = vunpack.c.l.b16 %v901
        %v1605 = vunpack.c.h.b16 %v901
        %v1606 = vunpack.c.l.b16 %v902
        %v1607 = vunpack.c.h.b16 %v902
        %v1608 = vunpack.c.l.b16 %v903
        %v1609 = vunpack.c.h.b16 %v903
        %v1610 = vunpack.c.l.b16 %v904
        %v1611 = vunpack.c.h.b16 %v904
        %v1612 = vunpack.c.l.b16 %v905
        %v1613 = vunpack.c.h.b16 %v905
        %v1614 = vunpack.c.l.b16 %v906
        %v1615 = vunpack.c.h.b16 %v906
        %v1616 = vunpack.c.l.b16 %v907
        %v1617 = vunpack.c.h.b16 %v907
        %v1618 = vunpack.c.l.b16 %v908
        %v1619 = vunpack.c.h.b16 %v908
        %v1620 = vunpack.c.l.b16 %v909
        %v1621 = vunpack.c.h.b16 %v909
        %v1622 = vunpack.c.l.b16 %v910
        %v1623 = vunpack.c.h.b16 %v910
        %v1624 = vunpack.c.l.b16 %v911
        %v1625 = vunpack.c.h.b16 %v911
        %v1626 = vunpack.c.l.b16 %v912
        %v1627 = vunpack.c.h.b16 %v912
        %v1628 = vunpack.c.l.b16 %v913
        %v1629 = vunpack.c.h.b16 %v913
        %v1630 = vunpack.c.l.b16 %v914
        %v1631 = vunpack.c.h.b16 %v914
        %v1632 = vunpack.c.l.b16 %v915
        %v1633 = vunpack.c.h.b16 %v915
        %v1634 = vunpack.c.l.b16 %v916
        %v1635 = vunpack.c.h.b16 %v916
        %v1636 = vunpack.c.l.b16 %v917
        %v1637 = vunpack.c.h.b16 %v917
        %v1638 = vunpack.c.l.b16 %v918
        %v1639 = vunpack.c.h.b16 %v918
        %v1640 = vunpack.c.l.b16 %v919
        %v1641 = vunpack.c.h.b16 %v919
        %v1642 = vunpack.c.l.b16 %v920
        %v1643 = vunpack.c.h.b16 %v920
        %v1644 = vunpack.c.l.b16 %v921
        %v1645 = vunpack.c.h.b16 %v921
        %v1646 = vunpack.c.l.b16 %v922
        %v1647 = vunpack.c.h.b16 %v922
        %v1648 = vunpack.c.l.b16 %v923
        %v1649 = vunpack.c.h.b16 %v923
        %v1650 = vunpack.c.l.b16 %v924
        %v1651 = vunpack.c.h.b16 %v924
        %v1652 = vunpack.c.l.b16 %v925
        %v1653 = vunpack.c.h.b16 %v925
        %v1654 = vunpack.c.l.b16 %v926
        %v1655 = vunpack.c.h.b16 %v926
        %v1656 = vunpack.c.l.b16 %v927
        %v1657 = vunpack.c.h.b16 %v927
        %v1658 = vunpack.c.l.b16 %v928
        %v1659 = vunpack.c.h.b16 %v928
        %v1660 = vunpack.c.l.b16 %v929
        %v1661 = vunpack.c.h.b16 %v929
        %v1662 = vunpack.c.l.b16 %v930
        %v1663 = vunpack.c.h.b16 %v930
        %v1664 = vunpack.c.l.b16 %v931
        %v1665 = vunpack.c.h.b16 %v931
        %v1666 = vunpack.c.l.b16 %v932
        %v1667 = vunpack.c.h.b16 %v932
        %v1668 = vunpack.c.l.b16 %v933
        %v1669 = vunpack.c.h.b16 %v933
        %v1670 = vunpack.c.l.b16 %v934
        %v1671 = vunpack.c.h.b16 %v934
        %v1672 = vunpack.c.l.b16 %v935
        %v1673 = vunpack.c.h.b16 %v935
        %v1674 = vunpack.c.l.b16 %v936
        %v1675 = vunpack.c.h.b16 %v936
        %v1676 = vunpack.c.l.b16 %v937
        %v1677 = vunpack.c.h.b16 %v937
        %v1678 = vunpack.c.l.b16 %v938
        %v1679 = vunpack.c.h.b16 %v938
        %v1680 = vunpack.c.l.b16 %v939
        %v1681 = vunpack.c.h.b16 %v939
        %v1682 = vunpack.c.l.b16 %v940
        %v1683 = vunpack.c.h.b16 %v940
        %v1684 = vunpack.c.l.b16 %v941
        %v1685 = vunpack.c.h.b16 %v941
        %v1686 = vunpack.c.l.b16 %v942
        %v1687 = vunpack.c.h.b16 %v942
        %v1688 = vunpack.c.l.b16 %v943
        %v1689 = vunpack.c.h.b16 %v943
        %v1690 = vunpack.c.l.b16 %v944
        %v1691 = vunpack.c.h.b16 %v944
        %v1692 = vunpack.c.l.b16 %v945
        %v1693 = vunpack.c.h.b16 %v945
        %v1694 = vunpack.c.l.b16 %v946
        %v1695 = vunpack.c.h.b16 %v946
        %v1696 = vunpack.c.l.b16 %v947
        %v1697 = vunpack.c.h.b16 %v947
        %v1698 = vunpack.c.l.b16 %v948
        %v1699 = vunpack.c.h.b16 %v948
        %v1700 = vunpack.c.l.b16 %v949
        %v1701 = vunpack.c.h.b16 %v949
        %v1702 = vunpack.c.l.b16 %v950
        %v1703 = vunpack.c.h.b16 %v950
        %v1704 = vunpack.c.l.b16 %v951
        %v1705 = vunpack.c.h.b16 %v951
        %v1706 = vunpack.c.l.b16 %v952
        %v1707 = vunpack.c.h.b16 %v952
        %v1708 = vunpack.c.l.b16 %v953
        %v1709 = vunpack.c.h.b16 %v953
        %v1710 = vunpack.c.l.b16 %v954
        %v1711 = vunpack.c.h.b16 %v954
        %v1712 = vunpack.c.l.b16 %v955
        %v1713 = vunpack.c.h.b16 %v955
        %v1714 = vunpack.c.l.b16 %v956
        %v1715 = vunpack.c.h.b16 %v956
        %v1716 = vunpack.c.l.b16 %v957
        %v1717 = vunpack.c.h.b16 %v957
        %v1718 = vunpack.c.l.b16 %v958
        %v1719 = vunpack.c.h.b16 %v958
        %v1720 = vunpack.c.l.b16 %v959
        %v1721 = vunpack.c.h.b16 %v959
        %v1722 = vunpack.c.l.b16 %v960
        %v1723 = vunpack.c.h.b16 %v960
        %v1724 = vunpack.c.l.b16 %v961
        %v1725 = vunpack.c.h.b16 %v961
        %v1726 = vunpack.c.l.b16 %v962
        %v1727 = vunpack.c.h.b16 %v962
        %v1728 = vunpack.c.l.b16 %v963
        %v1729 = vunpack.c.h.b16 %v963
        %v1730 = vunpack.c.l.b16 %v964
        %v1731 = vunpack.c.h.b16 %v964
        %v1732 = vunpack.c.l.b16 %v965
        %v1733 = vunpack.c.h.b16 %v965
        %v1734 = vunpack.c.l.b16 %v966
        %v1735 = vunpack.c.h.b16 %v966
        %v1736 = vunpack.c.l.b16 %v967
        %v1737 = vunpack.c.h.b16 %v967
        %v1738 = vunpack.c.l.b16 %v968
        %v1739 = vunpack.c.h.b16 %v968
        %v1740 = vunpack.c.l.b16 %v969
        %v1741 = vunpack.c.h.b16 %v969
        %v1742 = vunpack.c.l.b16 %v970
        %v1743 = vunpack.c.h.b16 %v970
        %v1744 = vunpack.c.l.b16 %v971
        %v1745 = vunpack.c.h.b16 %v971
        %v1746 = vunpack.c.l.b16 %v972
        %v1747 = vunpack.c.h.b16 %v972
        %v1748 = vunpack.c.l.b16 %v973
        %v1749 = vunpack.c.h.b16 %v973
        %v1750 = vunpack.c.l.b16 %v974
        %v1751 = vunpack.c.h.b16 %v974
        %v1752 = vunpack.c.l.b16 %v975
        %v1753 = vunpack.c.h.b16 %v975
        %v1754 = vunpack.c.l.b16 %v976
        %v1755 = vunpack.c.h.b16 %v976
        %v1756 = vunpack.c.l.b16 %v977
        %v1757 = vunpack.c.h.b16 %v977
        %v1758 = vunpack.c.l.b16 %v978
        %v1759 = vunpack.c.h.b16 %v978
        %v1760 = vunpack.c.l.b16 %v979
        %v1761 = vunpack.c.h.b16 %v979
        %v1762 = vunpack.c.l.b16 %v980
        %v1763 = vunpack.c.h.b16 %v980
        %v1764 = vunpack.c.l.b16 %v981
        %v1765 = vunpack.c.h.b16 %v981
        %v1766 = vunpack.c.l.b16 %v982
        %v1767 = vunpack.c.h.b16 %v982
        %v1768 = vunpack.c.l.b16 %v983
        %v1769 = vunpack.c.h.b16 %v983
        %v1770 = vunpack.c.l.b16 %v984
        %v1771 = vunpack.c.h.b16 %v984
        %v1772 = vunpack.c.l.b16 %v985
        %v1773 = vunpack.c.h.b16 %v985
        %v1774 = vunpack.c.l.b16 %v986
        %v1775 = vunpack.c.h.b16 %v986
        %v1776 = vunpack.c.l.b16 %v987
        %v1777 = vunpack.c.h.b16 %v987
        %v1778 = vunpack.c.l.b16 %v988
        %v1779 = vunpack.c.h.b16 %v988
        %v1780 = vunpack.c.l.b16 %v989
        %v1781 = vunpack.c.h.b16 %v989
        %v1782 = vunpack.c.l.b16 %v990
        %v1783 = vunpack.c.h.b16 %v990
        %v1784 = vunpack.c.l.b16 %v991
        %v1785 = vunpack.c.h.b16 %v991
        %v1786 = vunpack.c.l.b16 %v992
        %v1787 = vunpack.c.h.b16 %v992
        %v1788 = vunpack.c.l.b16 %v993
        %v1789 = vunpack.c.h.b16 %v993
        %v1790 = vunpack.c.l.b16 %v994
        %v1791 = vunpack.c.h.b16 %v994
        %v1792 = vunpack.c.l.b16 %v995
        %v1793 = vunpack.c.h.b16 %v995
        %v1794 = vunpack.c.l.b16 %v996
        %v1795 = vunpack.c.h.b16 %v996
        %v1796 = vunpack.c.l.b16 %v997
        %v1797 = vunpack.c.h.b16 %v997
        %v1798 = vunpack.c.l.b16 %v998
        %v1799 = vunpack.c.h.b16 %v998
        %v1800 = vunpack.c.l.b16 %v999
        %v1801 = vunpack.c.h.b16 %v999
        %v1802 = vunpack.c.l.b16 %v1000
        %v1803 = vunpack.c.h.b16 %v1000
        %v1804 = vunpack.c.l.b16 %v1001
        %v1805 = vunpack.c.h.b16 %v1001
        %v1806 = vunpack.c.l.b16 %v1002
        %v1807 = vunpack.c.h.b16 %v1002
        %v1808 = vunpack.c.l.b16 %v1003
        %v1809 = vunpack.c.h.b16 %v1003
        %v1810 = vunpack.c.l.b16 %v1004
        %v1811 = vunpack.c.h.b16 %v1004
        %v1812 = vunpack.c.l.b16 %v1005
        %v1813 = vunpack.c.h.b16 %v1005
        %v1814 = vunpack.c.l.b16 %v1006
        %v1815 = vunpack.c.h.b16 %v1006
        %v1816 = vunpack.c.l.b16 %v1007
        %v1817 = vunpack.c.h.b16 %v1007
        %v1818 = vunpack.c.l.b16 %v1008
        %v1819 = vunpack.c.h.b16 %v1008
        %v1820 = vunpack.c.l.b16 %v1009
        %v1821 = vunpack.c.h.b16 %v1009
        %v1822 = vunpack.c.l.b16 %v1010
        %v1823 = vunpack.c.h.b16 %v1010
        %v1824 = vunpack.c.l.b16 %v1011
        %v1825 = vunpack.c.h.b16 %v1011
        %v1826 = vunpack.c.l.b16 %v1012
        %v1827 = vunpack.c.h.b16 %v1012
        %v1828 = vunpack.c.l.b16 %v1013
        %v1829 = vunpack.c.h.b16 %v1013
        %v1830 = vunpack.c.l.b16 %v1014
        %v1831 = vunpack.c.h.b16 %v1014
        %v1832 = vunpack.c.l.b16 %v1015
        %v1833 = vunpack.c.h.b16 %v1015
        %v1834 = vunpack.c.l.b16 %v1016
        %v1835 = vunpack.c.h.b16 %v1016
        %v1836 = vunpack.c.l.b16 %v1017
        %v1837 = vunpack.c.h.b16 %v1017
        %v1838 = vunpack.c.l.b16 %v1018
        %v1839 = vunpack.c.h.b16 %v1018
        %v1840 = vunpack.c.l.b16 %v1019
        %v1841 = vunpack.c.h.b16 %v1019
        %v1842 = vunpack.c.l.b16 %v1020
        %v1843 = vunpack.c.h.b16 %v1020
        %v1844 = vunpack.c.l.b16 %v1021
        %v1845 = vunpack.c.h.b16 %v1021
        %v1846 = vunpack.c.l.b16 %v1022
        %v1847 = vunpack.c.h.b16 %v1022
        %v1848 = vunpack.c.l.b16 %v1023
        %v1849 = vunpack.c.h.b16 %v1023
        %v1850 = vunpack.c.l.b16 %v1024
        %v1851 = vunpack.c.h.b16 %v1024
        %v1852 = vunpack.c.l.b16 %v1025
        %v1853 = vunpack.c.h.b16 %v1025
        %v1854 = vunpack.c.l.b16 %v1026
        %v1855 = vunpack.c.h.b16 %v1026
        %v1856 = vunpack.c.l.b16 %v1027
        %v1857 = vunpack.c.h.b16 %v1027
        %v1858 = vunpack.c.l.b16 %v1028
        %v1859 = vunpack.c.h.b16 %v1028
        %v1860 = vunpack.c.l.b16 %v1029
        %v1861 = vunpack.c.h.b16 %v1029
        %v1862 = vunpack.c.l.b16 %v1030
        %v1863 = vunpack.c.h.b16 %v1030
        %v1864 = vunpack.c.l.b16 %v1031
        %v1865 = vunpack.c.h.b16 %v1031
        %v1866 = vunpack.c.l.b16 %v1032
        %v1867 = vunpack.c.h.b16 %v1032
        %v1868 = vunpack.c.l.b16 %v1033
        %v1869 = vunpack.c.h.b16 %v1033
        %v1870 = vunpack.c.l.b16 %v1034
        %v1871 = vunpack.c.h.b16 %v1034
        %v1872 = vunpack.c.l.b16 %v1035
        %v1873 = vunpack.c.h.b16 %v1035
        %v1874 = vunpack.c.l.b16 %v1036
        %v1875 = vunpack.c.h.b16 %v1036
        %v1876 = vunpack.c.l.b16 %v1037
        %v1877 = vunpack.c.h.b16 %v1037
        %v1878 = vunpack.c.l.b16 %v1038
        %v1879 = vunpack.c.h.b16 %v1038
        %v1880 = vunpack.c.l.b16 %v1039
        %v1881 = vunpack.c.h.b16 %v1039
        %v1882 = vunpack.c.l.b16 %v1040
        %v1883 = vunpack.c.h.b16 %v1040
        %v1884 = vunpack.c.l.b16 %v1041
        %v1885 = vunpack.c.h.b16 %v1041
        %v1886 = vunpack.c.l.b16 %v1042
        %v1887 = vunpack.c.h.b16 %v1042
        %v1888 = vunpack.c.l.b16 %v1043
        %v1889 = vunpack.c.h.b16 %v1043
        %v1890 = vunpack.c.l.b16 %v1044
        %v1891 = vunpack.c.h.b16 %v1044
        %v1892 = vunpack.c.l.b16 %v1045
        %v1893 = vunpack.c.h.b16 %v1045
        %v1894 = vunpack.c.l.b16 %v1046
        %v1895 = vunpack.c.h.b16 %v1046
        %v1896 = vunpack.c.l.b16 %v1047
        %v1897 = vunpack.c.h.b16 %v1047
        %v1898 = vunpack.c.l.b16 %v1048
        %v1899 = vunpack.c.h.b16 %v1048
        %v1900 = vunpack.c.l.b16 %v1049
        %v1901 = vunpack.c.h.b16 %v1049
        %v1902 = vunpack.c.l.b16 %v1050
        %v1903 = vunpack.c.h.b16 %v1050
        %v1904 = vunpack.c.l.b16 %v1051
        %v1905 = vunpack.c.h.b16 %v1051
        %v1906 = vunpack.c.l.b16 %v1052
        %v1907 = vunpack.c.h.b16 %v1052
        %v1908 = vunpack.c.l.b16 %v1053
        %v1909 = vunpack.c.h.b16 %v1053
        %v1910 = vunpack.c.l.b16 %v1054
        %v1911 = vunpack.c.h.b16 %v1054
        %v1912 = vunpack.c.l.b16 %v1055
        %v1913 = vunpack.c.h.b16 %v1055
        %v1914 = vunpack.c.l.b16 %v1056
        %v1915 = vunpack.c.h.b16 %v1056
        %v1916 = vunpack.c.l.b16 %v1057
        %v1917 = vunpack.c.h.b16 %v1057
        %v1918 = vunpack.c.l.b16 %v1058
        %v1919 = vunpack.c.h.b16 %v1058
        %v1920 = vunpack.c.l.b16 %v1059
        %v1921 = vunpack.c.h.b16 %v1059
        %v1922 = vunpack.c.l.b16 %v1060
        %v1923 = vunpack.c.h.b16 %v1060
        %v1924 = vunpack.c.l.b16 %v1061
        %v1925 = vunpack.c.h.b16 %v1061
        %v1926 = vunpack.c.l.b16 %v1062
        %v1927 = vunpack.c.h.b16 %v1062
        %v1928 = vunpack.c.l.b16 %v1063
        %v1929 = vunpack.c.h.b16 %v1063
        %v1930 = vunpack.c.l.b16 %v1064
        %v1931 = vunpack.c.h.b16 %v1064
        %v1932 = vunpack.c.l.b16 %v1065
        %v1933 = vunpack.c.h.b16 %v1065
        %v1934 = vunpack.c.l.b16 %v1066
        %v1935 = vunpack.c.h.b16 %v1066
        %v1936 = vunpack.c.l.b16 %v1067
        %v1937 = vunpack.c.h.b16 %v1067
        %v1938 = vunpack.c.l.b16 %v1068
        %v1939 = vunpack.c.h.b16 %v1068
        %v1940 = vunpack.c.l.b16 %v1069
        %v1941 = vunpack.c.h.b16 %v1069
        %v1942 = vunpack.c.l.b16 %v1070
        %v1943 = vunpack.c.h.b16 %v1070
        %v1944 = vunpack.c.l.b16 %v1071
        %v1945 = vunpack.c.h.b16 %v1071
        %v1946 = vunpack.c.l.b16 %v1072
        %v1947 = vunpack.c.h.b16 %v1072
        %v1948 = vunpack.c.l.b16 %v1073
        %v1949 = vunpack.c.h.b16 %v1073
        %v1950 = vunpack.c.l.b16 %v1074
        %v1951 = vunpack.c.h.b16 %v1074
        %v1952 = vunpack.c.l.b16 %v1075
        %v1953 = vunpack.c.h.b16 %v1075
        %v1954 = vunpack.c.l.b16 %v1076
        %v1955 = vunpack.c.h.b16 %v1076
        %v1956 = vunpack.c.l.b16 %v1077
        %v1957 = vunpack.c.h.b16 %v1077
        %v1958 = vunpack.c.l.b16 %v1078
        %v1959 = vunpack.c.h.b16 %v1078
        %v1960 = vunpack.c.l.b16 %v1079
        %v1961 = vunpack.c.h.b16 %v1079
        %v1962 = vunpack.c.l.b16 %v1080
        %v1963 = vunpack.c.h.b16 %v1080
        %v1964 = vunpack.c.l.b16 %v1081
        %v1965 = vunpack.c.h.b16 %v1081
        %v1966 = vunpack.c.l.b16 %v1082
        %v1967 = vunpack.c.h.b16 %v1082
        %v1968 = vunpack.c.l.b16 %v1083
        %v1969 = vunpack.c.h.b16 %v1083
        %v1970 = vunpack.c.l.b16 %v1084
        %v1971 = vunpack.c.h.b16 %v1084
        %v1972 = vunpack.c.l.b16 %v1085
        %v1973 = vunpack.c.h.b16 %v1085
        %v1974 = vunpack.c.l.b16 %v1086
        %v1975 = vunpack.c.h.b16 %v1086
        %v1976 = vunpack.c.l.b16 %v1087
        %v1977 = vunpack.c.h.b16 %v1087
        %v1978 = vunpack.c.l.b16 %v1088
        %v1979 = vunpack.c.h.b16 %v1088
        %v1980 = vunpack.c.l.b16 %v1089
        %v1981 = vunpack.c.h.b16 %v1089
        %v1982 = vunpack.c.l.b16 %v1090
        %v1983 = vunpack.c.h.b16 %v1090
        %v1984 = vunpack.c.l.b16 %v1091
        %v1985 = vunpack.c.h.b16 %v1091
        %v1986 = vunpack.c.l.b16 %v1092
        %v1987 = vunpack.c.h.b16 %v1092
        %v1988 = vunpack.c.l.b16 %v1093
        %v1989 = vunpack.c.h.b16 %v1093
        %v1990 = vunpack.c.l.b16 %v1094
        %v1991 = vunpack.c.h.b16 %v1094
        %v1992 = vunpack.c.l.b16 %v1095
        %v1993 = vunpack.c.h.b16 %v1095
        %v1994 = vunpack.c.l.b16 %v1096
        %v1995 = vunpack.c.h.b16 %v1096
        %v1996 = vunpack.c.l.b16 %v1097
        %v1997 = vunpack.c.h.b16 %v1097
        %v1998 = vunpack.c.l.b16 %v1098
        %v1999 = vunpack.c.h.b16 %v1098
        %v2000 = vunpack.c.l.b16 %v1099
        %v2001 = vunpack.c.h.b16 %v1099
        %v2002 = vunpack.c.l.b16 %v1100
        %v2003 = vunpack.c.h.b16 %v1100
        %v2004 = vunpack.c.l.b16 %v1101
        %v2005 = vunpack.c.h.b16 %v1101
        %v2006 = vunpack.c.l.b16 %v1102
        %v2007 = vunpack.c.h.b16 %v1102
        %v2008 = vunpack.c.l.b16 %v1103
        %v2009 = vunpack.c.h.b16 %v1103
        %v2010 = vunpack.c.l.b16 %v1104
        %v2011 = vunpack.c.h.b16 %v1104
        %v2012 = vunpack.c.l.b16 %v1105
        %v2013 = vunpack.c.h.b16 %v1105
        %v2014 = vunpack.c.l.b16 %v1106
        %v2015 = vunpack.c.h.b16 %v1106
        %v2016 = vunpack.c.l.b16 %v1107
        %v2017 = vunpack.c.h.b16 %v1107
        %v2018 = vunpack.c.l.b16 %v1108
        %v2019 = vunpack.c.h.b16 %v1108
        %v2020 = vunpack.c.l.b16 %v1109
        %v2021 = vunpack.c.h.b16 %v1109
        %v2022 = vunpack.c.l.b16 %v1110
        %v2023 = vunpack.c.h.b16 %v1110
        %v2024 = vunpack.c.l.b16 %v1111
        %v2025 = vunpack.c.h.b16 %v1111
        %v2026 = vunpack.c.l.b16 %v1112
        %v2027 = vunpack.c.h.b16 %v1112
        %v2028 = vunpack.c.l.b16 %v1113
        %v2029 = vunpack.c.h.b16 %v1113
        %v2030 = vunpack.c.l.b16 %v1114
        %v2031 = vunpack.c.h.b16 %v1114
        %v2032 = vunpack.c.l.b16 %v1115
        %v2033 = vunpack.c.h.b16 %v1115
        %v2034 = vunpack.c.l.b16 %v1116
        %v2035 = vunpack.c.h.b16 %v1116
        %v2036 = vunpack.c.l.b16 %v1117
        %v2037 = vunpack.c.h.b16 %v1117
        %v2038 = vunpack.c.l.b16 %v1118
        %v2039 = vunpack.c.h.b16 %v1118
        %v2040 = vunpack.c.l.b16 %v1119
        %v2041 = vunpack.c.h.b16 %v1119
        %v2042 = vunpack.c.l.b16 %v1120
        %v2043 = vunpack.c.h.b16 %v1120
        %v2044 = vunpack.c.l.b16 %v1121
        %v2045 = vunpack.c.h.b16 %v1121
        %v2046 = vunpack.c.l.b16 %v1122
        %v2047 = vunpack.c.h.b16 %v1122
        %v2048 = vunpack.c.l.b16 %v1123
        %v2049 = vunpack.c.h.b16 %v1123
        %v2050 = vunpack.c.l.b16 %v1124
        %v2051 = vunpack.c.h.b16 %v1124
        %v2052 = vunpack.c.l.b16 %v1125
        %v2053 = vunpack.c.h.b16 %v1125
        %v2054 = vpack.c.b16 %v1490, %v1478
        %v2055 = vpack.c.b16 %v1491, %v1479
        %v2056 = vpack.c.b16 %v1492, %v1480
        %v2057 = vpack.c.b16 %v1493, %v1481
        %v2058 = vpack.c.b16 %v1494, %v1482
        %v2059 = vpack.c.b16 %v1495, %v1483
        %v2060 = vpack.c.b16 %v1496, %v1484
        %v2061 = vpack.c.b16 %v1497, %v1485
        %v2062 = vpack.c.b16 %v1498, %v1486
        %v2063 = vpack.c.b16 %v1499, %v1487
        %v2064 = vpack.c.b16 %v1500, %v1488
        %v2065 = vpack.c.b16 %v1501, %v1489
        %v2066 = vpack.c.b16 %v1514, %v1502
        %v2067 = vpack.c.b16 %v1515, %v1503
        %v2068 = vpack.c.b16 %v1516, %v1504
        %v2069 = vpack.c.b16 %v1517, %v1505
        %v2070 = vpack.c.b16 %v1518, %v1506
        %v2071 = vpack.c.b16 %v1519, %v1507
        %v2072 = vpack.c.b16 %v1520, %v1508
        %v2073 = vpack.c.b16 %v1521, %v1509
        %v2074 = vpack.c.b16 %v1522, %v1510
        %v2075 = vpack.c.b16 %v1523, %v1511
        %v2076 = vpack.c.b16 %v1524, %v1512
        %v2077 = vpack.c.b16 %v1525, %v1513
        %v2078 = vpack.c.b16 %v1538, %v1526
        %v2079 = vpack.c.b16 %v1539, %v1527
        %v2080 = vpack.c.b16 %v1540, %v1528
        %v2081 = vpack.c.b16 %v1541, %v1529
        %v2082 = vpack.c.b16 %v1542, %v1530
        %v2083 = vpack.c.b16 %v1543, %v1531
        %v2084 = vpack.c.b16 %v1544, %v1532
        %v2085 = vpack.c.b16 %v1545, %v1533
        %v2086 = vpack.c.b16 %v1546, %v1534
        %v2087 = vpack.c.b16 %v1547, %v1535
        %v2088 = vpack.c.b16 %v1548, %v1536
        %v2089 = vpack.c.b16 %v1549, %v1537
        %v2090 = vpack.c.b16 %v1562, %v1550
        %v2091 = vpack.c.b16 %v1563, %v1551
        %v2092 = vpack.c.b16 %v1564, %v1552
        %v2093 = vpack.c.b16 %v1565, %v1553
        %v2094 = vpack.c.b16 %v1566, %v1554
        %v2095 = vpack.c.b16 %v1567, %v1555
        %v2096 = vpack.c.b16 %v1568, %v1556
        %v2097 = vpack.c.b16 %v1569, %v1557
        %v2098 = vpack.c.b16 %v1570, %v1558
        %v2099 = vpack.c.b16 %v1571, %v1559
        %v2100 = vpack.c.b16 %v1572, %v1560
        %v2101 = vpack.c.b16 %v1573, %v1561
        %v2102 = vpack.c.b16 %v1586, %v1574
        %v2103 = vpack.c.b16 %v1587, %v1575
        %v2104 = vpack.c.b16 %v1588, %v1576
        %v2105 = vpack.c.b16 %v1589, %v1577
        %v2106 = vpack.c.b16 %v1590, %v1578
        %v2107 = vpack.c.b16 %v1591, %v1579
        %v2108 = vpack.c.b16 %v1592, %v1580
        %v2109 = vpack.c.b16 %v1593, %v1581
        %v2110 = vpack.c.b16 %v1594, %v1582
        %v2111 = vpack.c.b16 %v1595, %v1583
        %v2112 = vpack.c.b16 %v1596, %v1584
        %v2113 = vpack.c.b16 %v1597, %v1585
        %v2114 = vpack.c.b16 %v1610, %v1598
        %v2115 = vpack.c.b16 %v1611, %v1599
        %v2116 = vpack.c.b16 %v1612, %v1600
        %v2117 = vpack.c.b16 %v1613, %v1601
        %v2118 = vpack.c.b16 %v1614, %v1602
        %v2119 = vpack.c.b16 %v1615, %v1603
        %v2120 = vpack.c.b16 %v1616, %v1604
        %v2121 = vpack.c.b16 %v1617, %v1605
        %v2122 = vpack.c.b16 %v1618, %v1606
        %v2123 = vpack.c.b16 %v1619, %v1607
        %v2124 = vpack.c.b16 %v1620, %v1608
        %v2125 = vpack.c.b16 %v1621, %v1609
        %v2126 = vpack.c.b16 %v1634, %v1622
        %v2127 = vpack.c.b16 %v1635, %v1623
        %v2128 = vpack.c.b16 %v1636, %v1624
        %v2129 = vpack.c.b16 %v1637, %v1625
        %v2130 = vpack.c.b16 %v1638, %v1626
        %v2131 = vpack.c.b16 %v1639, %v1627
        %v2132 = vpack.c.b16 %v1640, %v1628
        %v2133 = vpack.c.b16 %v1641, %v1629
        %v2134 = vpack.c.b16 %v1642, %v1630
        %v2135 = vpack.c.b16 %v1643, %v1631
        %v2136 = vpack.c.b16 %v1644, %v1632
        %v2137 = vpack.c.b16 %v1645, %v1633
        %v2138 = vpack.c.b16 %v1658, %v1646
        %v2139 = vpack.c.b16 %v1659, %v1647
        %v2140 = vpack.c.b16 %v1660, %v1648
        %v2141 = vpack.c.b16 %v1661, %v1649
        %v2142 = vpack.c.b16 %v1662, %v1650
        %v2143 = vpack.c.b16 %v1663, %v1651
        %v2144 = vpack.c.b16 %v1664, %v1652
        %v2145 = vpack.c.b16 %v1665, %v1653
        %v2146 = vpack.c.b16 %v1666, %v1654
        %v2147 = vpack.c.b16 %v1667, %v1655
        %v2148 = vpack.c.b16 %v1668, %v1656
        %v2149 = vpack.c.b16 %v1669, %v1657
        %v2150 = vpack.c.b16 %v1682, %v1670
        %v2151 = vpack.c.b16 %v1683, %v1671
        %v2152 = vpack.c.b16 %v1684, %v1672
        %v2153 = vpack.c.b16 %v1685, %v1673
        %v2154 = vpack.c.b16 %v1686, %v1674
        %v2155 = vpack.c.b16 %v1687, %v1675
        %v2156 = vpack.c.b16 %v1688, %v1676
        %v2157 = vpack.c.b16 %v1689, %v1677
        %v2158 = vpack.c.b16 %v1690, %v1678
        %v2159 = vpack.c.b16 %v1691, %v1679
        %v2160 = vpack.c.b16 %v1692, %v1680
        %v2161 = vpack.c.b16 %v1693, %v1681
        %v2162 = vpack.c.b16 %v1706, %v1694
        %v2163 = vpack.c.b16 %v1707, %v1695
        %v2164 = vpack.c.b16 %v1708, %v1696
        %v2165 = vpack.c.b16 %v1709, %v1697
        %v2166 = vpack.c.b16 %v1710, %v1698
        %v2167 = vpack.c.b16 %v1711, %v1699
        %v2168 = vpack.c.b16 %v1712, %v1700
        %v2169 = vpack.c.b16 %v1713, %v1701
        %v2170 = vpack.c.b16 %v1714, %v1702
        %v2171 = vpack.c.b16 %v1715, %v1703
        %v2172 = vpack.c.b16 %v1716, %v1704
        %v2173 = vpack.c.b16 %v1717, %v1705
        %v2174 = vpack.c.b16 %v1730, %v1718
        %v2175 = vpack.c.b16 %v1731, %v1719
        %v2176 = vpack.c.b16 %v1732, %v1720
        %v2177 = vpack.c.b16 %v1733, %v1721
        %v2178 = vpack.c.b16 %v1734, %v1722
        %v2179 = vpack.c.b16 %v1735, %v1723
        %v2180 = vpack.c.b16 %v1736, %v1724
        %v2181 = vpack.c.b16 %v1737, %v1725
        %v2182 = vpack.c.b16 %v1738, %v1726
        %v2183 = vpack.c.b16 %v1739, %v1727
        %v2184 = vpack.c.b16 %v1740, %v1728
        %v2185 = vpack.c.b16 %v1741, %v1729
        %v2186 = vpack.c.b16 %v1754, %v1742
        %v2187 = vpack.c.b16 %v1755, %v1743
        %v2188 = vpack.c.b16 %v1756, %v1744
        %v2189 = vpack.c.b16 %v1757, %v1745
        %v2190 = vpack.c.b16 %v1758, %v1746
        %v2191 = vpack.c.b16 %v1759, %v1747
        %v2192 = vpack.c.b16 %v1760, %v1748
        %v2193 = vpack.c.b16 %v1761, %v1749
        %v2194 = vpack.c.b16 %v1762, %v1750
        %v2195 = vpack.c.b16 %v1763, %v1751
        %v2196 = vpack.c.b16 %v1764, %v1752
        %v2197 = vpack.c.b16 %v1765, %v1753
        %v2198 = vpack.c.b16 %v1778, %v1766
        %v2199 = vpack.c.b16 %v1779, %v1767
        %v2200 = vpack.c.b16 %v1780, %v1768
        %v2201 = vpack.c.b16 %v1781, %v1769
        %v2202 = vpack.c.b16 %v1782, %v1770
        %v2203 = vpack.c.b16 %v1783, %v1771
        %v2204 = vpack.c.b16 %v1784, %v1772
        %v2205 = vpack.c.b16 %v1785, %v1773
        %v2206 = vpack.c.b16 %v1786, %v1774
        %v2207 = vpack.c.b16 %v1787, %v1775
        %v2208 = vpack.c.b16 %v1788, %v1776
        %v2209 = vpack.c.b16 %v1789, %v1777
        %v2210 = vpack.c.b16 %v1802, %v1790
        %v2211 = vpack.c.b16 %v1803, %v1791
        %v2212 = vpack.c.b16 %v1804, %v1792
        %v2213 = vpack.c.b16 %v1805, %v1793
        %v2214 = vpack.c.b16 %v1806, %v1794
        %v2215 = vpack.c.b16 %v1807, %v1795
        %v2216 = vpack.c.b16 %v1808, %v1796
        %v2217 = vpack.c.b16 %v1809, %v1797
        %v2218 = vpack.c.b16 %v1810, %v1798
        %v2219 = vpack.c.b16 %v1811, %v1799
        %v2220 = vpack.c.b16 %v1812, %v1800
        %v2221 = vpack.c.b16 %v1813, %v1801
        %v2222 = vpack.c.b16 %v1826, %v1814
        %v2223 = vpack.c.b16 %v1827, %v1815
        %v2224 = vpack.c.b16 %v1828, %v1816
        %v2225 = vpack.c.b16 %v1829, %v1817
        %v2226 = vpack.c.b16 %v1830, %v1818
        %v2227 = vpack.c.b16 %v1831, %v1819
        %v2228 = vpack.c.b16 %v1832, %v1820
        %v2229 = vpack.c.b16 %v1833, %v1821
        %v2230 = vpack.c.b16 %v1834, %v1822
        %v2231 = vpack.c.b16 %v1835, %v1823
        %v2232 = vpack.c.b16 %v1836, %v1824
        %v2233 = vpack.c.b16 %v1837, %v1825
        %v2234 = vpack.c.b16 %v1850, %v1838
        %v2235 = vpack.c.b16 %v1851, %v1839
        %v2236 = vpack.c.b16 %v1852, %v1840
        %v2237 = vpack.c.b16 %v1853, %v1841
        %v2238 = vpack.c.b16 %v1854, %v1842
        %v2239 = vpack.c.b16 %v1855, %v1843
        %v2240 = vpack.c.b16 %v1856, %v1844
        %v2241 = vpack.c.b16 %v1857, %v1845
        %v2242 = vpack.c.b16 %v1858, %v1846
        %v2243 = vpack.c.b16 %v1859, %v1847
        %v2244 = vpack.c.b16 %v1860, %v1848
        %v2245 = vpack.c.b16 %v1861, %v1849
        %v2246 = vpack.c.b16 %v1874, %v1862
        %v2247 = vpack.c.b16 %v1875, %v1863
        %v2248 = vpack.c.b16 %v1876, %v1864
        %v2249 = vpack.c.b16 %v1877, %v1865
        %v2250 = vpack.c.b16 %v1878, %v1866
        %v2251 = vpack.c.b16 %v1879, %v1867
        %v2252 = vpack.c.b16 %v1880, %v1868
        %v2253 = vpack.c.b16 %v1881, %v1869
        %v2254 = vpack.c.b16 %v1882, %v1870
        %v2255 = vpack.c.b16 %v1883, %v1871
        %v2256 = vpack.c.b16 %v1884, %v1872
        %v2257 = vpack.c.b16 %v1885, %v1873
        %v2258 = vpack.c.b16 %v1898, %v1886
        %v2259 = vpack.c.b16 %v1899, %v1887
        %v2260 = vpack.c.b16 %v1900, %v1888
        %v2261 = vpack.c.b16 %v1901, %v1889
        %v2262 = vpack.c.b16 %v1902, %v1890
        %v2263 = vpack.c.b16 %v1903, %v1891
        %v2264 = vpack.c.b16 %v1904, %v1892
        %v2265 = vpack.c.b16 %v1905, %v1893
        %v2266 = vpack.c.b16 %v1906, %v1894
        %v2267 = vpack.c.b16 %v1907, %v1895
        %v2268 = vpack.c.b16 %v1908, %v1896
        %v2269 = vpack.c.b16 %v1909, %v1897
        %v2270 = vpack.c.b16 %v1922, %v1910
        %v2271 = vpack.c.b16 %v1923, %v1911
        %v2272 = vpack.c.b16 %v1924, %v1912
        %v2273 = vpack.c.b16 %v1925, %v1913
        %v2274 = vpack.c.b16 %v1926, %v1914
        %v2275 = vpack.c.b16 %v1927, %v1915
        %v2276 = vpack.c.b16 %v1928, %v1916
        %v2277 = vpack.c.b16 %v1929, %v1917
        %v2278 = vpack.c.b16 %v1930, %v1918
        %v2279 = vpack.c.b16 %v1931, %v1919
        %v2280 = vpack.c.b16 %v1932, %v1920
        %v2281 = vpack.c.b16 %v1933, %v1921
        %v2282 = vpack.c.b16 %v1946, %v1934
        %v2283 = vpack.c.b16 %v1947, %v1935
        %v2284 = vpack.c.b16 %v1948, %v1936
        %v2285 = vpack.c.b16 %v1949, %v1937
        %v2286 = vpack.c.b16 %v1950, %v1938
        %v2287 = vpack.c.b16 %v1951, %v1939
        %v2288 = vpack.c.b16 %v1952, %v1940
        %v2289 = vpack.c.b16 %v1953, %v1941
        %v2290 = vpack.c.b16 %v1954, %v1942
        %v2291 = vpack.c.b16 %v1955, %v1943
        %v2292 = vpack.c.b16 %v1956, %v1944
        %v2293 = vpack.c.b16 %v1957, %v1945
        %v2294 = vpack.c.b16 %v1970, %v1958
        %v2295 = vpack.c.b16 %v1971, %v1959
        %v2296 = vpack.c.b16 %v1972, %v1960
        %v2297 = vpack.c.b16 %v1973, %v1961
        %v2298 = vpack.c.b16 %v1974, %v1962
        %v2299 = vpack.c.b16 %v1975, %v1963
        %v2300 = vpack.c.b16 %v1976, %v1964
        %v2301 = vpack.c.b16 %v1977, %v1965
        %v2302 = vpack.c.b16 %v1978, %v1966
        %v2303 = vpack.c.b16 %v1979, %v1967
        %v2304 = vpack.c.b16 %v1980, %v1968
        %v2305 = vpack.c.b16 %v1981, %v1969
        %v2306 = vpack.c.b16 %v1994, %v1982
        %v2307 = vpack.c.b16 %v1995, %v1983
        %v2308 = vpack.c.b16 %v1996, %v1984
        %v2309 = vpack.c.b16 %v1997, %v1985
        %v2310 = vpack.c.b16 %v1998, %v1986
        %v2311 = vpack.c.b16 %v1999, %v1987
        %v2312 = vpack.c.b16 %v2000, %v1988
        %v2313 = vpack.c.b16 %v2001, %v1989
        %v2314 = vpack.c.b16 %v2002, %v1990
        %v2315 = vpack.c.b16 %v2003, %v1991
        %v2316 = vpack.c.b16 %v2004, %v1992
        %v2317 = vpack.c.b16 %v2005, %v1993
        %v2318 = vpack.c.b16 %v2018, %v2006
        %v2319 = vpack.c.b16 %v2019, %v2007
        %v2320 = vpack.c.b16 %v2020, %v2008
        %v2321 = vpack.c.b16 %v2021, %v2009
        %v2322 = vpack.c.b16 %v2022, %v2010
        %v2323 = vpack.c.b16 %v2023, %v2011
        %v2324 = vpack.c.b16 %v2024, %v2012
        %v2325 = vpack.c.b16 %v2025, %v2013
        %v2326 = vpack.c.b16 %v2026, %v2014
        %v2327 = vpack.c.b16 %v2027, %v2015
        %v2328 = vpack.c.b16 %v2028, %v2016
        %v2329 = vpack.c.b16 %v2029, %v2017
        %v2330 = vpack.c.b16 %v2042, %v2030
        %v2331 = vpack.c.b16 %v2043, %v2031
        %v2332 = vpack.c.b16 %v2044, %v2032
        %v2333 = vpack.c.b16 %v2045, %v2033
        %v2334 = vpack.c.b16 %v2046, %v2034
        %v2335 = vpack.c.b16 %v2047, %v2035
        %v2336 = vpack.c.b16 %v2048, %v2036
        %v2337 = vpack.c.b16 %v2049, %v2037
        %v2338 = vpack.c.b16 %v2050, %v2038
        %v2339 = vpack.c.b16 %v2051, %v2039
        %v2340 = vpack.c.b16 %v2052, %v2040
        %v2341 = vpack.c.b16 %v2053, %v2041
        %2630 = vmatprep.subr.bf16.mxu0 %v2055
        %2631 = vmatpush1.bf16.msra.mxu0 %v2054
        %2632 = vmatprep.subr.bf16.mxu0 %v2067
        %2633 = vmatpush1.bf16.msra.mxu0 %v2066
        %2634 = vmatprep.subr.bf16.mxu0 %v2079
        %2635 = vmatpush1.bf16.msra.mxu0 %v2078
        %2636 = vmatprep.subr.bf16.mxu0 %v2091
        %2637 = vmatpush1.bf16.msra.mxu0 %v2090
        %2638 = vmatprep.subr.bf16.mxu0 %v2103
        %2639 = vmatpush1.bf16.msra.mxu0 %v2102
        %2640 = vmatprep.subr.bf16.mxu0 %v2115
        %2641 = vmatpush1.bf16.msra.mxu0 %v2114
        %2642 = vmatprep.subr.bf16.mxu0 %v2127
        %2643 = vmatpush1.bf16.msra.mxu0 %v2126
        %2644 = vmatprep.subr.bf16.mxu0 %v2139
        %2645 = vmatpush1.bf16.msra.mxu0 %v2138
        %2646 = vmatprep.subr.bf16.mxu0 %v2151
        %2647 = vmatpush1.bf16.msra.mxu0 %v2150
        %2648 = vmatprep.subr.bf16.mxu0 %v2163
        %2649 = vmatpush1.bf16.msra.mxu0 %v2162
        %2650 = vmatprep.subr.bf16.mxu0 %v2175
        %2651 = vmatpush1.bf16.msra.mxu0 %v2174
        %2652 = vmatprep.subr.bf16.mxu0 %v2187
        %2653 = vmatpush1.bf16.msra.mxu0 %v2186
        %2654 = vmatprep.subr.bf16.mxu0 %v2199
        %2655 = vmatpush1.bf16.msra.mxu0 %v2198
        %2656 = vmatprep.subr.bf16.mxu0 %v2211
        %2657 = vmatpush1.bf16.msra.mxu0 %v2210
        %2658 = vmatprep.subr.bf16.mxu0 %v2223
        %2659 = vmatpush1.bf16.msra.mxu0 %v2222
        %2660 = vmatprep.subr.bf16.mxu0 %v2235
        %2661 = vmatpush1.bf16.msra.mxu0 %v2234
        %2662 = vmatprep.mubr.bf16.mxu0 %v815
        %2663 = vmatmul.mubr.bf16.gmra.mrb[0].mxu0 %v814
        %v2664 = vpop.f32.mrb[0].mxu0
        %v2665 = vadd.f32 %v1133, %v2664
        %v2666 = vpop.f32.mrb[0].mxu0
        %v2667 = vadd.f32 %v1137, %v2666
        %v2668 = vpop.f32.mrb[0].mxu0
        %v2669 = vadd.f32 %v1133, %v2668
        %v2670 = vpop.f32.mrb[0].mxu0
        %v2671 = vadd.f32 %v1137, %v2670
        %2672 = vmatprep.mubr.bf16.mxu0 %v818
        %2673 = vmatmul.mubr.bf16.gmra.mrb[0].mxu0 %v817
        %v2674 = vpop.f32.mrb[0].mxu0
        %v2675 = vadd.f32 %v1133, %v2674
        %v2676 = vpop.f32.mrb[0].mxu0
        %v2677 = vadd.f32 %v1137, %v2676
        %v2678 = vpop.f32.mrb[0].mxu0
        %v2679 = vadd.f32 %v1133, %v2678
        %v2680 = vpop.f32.mrb[0].mxu0
        %v2681 = vadd.f32 %v1137, %v2680
        %2682 = vmatprep.mubr.bf16.mxu0 %v821
        %2683 = vmatmul.mubr.bf16.gmra.mrb[0].mxu0 %v820
        %v2684 = vpop.f32.mrb[0].mxu0
        %v2685 = vadd.f32 %v1133, %v2684
        %v2686 = vpop.f32.mrb[0].mxu0
        %v2687 = vadd.f32 %v1137, %v2686
        %v2688 = vpop.f32.mrb[0].mxu0
        %v2689 = vadd.f32 %v1133, %v2688
        %v2690 = vpop.f32.mrb[0].mxu0
        %v2691 = vadd.f32 %v1137, %v2690
        %2692 = vmatprep.mubr.bf16.mxu0 %v824
        %2693 = vmatmul.mubr.bf16.gmra.mrb[0].mxu0 %v823
        %v2694 = vpop.f32.mrb[0].mxu0
        %v2695 = vadd.f32 %v1133, %v2694
        %v2696 = vpop.f32.mrb[0].mxu0
        %v2697 = vadd.f32 %v1137, %v2696
        %v2698 = vpop.f32.mrb[0].mxu0
        %v2699 = vadd.f32 %v1133, %v2698
        %v2700 = vpop.f32.mrb[0].mxu0
        %v2701 = vadd.f32 %v1137, %v2700
        %2702 = vmatprep.mubr.bf16.mxu0 %v827
        %2703 = vmatmul.mubr.bf16.gmra.mrb[0].mxu0 %v826
        %v2704 = vpop.f32.mrb[0].mxu0
        %v2705 = vadd.f32 %v1133, %v2704
        %v2706 = vpop.f32.mrb[0].mxu0
        %v2707 = vadd.f32 %v1137, %v2706
        %v2708 = vpop.f32.mrb[0].mxu0
        %v2709 = vadd.f32 %v1133, %v2708
        %v2710 = vpop.f32.mrb[0].mxu0
        %v2711 = vadd.f32 %v1137, %v2710
        %2712 = vmatprep.mubr.bf16.mxu0 %v830
        %2713 = vmatmul.mubr.bf16.gmra.mrb[0].mxu0 %v829
        %v2714 = vpop.f32.mrb[0].mxu0
        %v2715 = vadd.f32 %v1133, %v2714
        %v2716 = vpop.f32.mrb[0].mxu0
        %v2717 = vadd.f32 %v1137, %v2716
        %v2718 = vpop.f32.mrb[0].mxu0
        %v2719 = vadd.f32 %v1133, %v2718
        %v2720 = vpop.f32.mrb[0].mxu0
        %v2721 = vadd.f32 %v1137, %v2720
        %2722 = vmatprep.mubr.bf16.mxu0 %v833
        %2723 = vmatmul.mubr.bf16.gmra.mrb[0].mxu0 %v832
        %v2724 = vpop.f32.mrb[0].mxu0
        %v2725 = vadd.f32 %v1133, %v2724
        %v2726 = vpop.f32.mrb[0].mxu0
        %v2727 = vadd.f32 %v1137, %v2726
        %v2728 = vpop.f32.mrb[0].mxu0
        %v2729 = vadd.f32 %v1133, %v2728
        %v2730 = vpop.f32.mrb[0].mxu0
        %v2731 = vadd.f32 %v1137, %v2730
        %2732 = vmatprep.mubr.bf16.mxu0 %v836
        %2733 = vmatmul.mubr.bf16.gmra.mrb[0].mxu0 %v835
        %v2734 = vpop.f32.mrb[0].mxu0
        %v2735 = vadd.f32 %v1133, %v2734
        %v2736 = vpop.f32.mrb[0].mxu0
        %v2737 = vadd.f32 %v1137, %v2736
        %v2738 = vpop.f32.mrb[0].mxu0
        %v2739 = vadd.f32 %v1133, %v2738
        %v2740 = vpop.f32.mrb[0].mxu0
        %v2741 = vadd.f32 %v1137, %v2740
        %2742 = vdwg.mxu0
        %2743 = vmatprep.subr.bf16.mxu0 %v2247
        %2744 = vmatpush1.bf16.msra.mxu0 %v2246
        %2745 = vmatprep.subr.bf16.mxu0 %v2259
        %2746 = vmatpush1.bf16.msra.mxu0 %v2258
        %2747 = vmatprep.subr.bf16.mxu0 %v2271
        %2748 = vmatpush1.bf16.msra.mxu0 %v2270
        %2749 = vmatprep.subr.bf16.mxu0 %v2283
        %2750 = vmatpush1.bf16.msra.mxu0 %v2282
        %2751 = vmatprep.subr.bf16.mxu0 %v2295
        %2752 = vmatpush1.bf16.msra.mxu0 %v2294
        %2753 = vmatprep.subr.bf16.mxu0 %v2307
        %2754 = vmatpush1.bf16.msra.mxu0 %v2306
        %2755 = vmatprep.subr.bf16.mxu0 %v2319
        %2756 = vmatpush1.bf16.msra.mxu0 %v2318
        %2757 = vmatprep.subr.bf16.mxu0 %v2331
        %2758 = vmatpush1.bf16.msra.mxu0 %v2330
        %2759 = vmatprep.subr.bf16.mxu0 0
        %2760 = vmatpush1.bf16.msra.mxu0 0
        %2761 = vmatprep.subr.bf16.mxu0 0
        %2762 = vmatpush1.bf16.msra.mxu0 0
        %2763 = vmatprep.subr.bf16.mxu0 0
        %2764 = vmatpush1.bf16.msra.mxu0 0
        %2765 = vmatprep.subr.bf16.mxu0 0
        %2766 = vmatpush1.bf16.msra.mxu0 0
        %2767 = vmatprep.subr.bf16.mxu0 0
        %2768 = vmatpush1.bf16.msra.mxu0 0
        %2769 = vmatprep.subr.bf16.mxu0 0
        %2770 = vmatpush1.bf16.msra.mxu0 0
        %2771 = vmatprep.subr.bf16.mxu0 0
        %2772 = vmatpush1.bf16.msra.mxu0 0
        %2773 = vmatprep.subr.bf16.mxu0 0
        %2774 = vmatpush1.bf16.msra.mxu0 0
        %2775 = vmatprep.mubr.bf16.mxu0 0
        %2776 = vmatmul.mubr.bf16.gmra.mrb[0].mxu0 %v816
        %v2777 = vpop.f32.mrb[0].mxu0
        %v2778 = vadd.f32 %v2665, %v2777
        %v2779 = vpop.f32.mrb[0].mxu0
        %v2780 = vadd.f32 %v2667, %v2779
        %v2781 = vpop.f32.mrb[0].mxu0
        %v2782 = vadd.f32 %v2669, %v2781
        %v2783 = vpop.f32.mrb[0].mxu0
        %v2784 = vadd.f32 %v2671, %v2783
        %2785 = vmatprep.mubr.bf16.mxu0 0
        %2786 = vmatmul.mubr.bf16.gmra.mrb[0].mxu0 %v819
        %v2787 = vpop.f32.mrb[0].mxu0
        %v2788 = vadd.f32 %v2675, %v2787
        %v2789 = vpop.f32.mrb[0].mxu0
        %v2790 = vadd.f32 %v2677, %v2789
        %v2791 = vpop.f32.mrb[0].mxu0
        %v2792 = vadd.f32 %v2679, %v2791
        %v2793 = vpop.f32.mrb[0].mxu0
        %v2794 = vadd.f32 %v2681, %v2793
        %2795 = vmatprep.mubr.bf16.mxu0 0
        %2796 = vmatmul.mubr.bf16.gmra.mrb[0].mxu0 %v822
        %v2797 = vpop.f32.mrb[0].mxu0
        %v2798 = vadd.f32 %v2685, %v2797
        %v2799 = vpop.f32.mrb[0].mxu0
        %v2800 = vadd.f32 %v2687, %v2799
        %v2801 = vpop.f32.mrb[0].mxu0
        %v2802 = vadd.f32 %v2689, %v2801
        %v2803 = vpop.f32.mrb[0].mxu0
        %v2804 = vadd.f32 %v2691, %v2803
        %2805 = vmatprep.mubr.bf16.mxu0 0
        %2806 = vmatmul.mubr.bf16.gmra.mrb[0].mxu0 %v825
        %v2807 = vpop.f32.mrb[0].mxu0
        %v2808 = vadd.f32 %v2695, %v2807
        %v2809 = vpop.f32.mrb[0].mxu0
        %v2810 = vadd.f32 %v2697, %v2809
        %v2811 = vpop.f32.mrb[0].mxu0
        %v2812 = vadd.f32 %v2699, %v2811
        %v2813 = vpop.f32.mrb[0].mxu0
        %v2814 = vadd.f32 %v2701, %v2813
        %2815 = vmatprep.mubr.bf16.mxu0 0
        %2816 = vmatmul.mubr.bf16.gmra.mrb[0].mxu0 %v828
        %v2817 = vpop.f32.mrb[0].mxu0
        %v2818 = vadd.f32 %v2705, %v2817
        %v2819 = vpop.f32.mrb[0].mxu0
        %v2820 = vadd.f32 %v2707, %v2819
        %v2821 = vpop.f32.mrb[0].mxu0
        %v2822 = vadd.f32 %v2709, %v2821
        %v2823 = vpop.f32.mrb[0].mxu0
        %v2824 = vadd.f32 %v2711, %v2823
        %2825 = vmatprep.mubr.bf16.mxu0 0
        %2826 = vmatmul.mubr.bf16.gmra.mrb[0].mxu0 %v831
        %v2827 = vpop.f32.mrb[0].mxu0
        %v2828 = vadd.f32 %v2715, %v2827
        %v2829 = vpop.f32.mrb[0].mxu0
        %v2830 = vadd.f32 %v2717, %v2829
        %v2831 = vpop.f32.mrb[0].mxu0
        %v2832 = vadd.f32 %v2719, %v2831
        %v2833 = vpop.f32.mrb[0].mxu0
        %v2834 = vadd.f32 %v2721, %v2833
        %2835 = vmatprep.mubr.bf16.mxu0 0
        %2836 = vmatmul.mubr.bf16.gmra.mrb[0].mxu0 %v834
        %v2837 = vpop.f32.mrb[0].mxu0
        %v2838 = vadd.f32 %v2725, %v2837
        %v2839 = vpop.f32.mrb[0].mxu0
        %v2840 = vadd.f32 %v2727, %v2839
        %v2841 = vpop.f32.mrb[0].mxu0
        %v2842 = vadd.f32 %v2729, %v2841
        %v2843 = vpop.f32.mrb[0].mxu0
        %v2844 = vadd.f32 %v2731, %v2843
        %2845 = vmatprep.mubr.bf16.mxu0 0
        %2846 = vmatmul.mubr.bf16.gmra.mrb[0].mxu0 %v837
        %v2847 = vpop.f32.mrb[0].mxu0
        %v2848 = vadd.f32 %v2735, %v2847
        %v2849 = vpop.f32.mrb[0].mxu0
        %v2850 = vadd.f32 %v2737, %v2849
        %v2851 = vpop.f32.mrb[0].mxu0
        %v2852 = vadd.f32 %v2739, %v2851
        %v2853 = vpop.f32.mrb[0].mxu0
        %v2854 = vadd.f32 %v2741, %v2853
        %2855 = vdwg.mxu0
        %2856 = vmatprep.subr.bf16.mxu0 %v2057
        %2857 = vmatpush1.bf16.msra.mxu0 %v2056
        %2858 = vmatprep.subr.bf16.mxu0 %v2069
        %2859 = vmatpush1.bf16.msra.mxu0 %v2068
        %2860 = vmatprep.subr.bf16.mxu0 %v2081
        %2861 = vmatpush1.bf16.msra.mxu0 %v2080
        %2862 = vmatprep.subr.bf16.mxu0 %v2093
        %2863 = vmatpush1.bf16.msra.mxu0 %v2092
        %2864 = vmatprep.subr.bf16.mxu0 %v2105
        %2865 = vmatpush1.bf16.msra.mxu0 %v2104
        %2866 = vmatprep.subr.bf16.mxu0 %v2117
        %2867 = vmatpush1.bf16.msra.mxu0 %v2116
        %2868 = vmatprep.subr.bf16.mxu0 %v2129
        %2869 = vmatpush1.bf16.msra.mxu0 %v2128
        %2870 = vmatprep.subr.bf16.mxu0 %v2141
        %2871 = vmatpush1.bf16.msra.mxu0 %v2140
        %2872 = vmatprep.subr.bf16.mxu0 %v2153
        %2873 = vmatpush1.bf16.msra.mxu0 %v2152
        %2874 = vmatprep.subr.bf16.mxu0 %v2165
        %2875 = vmatpush1.bf16.msra.mxu0 %v2164
        %2876 = vmatprep.subr.bf16.mxu0 %v2177
        %2877 = vmatpush1.bf16.msra.mxu0 %v2176
        %2878 = vmatprep.subr.bf16.mxu0 %v2189
        %2879 = vmatpush1.bf16.msra.mxu0 %v2188
        %2880 = vmatprep.subr.bf16.mxu0 %v2201
        %2881 = vmatpush1.bf16.msra.mxu0 %v2200
        %2882 = vmatprep.subr.bf16.mxu0 %v2213
        %2883 = vmatpush1.bf16.msra.mxu0 %v2212
        %2884 = vmatprep.subr.bf16.mxu0 %v2225
        %2885 = vmatpush1.bf16.msra.mxu0 %v2224
        %2886 = vmatprep.subr.bf16.mxu0 %v2237
        %2887 = vmatpush1.bf16.msra.mxu0 %v2236
        %2888 = vmatprep.mubr.bf16.mxu0 %v815
        %2889 = vmatmul.mubr.bf16.gmra.mrb[0].mxu0 %v814
        %v2890 = vpop.f32.mrb[0].mxu0
        %v2891 = vadd.f32 %v1141, %v2890
        %v2892 = vpop.f32.mrb[0].mxu0
        %v2893 = vadd.f32 %v1145, %v2892
        %v2894 = vpop.f32.mrb[0].mxu0
        %v2895 = vadd.f32 %v1141, %v2894
        %v2896 = vpop.f32.mrb[0].mxu0
        %v2897 = vadd.f32 %v1145, %v2896
        %2898 = vmatprep.mubr.bf16.mxu0 %v818
        %2899 = vmatmul.mubr.bf16.gmra.mrb[0].mxu0 %v817
        %v2900 = vpop.f32.mrb[0].mxu0
        %v2901 = vadd.f32 %v1141, %v2900
        %v2902 = vpop.f32.mrb[0].mxu0
        %v2903 = vadd.f32 %v1145, %v2902
        %v2904 = vpop.f32.mrb[0].mxu0
        %v2905 = vadd.f32 %v1141, %v2904
        %v2906 = vpop.f32.mrb[0].mxu0
        %v2907 = vadd.f32 %v1145, %v2906
        %2908 = vmatprep.mubr.bf16.mxu0 %v821
        %2909 = vmatmul.mubr.bf16.gmra.mrb[0].mxu0 %v820
        %v2910 = vpop.f32.mrb[0].mxu0
        %v2911 = vadd.f32 %v1141, %v2910
        %v2912 = vpop.f32.mrb[0].mxu0
        %v2913 = vadd.f32 %v1145, %v2912
        %v2914 = vpop.f32.mrb[0].mxu0
        %v2915 = vadd.f32 %v1141, %v2914
        %v2916 = vpop.f32.mrb[0].mxu0
        %v2917 = vadd.f32 %v1145, %v2916
        %2918 = vmatprep.mubr.bf16.mxu0 %v824
        %2919 = vmatmul.mubr.bf16.gmra.mrb[0].mxu0 %v823
        %v2920 = vpop.f32.mrb[0].mxu0
        %v2921 = vadd.f32 %v1141, %v2920
        %v2922 = vpop.f32.mrb[0].mxu0
        %v2923 = vadd.f32 %v1145, %v2922
        %v2924 = vpop.f32.mrb[0].mxu0
        %v2925 = vadd.f32 %v1141, %v2924
        %v2926 = vpop.f32.mrb[0].mxu0
        %v2927 = vadd.f32 %v1145, %v2926
        %2928 = vmatprep.mubr.bf16.mxu0 %v827
        %2929 = vmatmul.mubr.bf16.gmra.mrb[0].mxu0 %v826
        %v2930 = vpop.f32.mrb[0].mxu0
        %v2931 = vadd.f32 %v1141, %v2930
        %v2932 = vpop.f32.mrb[0].mxu0
        %v2933 = vadd.f32 %v1145, %v2932
        %v2934 = vpop.f32.mrb[0].mxu0
        %v2935 = vadd.f32 %v1141, %v2934
        %v2936 = vpop.f32.mrb[0].mxu0
        %v2937 = vadd.f32 %v1145, %v2936
        %2938 = vmatprep.mubr.bf16.mxu0 %v830
        %2939 = vmatmul.mubr.bf16.gmra.mrb[0].mxu0 %v829
        %v2940 = vpop.f32.mrb[0].mxu0
        %v2941 = vadd.f32 %v1141, %v2940
        %v2942 = vpop.f32.mrb[0].mxu0
        %v2943 = vadd.f32 %v1145, %v2942
        %v2944 = vpop.f32.mrb[0].mxu0
        %v2945 = vadd.f32 %v1141, %v2944
        %v2946 = vpop.f32.mrb[0].mxu0
        %v2947 = vadd.f32 %v1145, %v2946
        %2948 = vmatprep.mubr.bf16.mxu0 %v833
        %2949 = vmatmul.mubr.bf16.gmra.mrb[0].mxu0 %v832
        %v2950 = vpop.f32.mrb[0].mxu0
        %v2951 = vadd.f32 %v1141, %v2950
        %v2952 = vpop.f32.mrb[0].mxu0
        %v2953 = vadd.f32 %v1145, %v2952
        %v2954 = vpop.f32.mrb[0].mxu0
        %v2955 = vadd.f32 %v1141, %v2954
        %v2956 = vpop.f32.mrb[0].mxu0
        %v2957 = vadd.f32 %v1145, %v2956
        %2958 = vmatprep.mubr.bf16.mxu0 %v836
        %2959 = vmatmul.mubr.bf16.gmra.mrb[0].mxu0 %v835
        %v2960 = vpop.f32.mrb[0].mxu0
        %v2961 = vadd.f32 %v1141, %v2960
        %v2962 = vpop.f32.mrb[0].mxu0
        %v2963 = vadd.f32 %v1145, %v2962
        %v2964 = vpop.f32.mrb[0].mxu0
        %v2965 = vadd.f32 %v1141, %v2964
        %v2966 = vpop.f32.mrb[0].mxu0
        %v2967 = vadd.f32 %v1145, %v2966
        %2968 = vdwg.mxu0
        %2969 = vmatprep.subr.bf16.mxu0 %v2249
        %2970 = vmatpush1.bf16.msra.mxu0 %v2248
        %2971 = vmatprep.subr.bf16.mxu0 %v2261
        %2972 = vmatpush1.bf16.msra.mxu0 %v2260
        %2973 = vmatprep.subr.bf16.mxu0 %v2273
        %2974 = vmatpush1.bf16.msra.mxu0 %v2272
        %2975 = vmatprep.subr.bf16.mxu0 %v2285
        %2976 = vmatpush1.bf16.msra.mxu0 %v2284
        %2977 = vmatprep.subr.bf16.mxu0 %v2297
        %2978 = vmatpush1.bf16.msra.mxu0 %v2296
        %2979 = vmatprep.subr.bf16.mxu0 %v2309
        %2980 = vmatpush1.bf16.msra.mxu0 %v2308
        %2981 = vmatprep.subr.bf16.mxu0 %v2321
        %2982 = vmatpush1.bf16.msra.mxu0 %v2320
        %2983 = vmatprep.subr.bf16.mxu0 %v2333
        %2984 = vmatpush1.bf16.msra.mxu0 %v2332
        %2985 = vmatprep.subr.bf16.mxu0 0
        %2986 = vmatpush1.bf16.msra.mxu0 0
        %2987 = vmatprep.subr.bf16.mxu0 0
        %2988 = vmatpush1.bf16.msra.mxu0 0
        %2989 = vmatprep.subr.bf16.mxu0 0
        %2990 = vmatpush1.bf16.msra.mxu0 0
        %2991 = vmatprep.subr.bf16.mxu0 0
        %2992 = vmatpush1.bf16.msra.mxu0 0
        %2993 = vmatprep.subr.bf16.mxu0 0
        %2994 = vmatpush1.bf16.msra.mxu0 0
        %2995 = vmatprep.subr.bf16.mxu0 0
        %2996 = vmatpush1.bf16.msra.mxu0 0
        %2997 = vmatprep.subr.bf16.mxu0 0
        %2998 = vmatpush1.bf16.msra.mxu0 0
        %2999 = vmatprep.subr.bf16.mxu0 0
        %3000 = vmatpush1.bf16.msra.mxu0 0
        %3001 = vmatprep.mubr.bf16.mxu0 0
        %3002 = vmatmul.mubr.bf16.gmra.mrb[0].mxu0 %v816
        %v3003 = vpop.f32.mrb[0].mxu0
        %v3004 = vadd.f32 %v2891, %v3003
        %v3005 = vpop.f32.mrb[0].mxu0
        %v3006 = vadd.f32 %v2893, %v3005
        %v3007 = vpop.f32.mrb[0].mxu0
        %v3008 = vadd.f32 %v2895, %v3007
        %v3009 = vpop.f32.mrb[0].mxu0
        %v3010 = vadd.f32 %v2897, %v3009
        %3011 = vmatprep.mubr.bf16.mxu0 0
        %3012 = vmatmul.mubr.bf16.gmra.mrb[0].mxu0 %v819
        %v3013 = vpop.f32.mrb[0].mxu0
        %v3014 = vadd.f32 %v2901, %v3013
        %v3015 = vpop.f32.mrb[0].mxu0
        %v3016 = vadd.f32 %v2903, %v3015
        %v3017 = vpop.f32.mrb[0].mxu0
        %v3018 = vadd.f32 %v2905, %v3017
        %v3019 = vpop.f32.mrb[0].mxu0
        %v3020 = vadd.f32 %v2907, %v3019
        %3021 = vmatprep.mubr.bf16.mxu0 0
        %3022 = vmatmul.mubr.bf16.gmra.mrb[0].mxu0 %v822
        %v3023 = vpop.f32.mrb[0].mxu0
        %v3024 = vadd.f32 %v2911, %v3023
        %v3025 = vpop.f32.mrb[0].mxu0
        %v3026 = vadd.f32 %v2913, %v3025
        %v3027 = vpop.f32.mrb[0].mxu0
        %v3028 = vadd.f32 %v2915, %v3027
        %v3029 = vpop.f32.mrb[0].mxu0
        %v3030 = vadd.f32 %v2917, %v3029
        %3031 = vmatprep.mubr.bf16.mxu0 0
        %3032 = vmatmul.mubr.bf16.gmra.mrb[0].mxu0 %v825
        %v3033 = vpop.f32.mrb[0].mxu0
        %v3034 = vadd.f32 %v2921, %v3033
        %v3035 = vpop.f32.mrb[0].mxu0
        %v3036 = vadd.f32 %v2923, %v3035
        %v3037 = vpop.f32.mrb[0].mxu0
        %v3038 = vadd.f32 %v2925, %v3037
        %v3039 = vpop.f32.mrb[0].mxu0
        %v3040 = vadd.f32 %v2927, %v3039
        %3041 = vmatprep.mubr.bf16.mxu0 0
        %3042 = vmatmul.mubr.bf16.gmra.mrb[0].mxu0 %v828
        %v3043 = vpop.f32.mrb[0].mxu0
        %v3044 = vadd.f32 %v2931, %v3043
        %v3045 = vpop.f32.mrb[0].mxu0
        %v3046 = vadd.f32 %v2933, %v3045
        %v3047 = vpop.f32.mrb[0].mxu0
        %v3048 = vadd.f32 %v2935, %v3047
        %v3049 = vpop.f32.mrb[0].mxu0
        %v3050 = vadd.f32 %v2937, %v3049
        %3051 = vmatprep.mubr.bf16.mxu0 0
        %3052 = vmatmul.mubr.bf16.gmra.mrb[0].mxu0 %v831
        %v3053 = vpop.f32.mrb[0].mxu0
        %v3054 = vadd.f32 %v2941, %v3053
        %v3055 = vpop.f32.mrb[0].mxu0
        %v3056 = vadd.f32 %v2943, %v3055
        %v3057 = vpop.f32.mrb[0].mxu0
        %v3058 = vadd.f32 %v2945, %v3057
        %v3059 = vpop.f32.mrb[0].mxu0
        %v3060 = vadd.f32 %v2947, %v3059
        %3061 = vmatprep.mubr.bf16.mxu0 0
        %3062 = vmatmul.mubr.bf16.gmra.mrb[0].mxu0 %v834
        %v3063 = vpop.f32.mrb[0].mxu0
        %v3064 = vadd.f32 %v2951, %v3063
        %v3065 = vpop.f32.mrb[0].mxu0
        %v3066 = vadd.f32 %v2953, %v3065
        %v3067 = vpop.f32.mrb[0].mxu0
        %v3068 = vadd.f32 %v2955, %v3067
        %v3069 = vpop.f32.mrb[0].mxu0
        %v3070 = vadd.f32 %v2957, %v3069
        %3071 = vmatprep.mubr.bf16.mxu0 0
        %3072 = vmatmul.mubr.bf16.gmra.mrb[0].mxu0 %v837
        %v3073 = vpop.f32.mrb[0].mxu0
        %v3074 = vadd.f32 %v2961, %v3073
        %v3075 = vpop.f32.mrb[0].mxu0
        %v3076 = vadd.f32 %v2963, %v3075
        %v3077 = vpop.f32.mrb[0].mxu0
        %v3078 = vadd.f32 %v2965, %v3077
        %v3079 = vpop.f32.mrb[0].mxu0
        %v3080 = vadd.f32 %v2967, %v3079
        %3081 = vdwg.mxu0
        %3082 = vmatprep.subr.bf16.mxu0 %v2059
        %3083 = vmatpush1.bf16.msra.mxu0 %v2058
        %3084 = vmatprep.subr.bf16.mxu0 %v2071
        %3085 = vmatpush1.bf16.msra.mxu0 %v2070
        %3086 = vmatprep.subr.bf16.mxu0 %v2083
        %3087 = vmatpush1.bf16.msra.mxu0 %v2082
        %3088 = vmatprep.subr.bf16.mxu0 %v2095
        %3089 = vmatpush1.bf16.msra.mxu0 %v2094
        %3090 = vmatprep.subr.bf16.mxu0 %v2107
        %3091 = vmatpush1.bf16.msra.mxu0 %v2106
        %3092 = vmatprep.subr.bf16.mxu0 %v2119
        %3093 = vmatpush1.bf16.msra.mxu0 %v2118
        %3094 = vmatprep.subr.bf16.mxu0 %v2131
        %3095 = vmatpush1.bf16.msra.mxu0 %v2130
        %3096 = vmatprep.subr.bf16.mxu0 %v2143
        %3097 = vmatpush1.bf16.msra.mxu0 %v2142
        %3098 = vmatprep.subr.bf16.mxu0 %v2155
        %3099 = vmatpush1.bf16.msra.mxu0 %v2154
        %3100 = vmatprep.subr.bf16.mxu0 %v2167
        %3101 = vmatpush1.bf16.msra.mxu0 %v2166
        %3102 = vmatprep.subr.bf16.mxu0 %v2179
        %3103 = vmatpush1.bf16.msra.mxu0 %v2178
        %3104 = vmatprep.subr.bf16.mxu0 %v2191
        %3105 = vmatpush1.bf16.msra.mxu0 %v2190
        %3106 = vmatprep.subr.bf16.mxu0 %v2203
        %3107 = vmatpush1.bf16.msra.mxu0 %v2202
        %3108 = vmatprep.subr.bf16.mxu0 %v2215
        %3109 = vmatpush1.bf16.msra.mxu0 %v2214
        %3110 = vmatprep.subr.bf16.mxu0 %v2227
        %3111 = vmatpush1.bf16.msra.mxu0 %v2226
        %3112 = vmatprep.subr.bf16.mxu0 %v2239
        %3113 = vmatpush1.bf16.msra.mxu0 %v2238
        %3114 = vmatprep.mubr.bf16.mxu0 %v815
        %3115 = vmatmul.mubr.bf16.gmra.mrb[0].mxu0 %v814
        %v3116 = vpop.f32.mrb[0].mxu0
        %v3117 = vadd.f32 %v1149, %v3116
        %v3118 = vpop.f32.mrb[0].mxu0
        %v3119 = vadd.f32 %v1153, %v3118
        %v3120 = vpop.f32.mrb[0].mxu0
        %v3121 = vadd.f32 %v1149, %v3120
        %v3122 = vpop.f32.mrb[0].mxu0
        %v3123 = vadd.f32 %v1153, %v3122
        %3124 = vmatprep.mubr.bf16.mxu0 %v818
        %3125 = vmatmul.mubr.bf16.gmra.mrb[0].mxu0 %v817
        %v3126 = vpop.f32.mrb[0].mxu0
        %v3127 = vadd.f32 %v1149, %v3126
        %v3128 = vpop.f32.mrb[0].mxu0
        %v3129 = vadd.f32 %v1153, %v3128
        %v3130 = vpop.f32.mrb[0].mxu0
        %v3131 = vadd.f32 %v1149, %v3130
        %v3132 = vpop.f32.mrb[0].mxu0
        %v3133 = vadd.f32 %v1153, %v3132
        %3134 = vmatprep.mubr.bf16.mxu0 %v821
        %3135 = vmatmul.mubr.bf16.gmra.mrb[0].mxu0 %v820
        %v3136 = vpop.f32.mrb[0].mxu0
        %v3137 = vadd.f32 %v1149, %v3136
        %v3138 = vpop.f32.mrb[0].mxu0
        %v3139 = vadd.f32 %v1153, %v3138
        %v3140 = vpop.f32.mrb[0].mxu0
        %v3141 = vadd.f32 %v1149, %v3140
        %v3142 = vpop.f32.mrb[0].mxu0
        %v3143 = vadd.f32 %v1153, %v3142
        %3144 = vmatprep.mubr.bf16.mxu0 %v824
        %3145 = vmatmul.mubr.bf16.gmra.mrb[0].mxu0 %v823
        %v3146 = vpop.f32.mrb[0].mxu0
        %v3147 = vadd.f32 %v1149, %v3146
        %v3148 = vpop.f32.mrb[0].mxu0
        %v3149 = vadd.f32 %v1153, %v3148
        %v3150 = vpop.f32.mrb[0].mxu0
        %v3151 = vadd.f32 %v1149, %v3150
        %v3152 = vpop.f32.mrb[0].mxu0
        %v3153 = vadd.f32 %v1153, %v3152
        %3154 = vmatprep.mubr.bf16.mxu0 %v827
        %3155 = vmatmul.mubr.bf16.gmra.mrb[0].mxu0 %v826
        %v3156 = vpop.f32.mrb[0].mxu0
        %v3157 = vadd.f32 %v1149, %v3156
        %v3158 = vpop.f32.mrb[0].mxu0
        %v3159 = vadd.f32 %v1153, %v3158
        %v3160 = vpop.f32.mrb[0].mxu0
        %v3161 = vadd.f32 %v1149, %v3160
        %v3162 = vpop.f32.mrb[0].mxu0
        %v3163 = vadd.f32 %v1153, %v3162
        %3164 = vmatprep.mubr.bf16.mxu0 %v830
        %3165 = vmatmul.mubr.bf16.gmra.mrb[0].mxu0 %v829
        %v3166 = vpop.f32.mrb[0].mxu0
        %v3167 = vadd.f32 %v1149, %v3166
        %v3168 = vpop.f32.mrb[0].mxu0
        %v3169 = vadd.f32 %v1153, %v3168
        %v3170 = vpop.f32.mrb[0].mxu0
        %v3171 = vadd.f32 %v1149, %v3170
        %v3172 = vpop.f32.mrb[0].mxu0
        %v3173 = vadd.f32 %v1153, %v3172
        %3174 = vmatprep.mubr.bf16.mxu0 %v833
        %3175 = vmatmul.mubr.bf16.gmra.mrb[0].mxu0 %v832
        %v3176 = vpop.f32.mrb[0].mxu0
        %v3177 = vadd.f32 %v1149, %v3176
        %v3178 = vpop.f32.mrb[0].mxu0
        %v3179 = vadd.f32 %v1153, %v3178
        %v3180 = vpop.f32.mrb[0].mxu0
        %v3181 = vadd.f32 %v1149, %v3180
        %v3182 = vpop.f32.mrb[0].mxu0
        %v3183 = vadd.f32 %v1153, %v3182
        %3184 = vmatprep.mubr.bf16.mxu0 %v836
        %3185 = vmatmul.mubr.bf16.gmra.mrb[0].mxu0 %v835
        %v3186 = vpop.f32.mrb[0].mxu0
        %v3187 = vadd.f32 %v1149, %v3186
        %v3188 = vpop.f32.mrb[0].mxu0
        %v3189 = vadd.f32 %v1153, %v3188
        %v3190 = vpop.f32.mrb[0].mxu0
        %v3191 = vadd.f32 %v1149, %v3190
        %v3192 = vpop.f32.mrb[0].mxu0
        %v3193 = vadd.f32 %v1153, %v3192
        %3194 = vdwg.mxu0
        %3195 = vmatprep.subr.bf16.mxu0 %v2251
        %3196 = vmatpush1.bf16.msra.mxu0 %v2250
        %3197 = vmatprep.subr.bf16.mxu0 %v2263
        %3198 = vmatpush1.bf16.msra.mxu0 %v2262
        %3199 = vmatprep.subr.bf16.mxu0 %v2275
        %3200 = vmatpush1.bf16.msra.mxu0 %v2274
        %3201 = vmatprep.subr.bf16.mxu0 %v2287
        %3202 = vmatpush1.bf16.msra.mxu0 %v2286
        %3203 = vmatprep.subr.bf16.mxu0 %v2299
        %3204 = vmatpush1.bf16.msra.mxu0 %v2298
        %3205 = vmatprep.subr.bf16.mxu0 %v2311
        %3206 = vmatpush1.bf16.msra.mxu0 %v2310
        %3207 = vmatprep.subr.bf16.mxu0 %v2323
        %3208 = vmatpush1.bf16.msra.mxu0 %v2322
        %3209 = vmatprep.subr.bf16.mxu0 %v2335
        %3210 = vmatpush1.bf16.msra.mxu0 %v2334
        %3211 = vmatprep.subr.bf16.mxu0 0
        %3212 = vmatpush1.bf16.msra.mxu0 0
        %3213 = vmatprep.subr.bf16.mxu0 0
        %3214 = vmatpush1.bf16.msra.mxu0 0
        %3215 = vmatprep.subr.bf16.mxu0 0
        %3216 = vmatpush1.bf16.msra.mxu0 0
        %3217 = vmatprep.subr.bf16.mxu0 0
        %3218 = vmatpush1.bf16.msra.mxu0 0
        %3219 = vmatprep.subr.bf16.mxu0 0
        %3220 = vmatpush1.bf16.msra.mxu0 0
        %3221 = vmatprep.subr.bf16.mxu0 0
        %3222 = vmatpush1.bf16.msra.mxu0 0
        %3223 = vmatprep.subr.bf16.mxu0 0
        %3224 = vmatpush1.bf16.msra.mxu0 0
        %3225 = vmatprep.subr.bf16.mxu0 0
        %3226 = vmatpush1.bf16.msra.mxu0 0
        %3227 = vmatprep.mubr.bf16.mxu0 0
        %3228 = vmatmul.mubr.bf16.gmra.mrb[0].mxu0 %v816
        %v3229 = vpop.f32.mrb[0].mxu0
        %v3230 = vadd.f32 %v3117, %v3229
        %v3231 = vpop.f32.mrb[0].mxu0
        %v3232 = vadd.f32 %v3119, %v3231
        %v3233 = vpop.f32.mrb[0].mxu0
        %v3234 = vadd.f32 %v3121, %v3233
        %v3235 = vpop.f32.mrb[0].mxu0
        %v3236 = vadd.f32 %v3123, %v3235
        %3237 = vmatprep.mubr.bf16.mxu0 0
        %3238 = vmatmul.mubr.bf16.gmra.mrb[0].mxu0 %v819
        %v3239 = vpop.f32.mrb[0].mxu0
        %v3240 = vadd.f32 %v3127, %v3239
        %v3241 = vpop.f32.mrb[0].mxu0
        %v3242 = vadd.f32 %v3129, %v3241
        %v3243 = vpop.f32.mrb[0].mxu0
        %v3244 = vadd.f32 %v3131, %v3243
        %v3245 = vpop.f32.mrb[0].mxu0
        %v3246 = vadd.f32 %v3133, %v3245
        %3247 = vmatprep.mubr.bf16.mxu0 0
        %3248 = vmatmul.mubr.bf16.gmra.mrb[0].mxu0 %v822
        %v3249 = vpop.f32.mrb[0].mxu0
        %v3250 = vadd.f32 %v3137, %v3249
        %v3251 = vpop.f32.mrb[0].mxu0
        %v3252 = vadd.f32 %v3139, %v3251
        %v3253 = vpop.f32.mrb[0].mxu0
        %v3254 = vadd.f32 %v3141, %v3253
        %v3255 = vpop.f32.mrb[0].mxu0
        %v3256 = vadd.f32 %v3143, %v3255
        %3257 = vmatprep.mubr.bf16.mxu0 0
        %3258 = vmatmul.mubr.bf16.gmra.mrb[0].mxu0 %v825
        %v3259 = vpop.f32.mrb[0].mxu0
        %v3260 = vadd.f32 %v3147, %v3259
        %v3261 = vpop.f32.mrb[0].mxu0
        %v3262 = vadd.f32 %v3149, %v3261
        %v3263 = vpop.f32.mrb[0].mxu0
        %v3264 = vadd.f32 %v3151, %v3263
        %v3265 = vpop.f32.mrb[0].mxu0
        %v3266 = vadd.f32 %v3153, %v3265
        %3267 = vmatprep.mubr.bf16.mxu0 0
        %3268 = vmatmul.mubr.bf16.gmra.mrb[0].mxu0 %v828
        %v3269 = vpop.f32.mrb[0].mxu0
        %v3270 = vadd.f32 %v3157, %v3269
        %v3271 = vpop.f32.mrb[0].mxu0
        %v3272 = vadd.f32 %v3159, %v3271
        %v3273 = vpop.f32.mrb[0].mxu0
        %v3274 = vadd.f32 %v3161, %v3273
        %v3275 = vpop.f32.mrb[0].mxu0
        %v3276 = vadd.f32 %v3163, %v3275
        %3277 = vmatprep.mubr.bf16.mxu0 0
        %3278 = vmatmul.mubr.bf16.gmra.mrb[0].mxu0 %v831
        %v3279 = vpop.f32.mrb[0].mxu0
        %v3280 = vadd.f32 %v3167, %v3279
        %v3281 = vpop.f32.mrb[0].mxu0
        %v3282 = vadd.f32 %v3169, %v3281
        %v3283 = vpop.f32.mrb[0].mxu0
        %v3284 = vadd.f32 %v3171, %v3283
        %v3285 = vpop.f32.mrb[0].mxu0
        %v3286 = vadd.f32 %v3173, %v3285
        %3287 = vmatprep.mubr.bf16.mxu0 0
        %3288 = vmatmul.mubr.bf16.gmra.mrb[0].mxu0 %v834
        %v3289 = vpop.f32.mrb[0].mxu0
        %v3290 = vadd.f32 %v3177, %v3289
        %v3291 = vpop.f32.mrb[0].mxu0
        %v3292 = vadd.f32 %v3179, %v3291
        %v3293 = vpop.f32.mrb[0].mxu0
        %v3294 = vadd.f32 %v3181, %v3293
        %v3295 = vpop.f32.mrb[0].mxu0
        %v3296 = vadd.f32 %v3183, %v3295
        %3297 = vmatprep.mubr.bf16.mxu0 0
        %3298 = vmatmul.mubr.bf16.gmra.mrb[0].mxu0 %v837
        %v3299 = vpop.f32.mrb[0].mxu0
        %v3300 = vadd.f32 %v3187, %v3299
        %v3301 = vpop.f32.mrb[0].mxu0
        %v3302 = vadd.f32 %v3189, %v3301
        %v3303 = vpop.f32.mrb[0].mxu0
        %v3304 = vadd.f32 %v3191, %v3303
        %v3305 = vpop.f32.mrb[0].mxu0
        %v3306 = vadd.f32 %v3193, %v3305
        %3307 = vdwg.mxu0
        %3308 = vmatprep.subr.bf16.mxu0 %v2061
        %3309 = vmatpush1.bf16.msra.mxu0 %v2060
        %3310 = vmatprep.subr.bf16.mxu0 %v2073
        %3311 = vmatpush1.bf16.msra.mxu0 %v2072
        %3312 = vmatprep.subr.bf16.mxu0 %v2085
        %3313 = vmatpush1.bf16.msra.mxu0 %v2084
        %3314 = vmatprep.subr.bf16.mxu0 %v2097
        %3315 = vmatpush1.bf16.msra.mxu0 %v2096
        %3316 = vmatprep.subr.bf16.mxu0 %v2109
        %3317 = vmatpush1.bf16.msra.mxu0 %v2108
        %3318 = vmatprep.subr.bf16.mxu0 %v2121
        %3319 = vmatpush1.bf16.msra.mxu0 %v2120
        %3320 = vmatprep.subr.bf16.mxu0 %v2133
        %3321 = vmatpush1.bf16.msra.mxu0 %v2132
        %3322 = vmatprep.subr.bf16.mxu0 %v2145
        %3323 = vmatpush1.bf16.msra.mxu0 %v2144
        %3324 = vmatprep.subr.bf16.mxu0 %v2157
        %3325 = vmatpush1.bf16.msra.mxu0 %v2156
        %3326 = vmatprep.subr.bf16.mxu0 %v2169
        %3327 = vmatpush1.bf16.msra.mxu0 %v2168
        %3328 = vmatprep.subr.bf16.mxu0 %v2181
        %3329 = vmatpush1.bf16.msra.mxu0 %v2180
        %3330 = vmatprep.subr.bf16.mxu0 %v2193
        %3331 = vmatpush1.bf16.msra.mxu0 %v2192
        %3332 = vmatprep.subr.bf16.mxu0 %v2205
        %3333 = vmatpush1.bf16.msra.mxu0 %v2204
        %3334 = vmatprep.subr.bf16.mxu0 %v2217
        %3335 = vmatpush1.bf16.msra.mxu0 %v2216
        %3336 = vmatprep.subr.bf16.mxu0 %v2229
        %3337 = vmatpush1.bf16.msra.mxu0 %v2228
        %3338 = vmatprep.subr.bf16.mxu0 %v2241
        %3339 = vmatpush1.bf16.msra.mxu0 %v2240
        %3340 = vmatprep.mubr.bf16.mxu0 %v815
        %3341 = vmatmul.mubr.bf16.gmra.mrb[0].mxu0 %v814
        %v3342 = vpop.f32.mrb[0].mxu0
        %v3343 = vadd.f32 %v1157, %v3342
        %v3344 = vpop.f32.mrb[0].mxu0
        %v3345 = vadd.f32 %v1161, %v3344
        %v3346 = vpop.f32.mrb[0].mxu0
        %v3347 = vadd.f32 %v1157, %v3346
        %v3348 = vpop.f32.mrb[0].mxu0
        %v3349 = vadd.f32 %v1161, %v3348
        %3350 = vmatprep.mubr.bf16.mxu0 %v818
        %3351 = vmatmul.mubr.bf16.gmra.mrb[0].mxu0 %v817
        %v3352 = vpop.f32.mrb[0].mxu0
        %v3353 = vadd.f32 %v1157, %v3352
        %v3354 = vpop.f32.mrb[0].mxu0
        %v3355 = vadd.f32 %v1161, %v3354
        %v3356 = vpop.f32.mrb[0].mxu0
        %v3357 = vadd.f32 %v1157, %v3356
        %v3358 = vpop.f32.mrb[0].mxu0
        %v3359 = vadd.f32 %v1161, %v3358
        %3360 = vmatprep.mubr.bf16.mxu0 %v821
        %3361 = vmatmul.mubr.bf16.gmra.mrb[0].mxu0 %v820
        %v3362 = vpop.f32.mrb[0].mxu0
        %v3363 = vadd.f32 %v1157, %v3362
        %v3364 = vpop.f32.mrb[0].mxu0
        %v3365 = vadd.f32 %v1161, %v3364
        %v3366 = vpop.f32.mrb[0].mxu0
        %v3367 = vadd.f32 %v1157, %v3366
        %v3368 = vpop.f32.mrb[0].mxu0
        %v3369 = vadd.f32 %v1161, %v3368
        %3370 = vmatprep.mubr.bf16.mxu0 %v824
        %3371 = vmatmul.mubr.bf16.gmra.mrb[0].mxu0 %v823
        %v3372 = vpop.f32.mrb[0].mxu0
        %v3373 = vadd.f32 %v1157, %v3372
        %v3374 = vpop.f32.mrb[0].mxu0
        %v3375 = vadd.f32 %v1161, %v3374
        %v3376 = vpop.f32.mrb[0].mxu0
        %v3377 = vadd.f32 %v1157, %v3376
        %v3378 = vpop.f32.mrb[0].mxu0
        %v3379 = vadd.f32 %v1161, %v3378
        %3380 = vmatprep.mubr.bf16.mxu0 %v827
        %3381 = vmatmul.mubr.bf16.gmra.mrb[0].mxu0 %v826
        %v3382 = vpop.f32.mrb[0].mxu0
        %v3383 = vadd.f32 %v1157, %v3382
        %v3384 = vpop.f32.mrb[0].mxu0
        %v3385 = vadd.f32 %v1161, %v3384
        %v3386 = vpop.f32.mrb[0].mxu0
        %v3387 = vadd.f32 %v1157, %v3386
        %v3388 = vpop.f32.mrb[0].mxu0
        %v3389 = vadd.f32 %v1161, %v3388
        %3390 = vmatprep.mubr.bf16.mxu0 %v830
        %3391 = vmatmul.mubr.bf16.gmra.mrb[0].mxu0 %v829
        %v3392 = vpop.f32.mrb[0].mxu0
        %v3393 = vadd.f32 %v1157, %v3392
        %v3394 = vpop.f32.mrb[0].mxu0
        %v3395 = vadd.f32 %v1161, %v3394
        %v3396 = vpop.f32.mrb[0].mxu0
        %v3397 = vadd.f32 %v1157, %v3396
        %v3398 = vpop.f32.mrb[0].mxu0
        %v3399 = vadd.f32 %v1161, %v3398
        %3400 = vmatprep.mubr.bf16.mxu0 %v833
        %3401 = vmatmul.mubr.bf16.gmra.mrb[0].mxu0 %v832
        %v3402 = vpop.f32.mrb[0].mxu0
        %v3403 = vadd.f32 %v1157, %v3402
        %v3404 = vpop.f32.mrb[0].mxu0
        %v3405 = vadd.f32 %v1161, %v3404
        %v3406 = vpop.f32.mrb[0].mxu0
        %v3407 = vadd.f32 %v1157, %v3406
        %v3408 = vpop.f32.mrb[0].mxu0
        %v3409 = vadd.f32 %v1161, %v3408
        %3410 = vmatprep.mubr.bf16.mxu0 %v836
        %3411 = vmatmul.mubr.bf16.gmra.mrb[0].mxu0 %v835
        %v3412 = vpop.f32.mrb[0].mxu0
        %v3413 = vadd.f32 %v1157, %v3412
        %v3414 = vpop.f32.mrb[0].mxu0
        %v3415 = vadd.f32 %v1161, %v3414
        %v3416 = vpop.f32.mrb[0].mxu0
        %v3417 = vadd.f32 %v1157, %v3416
        %v3418 = vpop.f32.mrb[0].mxu0
        %v3419 = vadd.f32 %v1161, %v3418
        %3420 = vdwg.mxu0
        %3421 = vmatprep.subr.bf16.mxu0 %v2253
        %3422 = vmatpush1.bf16.msra.mxu0 %v2252
        %3423 = vmatprep.subr.bf16.mxu0 %v2265
        %3424 = vmatpush1.bf16.msra.mxu0 %v2264
        %3425 = vmatprep.subr.bf16.mxu0 %v2277
        %3426 = vmatpush1.bf16.msra.mxu0 %v2276
        %3427 = vmatprep.subr.bf16.mxu0 %v2289
        %3428 = vmatpush1.bf16.msra.mxu0 %v2288
        %3429 = vmatprep.subr.bf16.mxu0 %v2301
        %3430 = vmatpush1.bf16.msra.mxu0 %v2300
        %3431 = vmatprep.subr.bf16.mxu0 %v2313
        %3432 = vmatpush1.bf16.msra.mxu0 %v2312
        %3433 = vmatprep.subr.bf16.mxu0 %v2325
        %3434 = vmatpush1.bf16.msra.mxu0 %v2324
        %3435 = vmatprep.subr.bf16.mxu0 %v2337
        %3436 = vmatpush1.bf16.msra.mxu0 %v2336
        %3437 = vmatprep.subr.bf16.mxu0 0
        %3438 = vmatpush1.bf16.msra.mxu0 0
        %3439 = vmatprep.subr.bf16.mxu0 0
        %3440 = vmatpush1.bf16.msra.mxu0 0
        %3441 = vmatprep.subr.bf16.mxu0 0
        %3442 = vmatpush1.bf16.msra.mxu0 0
        %3443 = vmatprep.subr.bf16.mxu0 0
        %3444 = vmatpush1.bf16.msra.mxu0 0
        %3445 = vmatprep.subr.bf16.mxu0 0
        %3446 = vmatpush1.bf16.msra.mxu0 0
        %3447 = vmatprep.subr.bf16.mxu0 0
        %3448 = vmatpush1.bf16.msra.mxu0 0
        %3449 = vmatprep.subr.bf16.mxu0 0
        %3450 = vmatpush1.bf16.msra.mxu0 0
        %3451 = vmatprep.subr.bf16.mxu0 0
        %3452 = vmatpush1.bf16.msra.mxu0 0
        %3453 = vmatprep.mubr.bf16.mxu0 0
        %3454 = vmatmul.mubr.bf16.gmra.mrb[0].mxu0 %v816
        %v3455 = vpop.f32.mrb[0].mxu0
        %v3456 = vadd.f32 %v3343, %v3455
        %v3457 = vpop.f32.mrb[0].mxu0
        %v3458 = vadd.f32 %v3345, %v3457
        %v3459 = vpop.f32.mrb[0].mxu0
        %v3460 = vadd.f32 %v3347, %v3459
        %v3461 = vpop.f32.mrb[0].mxu0
        %v3462 = vadd.f32 %v3349, %v3461
        %3463 = vmatprep.mubr.bf16.mxu0 0
        %3464 = vmatmul.mubr.bf16.gmra.mrb[0].mxu0 %v819
        %v3465 = vpop.f32.mrb[0].mxu0
        %v3466 = vadd.f32 %v3353, %v3465
        %v3467 = vpop.f32.mrb[0].mxu0
        %v3468 = vadd.f32 %v3355, %v3467
        %v3469 = vpop.f32.mrb[0].mxu0
        %v3470 = vadd.f32 %v3357, %v3469
        %v3471 = vpop.f32.mrb[0].mxu0
        %v3472 = vadd.f32 %v3359, %v3471
        %3473 = vmatprep.mubr.bf16.mxu0 0
        %3474 = vmatmul.mubr.bf16.gmra.mrb[0].mxu0 %v822
        %v3475 = vpop.f32.mrb[0].mxu0
        %v3476 = vadd.f32 %v3363, %v3475
        %v3477 = vpop.f32.mrb[0].mxu0
        %v3478 = vadd.f32 %v3365, %v3477
        %v3479 = vpop.f32.mrb[0].mxu0
        %v3480 = vadd.f32 %v3367, %v3479
        %v3481 = vpop.f32.mrb[0].mxu0
        %v3482 = vadd.f32 %v3369, %v3481
        %3483 = vmatprep.mubr.bf16.mxu0 0
        %3484 = vmatmul.mubr.bf16.gmra.mrb[0].mxu0 %v825
        %v3485 = vpop.f32.mrb[0].mxu0
        %v3486 = vadd.f32 %v3373, %v3485
        %v3487 = vpop.f32.mrb[0].mxu0
        %v3488 = vadd.f32 %v3375, %v3487
        %v3489 = vpop.f32.mrb[0].mxu0
        %v3490 = vadd.f32 %v3377, %v3489
        %v3491 = vpop.f32.mrb[0].mxu0
        %v3492 = vadd.f32 %v3379, %v3491
        %3493 = vmatprep.mubr.bf16.mxu0 0
        %3494 = vmatmul.mubr.bf16.gmra.mrb[0].mxu0 %v828
        %v3495 = vpop.f32.mrb[0].mxu0
        %v3496 = vadd.f32 %v3383, %v3495
        %v3497 = vpop.f32.mrb[0].mxu0
        %v3498 = vadd.f32 %v3385, %v3497
        %v3499 = vpop.f32.mrb[0].mxu0
        %v3500 = vadd.f32 %v3387, %v3499
        %v3501 = vpop.f32.mrb[0].mxu0
        %v3502 = vadd.f32 %v3389, %v3501
        %3503 = vmatprep.mubr.bf16.mxu0 0
        %3504 = vmatmul.mubr.bf16.gmra.mrb[0].mxu0 %v831
        %v3505 = vpop.f32.mrb[0].mxu0
        %v3506 = vadd.f32 %v3393, %v3505
        %v3507 = vpop.f32.mrb[0].mxu0
        %v3508 = vadd.f32 %v3395, %v3507
        %v3509 = vpop.f32.mrb[0].mxu0
        %v3510 = vadd.f32 %v3397, %v3509
        %v3511 = vpop.f32.mrb[0].mxu0
        %v3512 = vadd.f32 %v3399, %v3511
        %3513 = vmatprep.mubr.bf16.mxu0 0
        %3514 = vmatmul.mubr.bf16.gmra.mrb[0].mxu0 %v834
        %v3515 = vpop.f32.mrb[0].mxu0
        %v3516 = vadd.f32 %v3403, %v3515
        %v3517 = vpop.f32.mrb[0].mxu0
        %v3518 = vadd.f32 %v3405, %v3517
        %v3519 = vpop.f32.mrb[0].mxu0
        %v3520 = vadd.f32 %v3407, %v3519
        %v3521 = vpop.f32.mrb[0].mxu0
        %v3522 = vadd.f32 %v3409, %v3521
        %3523 = vmatprep.mubr.bf16.mxu0 0
        %3524 = vmatmul.mubr.bf16.gmra.mrb[0].mxu0 %v837
        %v3525 = vpop.f32.mrb[0].mxu0
        %v3526 = vadd.f32 %v3413, %v3525
        %v3527 = vpop.f32.mrb[0].mxu0
        %v3528 = vadd.f32 %v3415, %v3527
        %v3529 = vpop.f32.mrb[0].mxu0
        %v3530 = vadd.f32 %v3417, %v3529
        %v3531 = vpop.f32.mrb[0].mxu0
        %v3532 = vadd.f32 %v3419, %v3531
        %3533 = vdwg.mxu0
        %3534 = vmatprep.subr.bf16.mxu0 %v2063
        %3535 = vmatpush1.bf16.msra.mxu0 %v2062
        %3536 = vmatprep.subr.bf16.mxu0 %v2075
        %3537 = vmatpush1.bf16.msra.mxu0 %v2074
        %3538 = vmatprep.subr.bf16.mxu0 %v2087
        %3539 = vmatpush1.bf16.msra.mxu0 %v2086
        %3540 = vmatprep.subr.bf16.mxu0 %v2099
        %3541 = vmatpush1.bf16.msra.mxu0 %v2098
        %3542 = vmatprep.subr.bf16.mxu0 %v2111
        %3543 = vmatpush1.bf16.msra.mxu0 %v2110
        %3544 = vmatprep.subr.bf16.mxu0 %v2123
        %3545 = vmatpush1.bf16.msra.mxu0 %v2122
        %3546 = vmatprep.subr.bf16.mxu0 %v2135
        %3547 = vmatpush1.bf16.msra.mxu0 %v2134
        %3548 = vmatprep.subr.bf16.mxu0 %v2147
        %3549 = vmatpush1.bf16.msra.mxu0 %v2146
        %3550 = vmatprep.subr.bf16.mxu0 %v2159
        %3551 = vmatpush1.bf16.msra.mxu0 %v2158
        %3552 = vmatprep.subr.bf16.mxu0 %v2171
        %3553 = vmatpush1.bf16.msra.mxu0 %v2170
        %3554 = vmatprep.subr.bf16.mxu0 %v2183
        %3555 = vmatpush1.bf16.msra.mxu0 %v2182
        %3556 = vmatprep.subr.bf16.mxu0 %v2195
        %3557 = vmatpush1.bf16.msra.mxu0 %v2194
        %3558 = vmatprep.subr.bf16.mxu0 %v2207
        %3559 = vmatpush1.bf16.msra.mxu0 %v2206
        %3560 = vmatprep.subr.bf16.mxu0 %v2219
        %3561 = vmatpush1.bf16.msra.mxu0 %v2218
        %3562 = vmatprep.subr.bf16.mxu0 %v2231
        %3563 = vmatpush1.bf16.msra.mxu0 %v2230
        %3564 = vmatprep.subr.bf16.mxu0 %v2243
        %3565 = vmatpush1.bf16.msra.mxu0 %v2242
        %3566 = vmatprep.mubr.bf16.mxu0 %v815
        %3567 = vmatmul.mubr.bf16.gmra.mrb[0].mxu0 %v814
        %v3568 = vpop.f32.mrb[0].mxu0
        %v3569 = vadd.f32 %v1165, %v3568
        %v3570 = vpop.f32.mrb[0].mxu0
        %v3571 = vadd.f32 %v1169, %v3570
        %v3572 = vpop.f32.mrb[0].mxu0
        %v3573 = vadd.f32 %v1165, %v3572
        %v3574 = vpop.f32.mrb[0].mxu0
        %v3575 = vadd.f32 %v1169, %v3574
        %3576 = vmatprep.mubr.bf16.mxu0 %v818
        %3577 = vmatmul.mubr.bf16.gmra.mrb[0].mxu0 %v817
        %v3578 = vpop.f32.mrb[0].mxu0
        %v3579 = vadd.f32 %v1165, %v3578
        %v3580 = vpop.f32.mrb[0].mxu0
        %v3581 = vadd.f32 %v1169, %v3580
        %v3582 = vpop.f32.mrb[0].mxu0
        %v3583 = vadd.f32 %v1165, %v3582
        %v3584 = vpop.f32.mrb[0].mxu0
        %v3585 = vadd.f32 %v1169, %v3584
        %3586 = vmatprep.mubr.bf16.mxu0 %v821
        %3587 = vmatmul.mubr.bf16.gmra.mrb[0].mxu0 %v820
        %v3588 = vpop.f32.mrb[0].mxu0
        %v3589 = vadd.f32 %v1165, %v3588
        %v3590 = vpop.f32.mrb[0].mxu0
        %v3591 = vadd.f32 %v1169, %v3590
        %v3592 = vpop.f32.mrb[0].mxu0
        %v3593 = vadd.f32 %v1165, %v3592
        %v3594 = vpop.f32.mrb[0].mxu0
        %v3595 = vadd.f32 %v1169, %v3594
        %3596 = vmatprep.mubr.bf16.mxu0 %v824
        %3597 = vmatmul.mubr.bf16.gmra.mrb[0].mxu0 %v823
        %v3598 = vpop.f32.mrb[0].mxu0
        %v3599 = vadd.f32 %v1165, %v3598
        %v3600 = vpop.f32.mrb[0].mxu0
        %v3601 = vadd.f32 %v1169, %v3600
        %v3602 = vpop.f32.mrb[0].mxu0
        %v3603 = vadd.f32 %v1165, %v3602
        %v3604 = vpop.f32.mrb[0].mxu0
        %v3605 = vadd.f32 %v1169, %v3604
        %3606 = vmatprep.mubr.bf16.mxu0 %v827
        %3607 = vmatmul.mubr.bf16.gmra.mrb[0].mxu0 %v826
        %v3608 = vpop.f32.mrb[0].mxu0
        %v3609 = vadd.f32 %v1165, %v3608
        %v3610 = vpop.f32.mrb[0].mxu0
        %v3611 = vadd.f32 %v1169, %v3610
        %v3612 = vpop.f32.mrb[0].mxu0
        %v3613 = vadd.f32 %v1165, %v3612
        %v3614 = vpop.f32.mrb[0].mxu0
        %v3615 = vadd.f32 %v1169, %v3614
        %3616 = vmatprep.mubr.bf16.mxu0 %v830
        %3617 = vmatmul.mubr.bf16.gmra.mrb[0].mxu0 %v829
        %v3618 = vpop.f32.mrb[0].mxu0
        %v3619 = vadd.f32 %v1165, %v3618
        %v3620 = vpop.f32.mrb[0].mxu0
        %v3621 = vadd.f32 %v1169, %v3620
        %v3622 = vpop.f32.mrb[0].mxu0
        %v3623 = vadd.f32 %v1165, %v3622
        %v3624 = vpop.f32.mrb[0].mxu0
        %v3625 = vadd.f32 %v1169, %v3624
        %3626 = vmatprep.mubr.bf16.mxu0 %v833
        %3627 = vmatmul.mubr.bf16.gmra.mrb[0].mxu0 %v832
        %v3628 = vpop.f32.mrb[0].mxu0
        %v3629 = vadd.f32 %v1165, %v3628
        %v3630 = vpop.f32.mrb[0].mxu0
        %v3631 = vadd.f32 %v1169, %v3630
        %v3632 = vpop.f32.mrb[0].mxu0
        %v3633 = vadd.f32 %v1165, %v3632
        %v3634 = vpop.f32.mrb[0].mxu0
        %v3635 = vadd.f32 %v1169, %v3634
        %3636 = vmatprep.mubr.bf16.mxu0 %v836
        %3637 = vmatmul.mubr.bf16.gmra.mrb[0].mxu0 %v835
        %v3638 = vpop.f32.mrb[0].mxu0
        %v3639 = vadd.f32 %v1165, %v3638
        %v3640 = vpop.f32.mrb[0].mxu0
        %v3641 = vadd.f32 %v1169, %v3640
        %v3642 = vpop.f32.mrb[0].mxu0
        %v3643 = vadd.f32 %v1165, %v3642
        %v3644 = vpop.f32.mrb[0].mxu0
        %v3645 = vadd.f32 %v1169, %v3644
        %3646 = vdwg.mxu0
        %3647 = vmatprep.subr.bf16.mxu0 %v2255
        %3648 = vmatpush1.bf16.msra.mxu0 %v2254
        %3649 = vmatprep.subr.bf16.mxu0 %v2267
        %3650 = vmatpush1.bf16.msra.mxu0 %v2266
        %3651 = vmatprep.subr.bf16.mxu0 %v2279
        %3652 = vmatpush1.bf16.msra.mxu0 %v2278
        %3653 = vmatprep.subr.bf16.mxu0 %v2291
        %3654 = vmatpush1.bf16.msra.mxu0 %v2290
        %3655 = vmatprep.subr.bf16.mxu0 %v2303
        %3656 = vmatpush1.bf16.msra.mxu0 %v2302
        %3657 = vmatprep.subr.bf16.mxu0 %v2315
        %3658 = vmatpush1.bf16.msra.mxu0 %v2314
        %3659 = vmatprep.subr.bf16.mxu0 %v2327
        %3660 = vmatpush1.bf16.msra.mxu0 %v2326
        %3661 = vmatprep.subr.bf16.mxu0 %v2339
        %3662 = vmatpush1.bf16.msra.mxu0 %v2338
        %3663 = vmatprep.subr.bf16.mxu0 0
        %3664 = vmatpush1.bf16.msra.mxu0 0
        %3665 = vmatprep.subr.bf16.mxu0 0
        %3666 = vmatpush1.bf16.msra.mxu0 0
        %3667 = vmatprep.subr.bf16.mxu0 0
        %3668 = vmatpush1.bf16.msra.mxu0 0
        %3669 = vmatprep.subr.bf16.mxu0 0
        %3670 = vmatpush1.bf16.msra.mxu0 0
        %3671 = vmatprep.subr.bf16.mxu0 0
        %3672 = vmatpush1.bf16.msra.mxu0 0
        %3673 = vmatprep.subr.bf16.mxu0 0
        %3674 = vmatpush1.bf16.msra.mxu0 0
        %3675 = vmatprep.subr.bf16.mxu0 0
        %3676 = vmatpush1.bf16.msra.mxu0 0
        %3677 = vmatprep.subr.bf16.mxu0 0
        %3678 = vmatpush1.bf16.msra.mxu0 0
        %3679 = vmatprep.mubr.bf16.mxu0 0
        %3680 = vmatmul.mubr.bf16.gmra.mrb[0].mxu0 %v816
        %v3681 = vpop.f32.mrb[0].mxu0
        %v3682 = vadd.f32 %v3569, %v3681
        %v3683 = vpop.f32.mrb[0].mxu0
        %v3684 = vadd.f32 %v3571, %v3683
        %v3685 = vpop.f32.mrb[0].mxu0
        %v3686 = vadd.f32 %v3573, %v3685
        %v3687 = vpop.f32.mrb[0].mxu0
        %v3688 = vadd.f32 %v3575, %v3687
        %3689 = vmatprep.mubr.bf16.mxu0 0
        %3690 = vmatmul.mubr.bf16.gmra.mrb[0].mxu0 %v819
        %v3691 = vpop.f32.mrb[0].mxu0
        %v3692 = vadd.f32 %v3579, %v3691
        %v3693 = vpop.f32.mrb[0].mxu0
        %v3694 = vadd.f32 %v3581, %v3693
        %v3695 = vpop.f32.mrb[0].mxu0
        %v3696 = vadd.f32 %v3583, %v3695
        %v3697 = vpop.f32.mrb[0].mxu0
        %v3698 = vadd.f32 %v3585, %v3697
        %3699 = vmatprep.mubr.bf16.mxu0 0
        %3700 = vmatmul.mubr.bf16.gmra.mrb[0].mxu0 %v822
        %v3701 = vpop.f32.mrb[0].mxu0
        %v3702 = vadd.f32 %v3589, %v3701
        %v3703 = vpop.f32.mrb[0].mxu0
        %v3704 = vadd.f32 %v3591, %v3703
        %v3705 = vpop.f32.mrb[0].mxu0
        %v3706 = vadd.f32 %v3593, %v3705
        %v3707 = vpop.f32.mrb[0].mxu0
        %v3708 = vadd.f32 %v3595, %v3707
        %3709 = vmatprep.mubr.bf16.mxu0 0
        %3710 = vmatmul.mubr.bf16.gmra.mrb[0].mxu0 %v825
        %v3711 = vpop.f32.mrb[0].mxu0
        %v3712 = vadd.f32 %v3599, %v3711
        %v3713 = vpop.f32.mrb[0].mxu0
        %v3714 = vadd.f32 %v3601, %v3713
        %v3715 = vpop.f32.mrb[0].mxu0
        %v3716 = vadd.f32 %v3603, %v3715
        %v3717 = vpop.f32.mrb[0].mxu0
        %v3718 = vadd.f32 %v3605, %v3717
        %3719 = vmatprep.mubr.bf16.mxu0 0
        %3720 = vmatmul.mubr.bf16.gmra.mrb[0].mxu0 %v828
        %v3721 = vpop.f32.mrb[0].mxu0
        %v3722 = vadd.f32 %v3609, %v3721
        %v3723 = vpop.f32.mrb[0].mxu0
        %v3724 = vadd.f32 %v3611, %v3723
        %v3725 = vpop.f32.mrb[0].mxu0
        %v3726 = vadd.f32 %v3613, %v3725
        %v3727 = vpop.f32.mrb[0].mxu0
        %v3728 = vadd.f32 %v3615, %v3727
        %3729 = vmatprep.mubr.bf16.mxu0 0
        %3730 = vmatmul.mubr.bf16.gmra.mrb[0].mxu0 %v831
        %v3731 = vpop.f32.mrb[0].mxu0
        %v3732 = vadd.f32 %v3619, %v3731
        %v3733 = vpop.f32.mrb[0].mxu0
        %v3734 = vadd.f32 %v3621, %v3733
        %v3735 = vpop.f32.mrb[0].mxu0
        %v3736 = vadd.f32 %v3623, %v3735
        %v3737 = vpop.f32.mrb[0].mxu0
        %v3738 = vadd.f32 %v3625, %v3737
        %3739 = vmatprep.mubr.bf16.mxu0 0
        %3740 = vmatmul.mubr.bf16.gmra.mrb[0].mxu0 %v834
        %v3741 = vpop.f32.mrb[0].mxu0
        %v3742 = vadd.f32 %v3629, %v3741
        %v3743 = vpop.f32.mrb[0].mxu0
        %v3744 = vadd.f32 %v3631, %v3743
        %v3745 = vpop.f32.mrb[0].mxu0
        %v3746 = vadd.f32 %v3633, %v3745
        %v3747 = vpop.f32.mrb[0].mxu0
        %v3748 = vadd.f32 %v3635, %v3747
        %3749 = vmatprep.mubr.bf16.mxu0 0
        %3750 = vmatmul.mubr.bf16.gmra.mrb[0].mxu0 %v837
        %v3751 = vpop.f32.mrb[0].mxu0
        %v3752 = vadd.f32 %v3639, %v3751
        %v3753 = vpop.f32.mrb[0].mxu0
        %v3754 = vadd.f32 %v3641, %v3753
        %v3755 = vpop.f32.mrb[0].mxu0
        %v3756 = vadd.f32 %v3643, %v3755
        %v3757 = vpop.f32.mrb[0].mxu0
        %v3758 = vadd.f32 %v3645, %v3757
        %3759 = vdwg.mxu0
        %3760 = vmatprep.subr.bf16.mxu0 %v2065
        %3761 = vmatpush1.bf16.msra.mxu0 %v2064
        %3762 = vmatprep.subr.bf16.mxu0 %v2077
        %3763 = vmatpush1.bf16.msra.mxu0 %v2076
        %3764 = vmatprep.subr.bf16.mxu0 %v2089
        %3765 = vmatpush1.bf16.msra.mxu0 %v2088
        %3766 = vmatprep.subr.bf16.mxu0 %v2101
        %3767 = vmatpush1.bf16.msra.mxu0 %v2100
        %3768 = vmatprep.subr.bf16.mxu0 %v2113
        %3769 = vmatpush1.bf16.msra.mxu0 %v2112
        %3770 = vmatprep.subr.bf16.mxu0 %v2125
        %3771 = vmatpush1.bf16.msra.mxu0 %v2124
        %3772 = vmatprep.subr.bf16.mxu0 %v2137
        %3773 = vmatpush1.bf16.msra.mxu0 %v2136
        %3774 = vmatprep.subr.bf16.mxu0 %v2149
        %3775 = vmatpush1.bf16.msra.mxu0 %v2148
        %3776 = vmatprep.subr.bf16.mxu0 %v2161
        %3777 = vmatpush1.bf16.msra.mxu0 %v2160
        %3778 = vmatprep.subr.bf16.mxu0 %v2173
        %3779 = vmatpush1.bf16.msra.mxu0 %v2172
        %3780 = vmatprep.subr.bf16.mxu0 %v2185
        %3781 = vmatpush1.bf16.msra.mxu0 %v2184
        %3782 = vmatprep.subr.bf16.mxu0 %v2197
        %3783 = vmatpush1.bf16.msra.mxu0 %v2196
        %3784 = vmatprep.subr.bf16.mxu0 %v2209
        %3785 = vmatpush1.bf16.msra.mxu0 %v2208
        %3786 = vmatprep.subr.bf16.mxu0 %v2221
        %3787 = vmatpush1.bf16.msra.mxu0 %v2220
        %3788 = vmatprep.subr.bf16.mxu0 %v2233
        %3789 = vmatpush1.bf16.msra.mxu0 %v2232
        %3790 = vmatprep.subr.bf16.mxu0 %v2245
        %3791 = vmatpush1.bf16.msra.mxu0 %v2244
        %3792 = vmatprep.mubr.bf16.mxu0 %v815
        %3793 = vmatmul.mubr.bf16.gmra.mrb[0].mxu0 %v814
        %v3794 = vpop.f32.mrb[0].mxu0
        %v3795 = vadd.f32 %v1173, %v3794
        %v3796 = vpop.f32.mrb[0].mxu0
        %v3797 = vadd.f32 %v1177, %v3796
        %v3798 = vpop.f32.mrb[0].mxu0
        %v3799 = vadd.f32 %v1173, %v3798
        %v3800 = vpop.f32.mrb[0].mxu0
        %v3801 = vadd.f32 %v1177, %v3800
        %3802 = vmatprep.mubr.bf16.mxu0 %v818
        %3803 = vmatmul.mubr.bf16.gmra.mrb[0].mxu0 %v817
        %v3804 = vpop.f32.mrb[0].mxu0
        %v3805 = vadd.f32 %v1173, %v3804
        %v3806 = vpop.f32.mrb[0].mxu0
        %v3807 = vadd.f32 %v1177, %v3806
        %v3808 = vpop.f32.mrb[0].mxu0
        %v3809 = vadd.f32 %v1173, %v3808
        %v3810 = vpop.f32.mrb[0].mxu0
        %v3811 = vadd.f32 %v1177, %v3810
        %3812 = vmatprep.mubr.bf16.mxu0 %v821
        %3813 = vmatmul.mubr.bf16.gmra.mrb[0].mxu0 %v820
        %v3814 = vpop.f32.mrb[0].mxu0
        %v3815 = vadd.f32 %v1173, %v3814
        %v3816 = vpop.f32.mrb[0].mxu0
        %v3817 = vadd.f32 %v1177, %v3816
        %v3818 = vpop.f32.mrb[0].mxu0
        %v3819 = vadd.f32 %v1173, %v3818
        %v3820 = vpop.f32.mrb[0].mxu0
        %v3821 = vadd.f32 %v1177, %v3820
        %3822 = vmatprep.mubr.bf16.mxu0 %v824
        %3823 = vmatmul.mubr.bf16.gmra.mrb[0].mxu0 %v823
        %v3824 = vpop.f32.mrb[0].mxu0
        %v3825 = vadd.f32 %v1173, %v3824
        %v3826 = vpop.f32.mrb[0].mxu0
        %v3827 = vadd.f32 %v1177, %v3826
        %v3828 = vpop.f32.mrb[0].mxu0
        %v3829 = vadd.f32 %v1173, %v3828
        %v3830 = vpop.f32.mrb[0].mxu0
        %v3831 = vadd.f32 %v1177, %v3830
        %3832 = vmatprep.mubr.bf16.mxu0 %v827
        %3833 = vmatmul.mubr.bf16.gmra.mrb[0].mxu0 %v826
        %v3834 = vpop.f32.mrb[0].mxu0
        %v3835 = vadd.f32 %v1173, %v3834
        %v3836 = vpop.f32.mrb[0].mxu0
        %v3837 = vadd.f32 %v1177, %v3836
        %v3838 = vpop.f32.mrb[0].mxu0
        %v3839 = vadd.f32 %v1173, %v3838
        %v3840 = vpop.f32.mrb[0].mxu0
        %v3841 = vadd.f32 %v1177, %v3840
        %3842 = vmatprep.mubr.bf16.mxu0 %v830
        %3843 = vmatmul.mubr.bf16.gmra.mrb[0].mxu0 %v829
        %v3844 = vpop.f32.mrb[0].mxu0
        %v3845 = vadd.f32 %v1173, %v3844
        %v3846 = vpop.f32.mrb[0].mxu0
        %v3847 = vadd.f32 %v1177, %v3846
        %v3848 = vpop.f32.mrb[0].mxu0
        %v3849 = vadd.f32 %v1173, %v3848
        %v3850 = vpop.f32.mrb[0].mxu0
        %v3851 = vadd.f32 %v1177, %v3850
        %3852 = vmatprep.mubr.bf16.mxu0 %v833
        %3853 = vmatmul.mubr.bf16.gmra.mrb[0].mxu0 %v832
        %v3854 = vpop.f32.mrb[0].mxu0
        %v3855 = vadd.f32 %v1173, %v3854
        %v3856 = vpop.f32.mrb[0].mxu0
        %v3857 = vadd.f32 %v1177, %v3856
        %v3858 = vpop.f32.mrb[0].mxu0
        %v3859 = vadd.f32 %v1173, %v3858
        %v3860 = vpop.f32.mrb[0].mxu0
        %v3861 = vadd.f32 %v1177, %v3860
        %3862 = vmatprep.mubr.bf16.mxu0 %v836
        %3863 = vmatmul.mubr.bf16.gmra.mrb[0].mxu0 %v835
        %v3864 = vpop.f32.mrb[0].mxu0
        %v3865 = vadd.f32 %v1173, %v3864
        %v3866 = vpop.f32.mrb[0].mxu0
        %v3867 = vadd.f32 %v1177, %v3866
        %v3868 = vpop.f32.mrb[0].mxu0
        %v3869 = vadd.f32 %v1173, %v3868
        %v3870 = vpop.f32.mrb[0].mxu0
        %v3871 = vadd.f32 %v1177, %v3870
        %3872 = vdwg.mxu0
        %3873 = vmatprep.subr.bf16.mxu0 %v2257
        %3874 = vmatpush1.bf16.msra.mxu0 %v2256
        %3875 = vmatprep.subr.bf16.mxu0 %v2269
        %3876 = vmatpush1.bf16.msra.mxu0 %v2268
        %3877 = vmatprep.subr.bf16.mxu0 %v2281
        %3878 = vmatpush1.bf16.msra.mxu0 %v2280
        %3879 = vmatprep.subr.bf16.mxu0 %v2293
        %3880 = vmatpush1.bf16.msra.mxu0 %v2292
        %3881 = vmatprep.subr.bf16.mxu0 %v2305
        %3882 = vmatpush1.bf16.msra.mxu0 %v2304
        %3883 = vmatprep.subr.bf16.mxu0 %v2317
        %3884 = vmatpush1.bf16.msra.mxu0 %v2316
        %3885 = vmatprep.subr.bf16.mxu0 %v2329
        %3886 = vmatpush1.bf16.msra.mxu0 %v2328
        %3887 = vmatprep.subr.bf16.mxu0 %v2341
        %3888 = vmatpush1.bf16.msra.mxu0 %v2340
        %3889 = vmatprep.subr.bf16.mxu0 0
        %3890 = vmatpush1.bf16.msra.mxu0 0
        %3891 = vmatprep.subr.bf16.mxu0 0
        %3892 = vmatpush1.bf16.msra.mxu0 0
        %3893 = vmatprep.subr.bf16.mxu0 0
        %3894 = vmatpush1.bf16.msra.mxu0 0
        %3895 = vmatprep.subr.bf16.mxu0 0
        %3896 = vmatpush1.bf16.msra.mxu0 0
        %3897 = vmatprep.subr.bf16.mxu0 0
        %3898 = vmatpush1.bf16.msra.mxu0 0
        %3899 = vmatprep.subr.bf16.mxu0 0
        %3900 = vmatpush1.bf16.msra.mxu0 0
        %3901 = vmatprep.subr.bf16.mxu0 0
        %3902 = vmatpush1.bf16.msra.mxu0 0
        %3903 = vmatprep.subr.bf16.mxu0 0
        %3904 = vmatpush1.bf16.msra.mxu0 0
        %3905 = vmatprep.mubr.bf16.mxu0 0
        %3906 = vmatmul.mubr.bf16.gmra.mrb[0].mxu0 %v816
        %v3907 = vpop.f32.mrb[0].mxu0
        %v3908 = vadd.f32 %v3795, %v3907
        %v3909 = vpop.f32.mrb[0].mxu0
        %v3910 = vadd.f32 %v3797, %v3909
        %v3911 = vpop.f32.mrb[0].mxu0
        %v3912 = vadd.f32 %v3799, %v3911
        %v3913 = vpop.f32.mrb[0].mxu0
        %v3914 = vadd.f32 %v3801, %v3913
        %3915 = vmatprep.mubr.bf16.mxu0 0
        %3916 = vmatmul.mubr.bf16.gmra.mrb[0].mxu0 %v819
        %v3917 = vpop.f32.mrb[0].mxu0
        %v3918 = vadd.f32 %v3805, %v3917
        %v3919 = vpop.f32.mrb[0].mxu0
        %v3920 = vadd.f32 %v3807, %v3919
        %v3921 = vpop.f32.mrb[0].mxu0
        %v3922 = vadd.f32 %v3809, %v3921
        %v3923 = vpop.f32.mrb[0].mxu0
        %v3924 = vadd.f32 %v3811, %v3923
        %3925 = vmatprep.mubr.bf16.mxu0 0
        %3926 = vmatmul.mubr.bf16.gmra.mrb[0].mxu0 %v822
        %v3927 = vpop.f32.mrb[0].mxu0
        %v3928 = vadd.f32 %v3815, %v3927
        %v3929 = vpop.f32.mrb[0].mxu0
        %v3930 = vadd.f32 %v3817, %v3929
        %v3931 = vpop.f32.mrb[0].mxu0
        %v3932 = vadd.f32 %v3819, %v3931
        %v3933 = vpop.f32.mrb[0].mxu0
        %v3934 = vadd.f32 %v3821, %v3933
        %3935 = vmatprep.mubr.bf16.mxu0 0
        %3936 = vmatmul.mubr.bf16.gmra.mrb[0].mxu0 %v825
        %v3937 = vpop.f32.mrb[0].mxu0
        %v3938 = vadd.f32 %v3825, %v3937
        %v3939 = vpop.f32.mrb[0].mxu0
        %v3940 = vadd.f32 %v3827, %v3939
        %v3941 = vpop.f32.mrb[0].mxu0
        %v3942 = vadd.f32 %v3829, %v3941
        %v3943 = vpop.f32.mrb[0].mxu0
        %v3944 = vadd.f32 %v3831, %v3943
        %3945 = vmatprep.mubr.bf16.mxu0 0
        %3946 = vmatmul.mubr.bf16.gmra.mrb[0].mxu0 %v828
        %v3947 = vpop.f32.mrb[0].mxu0
        %v3948 = vadd.f32 %v3835, %v3947
        %v3949 = vpop.f32.mrb[0].mxu0
        %v3950 = vadd.f32 %v3837, %v3949
        %v3951 = vpop.f32.mrb[0].mxu0
        %v3952 = vadd.f32 %v3839, %v3951
        %v3953 = vpop.f32.mrb[0].mxu0
        %v3954 = vadd.f32 %v3841, %v3953
        %3955 = vmatprep.mubr.bf16.mxu0 0
        %3956 = vmatmul.mubr.bf16.gmra.mrb[0].mxu0 %v831
        %v3957 = vpop.f32.mrb[0].mxu0
        %v3958 = vadd.f32 %v3845, %v3957
        %v3959 = vpop.f32.mrb[0].mxu0
        %v3960 = vadd.f32 %v3847, %v3959
        %v3961 = vpop.f32.mrb[0].mxu0
        %v3962 = vadd.f32 %v3849, %v3961
        %v3963 = vpop.f32.mrb[0].mxu0
        %v3964 = vadd.f32 %v3851, %v3963
        %3965 = vmatprep.mubr.bf16.mxu0 0
        %3966 = vmatmul.mubr.bf16.gmra.mrb[0].mxu0 %v834
        %v3967 = vpop.f32.mrb[0].mxu0
        %v3968 = vadd.f32 %v3855, %v3967
        %v3969 = vpop.f32.mrb[0].mxu0
        %v3970 = vadd.f32 %v3857, %v3969
        %v3971 = vpop.f32.mrb[0].mxu0
        %v3972 = vadd.f32 %v3859, %v3971
        %v3973 = vpop.f32.mrb[0].mxu0
        %v3974 = vadd.f32 %v3861, %v3973
        %3975 = vmatprep.mubr.bf16.mxu0 0
        %3976 = vmatmul.mubr.bf16.gmra.mrb[0].mxu0 %v837
        %v3977 = vpop.f32.mrb[0].mxu0
        %v3978 = vadd.f32 %v3865, %v3977
        %v3979 = vpop.f32.mrb[0].mxu0
        %v3980 = vadd.f32 %v3867, %v3979
        %v3981 = vpop.f32.mrb[0].mxu0
        %v3982 = vadd.f32 %v3869, %v3981
        %v3983 = vpop.f32.mrb[0].mxu0
        %v3984 = vadd.f32 %v3871, %v3983
        %3985 = vdwg.mxu0
        %3986 = vst [vmem:[%s295] sm:$0xff] %v2778
        %3987 = vst [vmem:[%s295 + $0x8] sm:$0xff] %v2780
        %3988 = vst [vmem:[%s295 + $0x10] sm:$0xff] %v3004
        %3989 = vst [vmem:[%s295 + $0x18] sm:$0xff] %v3006
        %3990 = vst [vmem:[%s295 + $0x20] sm:$0xff] %v3230
        %3991 = vst [vmem:[%s295 + $0x28] sm:$0xff] %v3232
        %3992 = vst [vmem:[%s295 + $0x30] sm:$0xff] %v3456
        %3993 = vst [vmem:[%s295 + $0x38] sm:$0xff] %v3458
        %3994 = vst [vmem:[%s295 + $0x40] sm:$0xff] %v3682
        %3995 = vst [vmem:[%s295 + $0x48] sm:$0xff] %v3684
        %3996 = vst [vmem:[%s295 + $0x50] sm:$0xff] %v3908
        %3997 = vst [vmem:[%s295 + $0x58] sm:$0xff] %v3910
        %3998 = vst [vmem:[%s295 + $0x60] sm:$0xff] %v2782
        %3999 = vst [vmem:[%s295 + $0x68] sm:$0xff] %v2784
        %4000 = vst [vmem:[%s295 + $0x70] sm:$0xff] %v3008
        %4001 = vst [vmem:[%s295 + $0x78] sm:$0xff] %v3010
        %4002 = vst [vmem:[%s295 + $0x80] sm:$0xff] %v3234
        %4003 = vst [vmem:[%s295 + $0x88] sm:$0xff] %v3236
        %4004 = vst [vmem:[%s295 + $0x90] sm:$0xff] %v3460
        %4005 = vst [vmem:[%s295 + $0x98] sm:$0xff] %v3462
        %4006 = vst [vmem:[%s295 + $0xa0] sm:$0xff] %v3686
        %4007 = vst [vmem:[%s295 + $0xa8] sm:$0xff] %v3688
        %4008 = vst [vmem:[%s295 + $0xb0] sm:$0xff] %v3912
        %4009 = vst [vmem:[%s295 + $0xb8] sm:$0xff] %v3914
        %4010 = vst [vmem:[%s295 + $0xc0] sm:$0xff] %v2788
        %4011 = vst [vmem:[%s295 + $0xc8] sm:$0xff] %v2790
        %4012 = vst [vmem:[%s295 + $0xd0] sm:$0xff] %v3014
        %4013 = vst [vmem:[%s295 + $0xd8] sm:$0xff] %v3016
        %4014 = vst [vmem:[%s295 + $0xe0] sm:$0xff] %v3240
        %4015 = vst [vmem:[%s295 + $0xe8] sm:$0xff] %v3242
        %4016 = vst [vmem:[%s295 + $0xf0] sm:$0xff] %v3466
        %4017 = vst [vmem:[%s295 + $0xf8] sm:$0xff] %v3468
        %4018 = vst [vmem:[%s295 + $0x100] sm:$0xff] %v3692
        %4019 = vst [vmem:[%s295 + $0x108] sm:$0xff] %v3694
        %4020 = vst [vmem:[%s295 + $0x110] sm:$0xff] %v3918
        %4021 = vst [vmem:[%s295 + $0x118] sm:$0xff] %v3920
        %4022 = vst [vmem:[%s295 + $0x120] sm:$0xff] %v2792
        %4023 = vst [vmem:[%s295 + $0x128] sm:$0xff] %v2794
        %4024 = vst [vmem:[%s295 + $0x130] sm:$0xff] %v3018
        %4025 = vst [vmem:[%s295 + $0x138] sm:$0xff] %v3020
        %4026 = vst [vmem:[%s295 + $0x140] sm:$0xff] %v3244
        %4027 = vst [vmem:[%s295 + $0x148] sm:$0xff] %v3246
        %4028 = vst [vmem:[%s295 + $0x150] sm:$0xff] %v3470
        %4029 = vst [vmem:[%s295 + $0x158] sm:$0xff] %v3472
        %4030 = vst [vmem:[%s295 + $0x160] sm:$0xff] %v3696
        %4031 = vst [vmem:[%s295 + $0x168] sm:$0xff] %v3698
        %4032 = vst [vmem:[%s295 + $0x170] sm:$0xff] %v3922
        %4033 = vst [vmem:[%s295 + $0x178] sm:$0xff] %v3924
        %4034 = vst [vmem:[%s295 + $0x180] sm:$0xff] %v2798
        %4035 = vst [vmem:[%s295 + $0x188] sm:$0xff] %v2800
        %4036 = vst [vmem:[%s295 + $0x190] sm:$0xff] %v3024
        %4037 = vst [vmem:[%s295 + $0x198] sm:$0xff] %v3026
        %4038 = vst [vmem:[%s295 + $0x1a0] sm:$0xff] %v3250
        %4039 = vst [vmem:[%s295 + $0x1a8] sm:$0xff] %v3252
        %4040 = vst [vmem:[%s295 + $0x1b0] sm:$0xff] %v3476
        %4041 = vst [vmem:[%s295 + $0x1b8] sm:$0xff] %v3478
        %4042 = vst [vmem:[%s295 + $0x1c0] sm:$0xff] %v3702
        %4043 = vst [vmem:[%s295 + $0x1c8] sm:$0xff] %v3704
        %4044 = vst [vmem:[%s295 + $0x1d0] sm:$0xff] %v3928
        %4045 = vst [vmem:[%s295 + $0x1d8] sm:$0xff] %v3930
        %4046 = vst [vmem:[%s295 + $0x1e0] sm:$0xff] %v2802
        %4047 = vst [vmem:[%s295 + $0x1e8] sm:$0xff] %v2804
        %4048 = vst [vmem:[%s295 + $0x1f0] sm:$0xff] %v3028
        %4049 = vst [vmem:[%s295 + $0x1f8] sm:$0xff] %v3030
        %4050 = vst [vmem:[%s295 + $0x200] sm:$0xff] %v3254
        %4051 = vst [vmem:[%s295 + $0x208] sm:$0xff] %v3256
        %4052 = vst [vmem:[%s295 + $0x210] sm:$0xff] %v3480
        %4053 = vst [vmem:[%s295 + $0x218] sm:$0xff] %v3482
        %4054 = vst [vmem:[%s295 + $0x220] sm:$0xff] %v3706
        %4055 = vst [vmem:[%s295 + $0x228] sm:$0xff] %v3708
        %4056 = vst [vmem:[%s295 + $0x230] sm:$0xff] %v3932
        %4057 = vst [vmem:[%s295 + $0x238] sm:$0xff] %v3934
        %4058 = vst [vmem:[%s295 + $0x240] sm:$0xff] %v2808
        %4059 = vst [vmem:[%s295 + $0x248] sm:$0xff] %v2810
        %4060 = vst [vmem:[%s295 + $0x250] sm:$0xff] %v3034
        %4061 = vst [vmem:[%s295 + $0x258] sm:$0xff] %v3036
        %4062 = vst [vmem:[%s295 + $0x260] sm:$0xff] %v3260
        %4063 = vst [vmem:[%s295 + $0x268] sm:$0xff] %v3262
        %4064 = vst [vmem:[%s295 + $0x270] sm:$0xff] %v3486
        %4065 = vst [vmem:[%s295 + $0x278] sm:$0xff] %v3488
        %4066 = vst [vmem:[%s295 + $0x280] sm:$0xff] %v3712
        %4067 = vst [vmem:[%s295 + $0x288] sm:$0xff] %v3714
        %4068 = vst [vmem:[%s295 + $0x290] sm:$0xff] %v3938
        %4069 = vst [vmem:[%s295 + $0x298] sm:$0xff] %v3940
        %4070 = vst [vmem:[%s295 + $0x2a0] sm:$0xff] %v2812
        %4071 = vst [vmem:[%s295 + $0x2a8] sm:$0xff] %v2814
        %4072 = vst [vmem:[%s295 + $0x2b0] sm:$0xff] %v3038
        %4073 = vst [vmem:[%s295 + $0x2b8] sm:$0xff] %v3040
        %4074 = vst [vmem:[%s295 + $0x2c0] sm:$0xff] %v3264
        %4075 = vst [vmem:[%s295 + $0x2c8] sm:$0xff] %v3266
        %4076 = vst [vmem:[%s295 + $0x2d0] sm:$0xff] %v3490
        %4077 = vst [vmem:[%s295 + $0x2d8] sm:$0xff] %v3492
        %4078 = vst [vmem:[%s295 + $0x2e0] sm:$0xff] %v3716
        %4079 = vst [vmem:[%s295 + $0x2e8] sm:$0xff] %v3718
        %4080 = vst [vmem:[%s295 + $0x2f0] sm:$0xff] %v3942
        %4081 = vst [vmem:[%s295 + $0x2f8] sm:$0xff] %v3944
        %4082 = vst [vmem:[%s295 + $0x300] sm:$0xff] %v2818
        %4083 = vst [vmem:[%s295 + $0x308] sm:$0xff] %v2820
        %4084 = vst [vmem:[%s295 + $0x310] sm:$0xff] %v3044
        %4085 = vst [vmem:[%s295 + $0x318] sm:$0xff] %v3046
        %4086 = vst [vmem:[%s295 + $0x320] sm:$0xff] %v3270
        %4087 = vst [vmem:[%s295 + $0x328] sm:$0xff] %v3272
        %4088 = vst [vmem:[%s295 + $0x330] sm:$0xff] %v3496
        %4089 = vst [vmem:[%s295 + $0x338] sm:$0xff] %v3498
        %4090 = vst [vmem:[%s295 + $0x340] sm:$0xff] %v3722
        %4091 = vst [vmem:[%s295 + $0x348] sm:$0xff] %v3724
        %4092 = vst [vmem:[%s295 + $0x350] sm:$0xff] %v3948
        %4093 = vst [vmem:[%s295 + $0x358] sm:$0xff] %v3950
        %4094 = vst [vmem:[%s295 + $0x360] sm:$0xff] %v2822
        %4095 = vst [vmem:[%s295 + $0x368] sm:$0xff] %v2824
        %4096 = vst [vmem:[%s295 + $0x370] sm:$0xff] %v3048
        %4097 = vst [vmem:[%s295 + $0x378] sm:$0xff] %v3050
        %4098 = vst [vmem:[%s295 + $0x380] sm:$0xff] %v3274
        %4099 = vst [vmem:[%s295 + $0x388] sm:$0xff] %v3276
        %4100 = vst [vmem:[%s295 + $0x390] sm:$0xff] %v3500
        %4101 = vst [vmem:[%s295 + $0x398] sm:$0xff] %v3502
        %4102 = vst [vmem:[%s295 + $0x3a0] sm:$0xff] %v3726
        %4103 = vst [vmem:[%s295 + $0x3a8] sm:$0xff] %v3728
        %4104 = vst [vmem:[%s295 + $0x3b0] sm:$0xff] %v3952
        %4105 = vst [vmem:[%s295 + $0x3b8] sm:$0xff] %v3954
        %4106 = vst [vmem:[%s295 + $0x3c0] sm:$0xff] %v2828
        %4107 = vst [vmem:[%s295 + $0x3c8] sm:$0xff] %v2830
        %4108 = vst [vmem:[%s295 + $0x3d0] sm:$0xff] %v3054
        %4109 = vst [vmem:[%s295 + $0x3d8] sm:$0xff] %v3056
        %4110 = vst [vmem:[%s295 + $0x3e0] sm:$0xff] %v3280
        %4111 = vst [vmem:[%s295 + $0x3e8] sm:$0xff] %v3282
        %4112 = vst [vmem:[%s295 + $0x3f0] sm:$0xff] %v3506
        %4113 = vst [vmem:[%s295 + $0x3f8] sm:$0xff] %v3508
        %4114 = vst [vmem:[%s295 + $0x400] sm:$0xff] %v3732
        %4115 = vst [vmem:[%s295 + $0x408] sm:$0xff] %v3734
        %4116 = vst [vmem:[%s295 + $0x410] sm:$0xff] %v3958
        %4117 = vst [vmem:[%s295 + $0x418] sm:$0xff] %v3960
        %4118 = vst [vmem:[%s295 + $0x420] sm:$0xff] %v2832
        %4119 = vst [vmem:[%s295 + $0x428] sm:$0xff] %v2834
        %4120 = vst [vmem:[%s295 + $0x430] sm:$0xff] %v3058
        %4121 = vst [vmem:[%s295 + $0x438] sm:$0xff] %v3060
        %4122 = vst [vmem:[%s295 + $0x440] sm:$0xff] %v3284
        %4123 = vst [vmem:[%s295 + $0x448] sm:$0xff] %v3286
        %4124 = vst [vmem:[%s295 + $0x450] sm:$0xff] %v3510
        %4125 = vst [vmem:[%s295 + $0x458] sm:$0xff] %v3512
        %4126 = vst [vmem:[%s295 + $0x460] sm:$0xff] %v3736
        %4127 = vst [vmem:[%s295 + $0x468] sm:$0xff] %v3738
        %4128 = vst [vmem:[%s295 + $0x470] sm:$0xff] %v3962
        %4129 = vst [vmem:[%s295 + $0x478] sm:$0xff] %v3964
        %4130 = vst [vmem:[%s295 + $0x480] sm:$0xff] %v2838
        %4131 = vst [vmem:[%s295 + $0x488] sm:$0xff] %v2840
        %4132 = vst [vmem:[%s295 + $0x490] sm:$0xff] %v3064
        %4133 = vst [vmem:[%s295 + $0x498] sm:$0xff] %v3066
        %4134 = vst [vmem:[%s295 + $0x4a0] sm:$0xff] %v3290
        %4135 = vst [vmem:[%s295 + $0x4a8] sm:$0xff] %v3292
        %4136 = vst [vmem:[%s295 + $0x4b0] sm:$0xff] %v3516
        %4137 = vst [vmem:[%s295 + $0x4b8] sm:$0xff] %v3518
        %4138 = vst [vmem:[%s295 + $0x4c0] sm:$0xff] %v3742
        %4139 = vst [vmem:[%s295 + $0x4c8] sm:$0xff] %v3744
        %4140 = vst [vmem:[%s295 + $0x4d0] sm:$0xff] %v3968
        %4141 = vst [vmem:[%s295 + $0x4d8] sm:$0xff] %v3970
        %4142 = vst [vmem:[%s295 + $0x4e0] sm:$0xff] %v2842
        %4143 = vst [vmem:[%s295 + $0x4e8] sm:$0xff] %v2844
        %4144 = vst [vmem:[%s295 + $0x4f0] sm:$0xff] %v3068
        %4145 = vst [vmem:[%s295 + $0x4f8] sm:$0xff] %v3070
        %4146 = vst [vmem:[%s295 + $0x500] sm:$0xff] %v3294
        %4147 = vst [vmem:[%s295 + $0x508] sm:$0xff] %v3296
        %4148 = vst [vmem:[%s295 + $0x510] sm:$0xff] %v3520
        %4149 = vst [vmem:[%s295 + $0x518] sm:$0xff] %v3522
        %4150 = vst [vmem:[%s295 + $0x520] sm:$0xff] %v3746
        %4151 = vst [vmem:[%s295 + $0x528] sm:$0xff] %v3748
        %4152 = vst [vmem:[%s295 + $0x530] sm:$0xff] %v3972
        %4153 = vst [vmem:[%s295 + $0x538] sm:$0xff] %v3974
        %4154 = vst [vmem:[%s295 + $0x540] sm:$0xff] %v2848
        %4155 = vst [vmem:[%s295 + $0x548] sm:$0xff] %v2850
        %4156 = vst [vmem:[%s295 + $0x550] sm:$0xff] %v3074
        %4157 = vst [vmem:[%s295 + $0x558] sm:$0xff] %v3076
        %4158 = vst [vmem:[%s295 + $0x560] sm:$0xff] %v3300
        %4159 = vst [vmem:[%s295 + $0x568] sm:$0xff] %v3302
        %4160 = vst [vmem:[%s295 + $0x570] sm:$0xff] %v3526
        %4161 = vst [vmem:[%s295 + $0x578] sm:$0xff] %v3528
        %4162 = vst [vmem:[%s295 + $0x580] sm:$0xff] %v3752
        %4163 = vst [vmem:[%s295 + $0x588] sm:$0xff] %v3754
        %4164 = vst [vmem:[%s295 + $0x590] sm:$0xff] %v3978
        %4165 = vst [vmem:[%s295 + $0x598] sm:$0xff] %v3980
        %4166 = vst [vmem:[%s295 + $0x5a0] sm:$0xff] %v2852
        %4167 = vst [vmem:[%s295 + $0x5a8] sm:$0xff] %v2854
        %4168 = vst [vmem:[%s295 + $0x5b0] sm:$0xff] %v3078
        %4169 = vst [vmem:[%s295 + $0x5b8] sm:$0xff] %v3080
        %4170 = vst [vmem:[%s295 + $0x5c0] sm:$0xff] %v3304
        %4171 = vst [vmem:[%s295 + $0x5c8] sm:$0xff] %v3306
        %4172 = vst [vmem:[%s295 + $0x5d0] sm:$0xff] %v3530
        %4173 = vst [vmem:[%s295 + $0x5d8] sm:$0xff] %v3532
        %4174 = vst [vmem:[%s295 + $0x5e0] sm:$0xff] %v3756
        %4175 = vst [vmem:[%s295 + $0x5e8] sm:$0xff] %v3758
        %4176 = vst [vmem:[%s295 + $0x5f0] sm:$0xff] %v3982
        %4177 = vst [vmem:[%s295 + $0x5f8] sm:$0xff] %v3984
        %s4178 = sand.u32 %s142, 1
        %s4179 = scalar_lea.sflag [#allocation4], %s4178
        %s4180 = sand.u32 %s142, 1
        %s4181 = smul.addr %s4180, 1536
        %s4182 = scalar_lea.vmem [#allocation11], %s4181
        // Predicated region
        $region61: #{tpu_custom_call.1} parent=39 // pred_check
          %p4183 = pneg %p152
        $region62: #{tpu_custom_call.1} parent=39 // pred_check_branch
          %4185 = sbr.rel (%p4183) target = $region64
        $region63: #{tpu_custom_call.1} parent=39 // pred_region
          %s4186 = smul.u32 16, %s24
          %s4188 = ssub.s32 24576, 24576
          %4189 = vsyncadd %s4179, %s4188
          %s4190 = smul.addr %s4186, 12
          %s4191 = smul.addr %s4190, 128
          %s4192 = scalar_lea.hbm %s5, %s4191
          %s4193 = sshll.u32 %s4182, 4
          %s4194 = int_to_ptr.vmem [resolvable:$true] %s4193
          %4199 = dma.vmem_to_hbm [thread:$0]  %s4194, 24576, %s4192, %s4179, 1536, 1536, 96
        $region64: #{tpu_custom_call.1} parent=39 // pred_fallthru
          _
      $region40: #{tpu_custom_call.1} parent=5 // pred_fallthru
        _
      %p4200 = scmp.le.s32.totalorder 2, %s19
      // Predicated region
      $region65: #{tpu_custom_call.1} parent=5 // pred_check
        %p4201 = pneg %p4200
      $region66: #{tpu_custom_call.1} parent=5 // pred_check_branch
        %4203 = sbr.rel (%p4201) target = $region68
      $region67: #{tpu_custom_call.1} parent=5 // pred_region
        %s4204 = ssub.s32 %s19, 2
        // Predicated region
        $region69: #{tpu_custom_call.1} parent=67 // pred_check
          %p4205 = pneg %p158
        $region70: #{tpu_custom_call.1} parent=67 // pred_check_branch
          %4207 = sbr.rel (%p4205) target = $region72
        $region71: #{tpu_custom_call.1} parent=67 // pred_region
          %s4208 = sand.u32 %s143, 1
          %s4209 = scalar_lea.sflag [#allocation4], %s4208
          %s4210 = sand.u32 %s143, 1
          %s4211 = smul.addr %s4210, 1536
          %s4212 = scalar_lea.vmem [#allocation11], %s4211
          %4213 = dma.done %s4209, 24576
        $region72: #{tpu_custom_call.1} parent=67 // pred_fallthru
          _
      $region68: #{tpu_custom_call.1} parent=5 // pred_fallthru
        _
    $region6: #{tpu_custom_call.1} parent=1 // loop_footer
      %s23 = sadd.s32 1, %s19
    $region7: #{tpu_custom_call.1} parent=1 // loop_footer_branch
      %18 = sbr.rel target = $region3
    $region8: #{tpu_custom_call.1} parent=1 // loop_exit
      _
    %4214 = vsyncpa [#allocation3], 1
    %s4215 = scalar_lea.sflag [#allocation3], 1
    %4216 = vsyncpa %s4215, 1
    %4217 = vsyncpa [#allocation6], 1
    %4218 = vsyncpa [#allocation9], 1
    %4219 = vsyncpa [#allocation4], 1
    %s4220 = scalar_lea.sflag [#allocation4], 1
    %4221 = vsyncpa %s4220, 1

</llo_original>
